<compile_context>
chip_gen: v6e
topology: v6e:2x2x1
jax: 0.10.0
libtpu: 0.0.40
codegen_flags: <defaults>
</compile_context>

<pallas_src>
import functools

import jax
import jax.numpy as jnp
from jax import lax
from jax.experimental import pallas as pl
from jax.experimental.pallas import tpu as pltpu

_TAPS = tuple((dy, dx) for dy in range(3) for dx in range(3))


def basic_block_kernel(x_ref, w1_ref, b1_ref, w2_ref, b2_ref, wsc_ref, bsc_ref,
                       out_ref, xpad_ref, mpool_ref, *, NB, H, W, Cin, Cout):
    """One grid step processes NB images.

    x_ref     : (NB, H, W, Cin)  f32   unpadded input block
    w1_ref    : (9, Cin, Cin)    bf16  conv3x3 #1 weights (tap-major)
    w2_ref    : (9, Cin, Cout)   bf16  conv3x3 #2 weights (tap-major)
    wsc_ref   : (Cin, Cout)      bf16  shortcut 1x1-conv weights
    b*_ref    : (1, C)           f32   biases
    out_ref   : (NB, Ho, Wo, Cout)     output block (single full store)
    xpad_ref  : (NB, H+2, W+2, Cin) f32  halo scratch (holds relu(x), then h1)
    mpool_ref : (NB, Ho, W, Cout)   f32  H-pooled main-branch staging
    """
    Ho, Wo = H // 2, W // 2
    M = NB * H * W

    # Zero only the 1-wide halo border (4 thin stores).  Re-done every step so the kernel is
    # correct when the "parallel" batch axis is sharded across TensorCores (fresh per-core
    # scratch); the interior is fully rewritten below.  relu(x) >= 0 and h1 >= 0, so the zero
    # border reproduces the convs' SAME zero padding exactly.
    zrow = jnp.zeros((NB, 1, W + 2, Cin), jnp.float32)
    zcol = jnp.zeros((NB, H + 2, 1, Cin), jnp.float32)
    xpad_ref[:, 0:1, :, :] = zrow
    xpad_ref[:, H + 1:H + 2, :, :] = zrow
    xpad_ref[:, :, 0:1, :] = zcol
    xpad_ref[:, :, W + 1:W + 2, :] = zcol

    x = x_ref[...].astype(jnp.float32)                          # (NB, H, W, Cin)

    def conv3x3(w_ref, b_ref):
        # 9 accumulated K=Cin matmuls on shifted halo views (no im2col scratch roundtrip).
        # bf16 MXU operands, f32 accumulation.
        acc = None
        for t, (dy, dx) in enumerate(_TAPS):
            tap = xpad_ref[:, dy:dy + H, dx:dx + W, :].reshape(M, Cin).astype(jnp.bfloat16)
            part = jnp.dot(tap, w_ref[t], preferred_element_type=jnp.float32)
            acc = part if acc is None else acc + part
        return acc + b_ref[...]

    # ---- main branch: ReLU -> conv3x3(Cin->Cin) -> ReLU -> conv3x3(Cin->Cout) --------------
    xpad_ref[:, 1:H + 1, 1:W + 1, :] = jnp.maximum(x, 0.0)        # first ReLU fused into halo
    h1 = jnp.maximum(conv3x3(w1_ref, b1_ref), 0.0)                # (M, Cin), second ReLU
    xpad_ref[:, 1:H + 1, 1:W + 1, :] = h1.reshape(NB, H, W, Cin)  # reuse halo buffer for h1
    h2 = conv3x3(w2_ref, b2_ref)                                  # (M, Cout)

    # ---- MaxPool2d(2,2) on the main branch: H direction in registers, W direction via two
    # sublane-strided reads of the staged H-pooled tensor.
    h5 = h2.reshape(NB, Ho, 2, W, Cout)
    mpool_ref[...] = jnp.maximum(h5[:, :, 0], h5[:, :, 1])        # (NB, Ho, W, Cout)
    mp = jnp.maximum(mpool_ref[:, :, pl.ds(0, Wo, stride=2), :],
                     mpool_ref[:, :, pl.ds(1, Wo, stride=2), :])  # (NB, Ho, Wo, Cout)

    # ---- shortcut: MaxPool2d(2,2) straight off the input block, then ONE 1x1-conv matmul ----
    sw = jnp.maximum(x_ref[:, :, pl.ds(0, Wo, stride=2), :],
                     x_ref[:, :, pl.ds(1, Wo, stride=2), :]).astype(jnp.float32)  # (NB,H,Wo,Cin)
    s5 = sw.reshape(NB, Ho, 2, Wo, Cin)
    sp = jnp.maximum(s5[:, :, 0], s5[:, :, 1])                    # (NB, Ho, Wo, Cin)
    sc = jnp.dot(sp.reshape(NB * Ho * Wo, Cin).astype(jnp.bfloat16), wsc_ref[...],
                 preferred_element_type=jnp.float32) + bsc_ref[...]   # (NB*Ho*Wo, Cout)

    # ---- residual add, single full-block store ----------------------------------------------
    res = mp + sc.reshape(NB, Ho, Wo, Cout)
    out_ref[...] = res.astype(out_ref.dtype)


def _round_up(v, m):
    return -(-v // m) * m


def _padded_bytes(shape, itemsize):
    """VMEM bytes after (sublane, lane) tiling: last dim -> mult of 128, second-to-last ->
    mult of 8 (f32) / 16 (bf16)."""
    dims = list(shape)
    dims[-1] = _round_up(dims[-1], 128)
    if len(dims) >= 2:
        dims[-2] = _round_up(dims[-2], 8 * max(1, 4 // itemsize))
    n = itemsize
    for d in dims:
        n *= d
    return n


def _per_image_vmem_bytes(H, W, Cin, Cout):
    Ho, Wo = H // 2, W // 2
    b = 0
    b += 2 * _padded_bytes((H, W, Cin), 4)             # input block (double-buffered)
    b += 2 * _padded_bytes((Ho, Wo, Cout), 4)          # output block (double-buffered)
    b += _padded_bytes((H + 2, W + 2, Cin), 4)         # halo scratch
    b += _padded_bytes((Ho, W, Cout), 4)               # H-pooled staging scratch
    b += 2 * _padded_bytes((H * W, max(Cin, Cout)), 4)  # allowance for compiler temporaries
    b += _padded_bytes((H * W, Cin), 2)                 # bf16 tap copies
    return b


def _vmem_capacity_bytes():
    try:
        info = pltpu.get_tpu_info()
        cap = int(getattr(info, "vmem_capacity_bytes", 0))
        if cap > 0:
            return cap
    except Exception:
        pass
    return 64 * 1024 * 1024   # conservative default (v7x per-TensorCore VMEM)


def _pick_images_per_step(N, H, W, Cin, Cout, budget_bytes):
    """Largest divisor of N, capped at N//2 (grid >= 2 keeps both v7x TensorCores busy and
    lets consecutive-step DMAs pipeline), whose tile-padded footprint fits the budget."""
    per_img = _per_image_vmem_bytes(H, W, Cin, Cout)
    max_nb = max(1, N // 2)
    nb = 1
    for d in range(1, max_nb + 1):
        if N % d == 0 and d * per_img <= budget_bytes:
            nb = d
    return nb


def basic_block(x_nhwc, params):
    w1, b1, w2, b2, wsc, bsc = params
    N, H, W, Cin = x_nhwc.shape
    Cout = w2.shape[-1]
    assert H % 2 == 0 and W % 2 == 0, "H and W must be even for 2x2 max pooling"
    # Note: W % 8 == 0 keeps all in-kernel reshapes (8,128)-tile aligned (no relayout copies).
    Ho, Wo = H // 2, W // 2

    vmem_cap = _vmem_capacity_bytes()
    vmem_limit = max(32 * 1024 * 1024, min(vmem_cap - 8 * 1024 * 1024, 100 * 1024 * 1024))
    NB = _pick_images_per_step(N, H, W, Cin, Cout, budget_bytes=(vmem_limit * 3) // 4)
    grid = (N // NB,)

    # Layout plumbing in the wrapper (free): HWIO conv weights -> tap-major (9, Cin, C), bf16.
    w1r = w1.reshape(9, Cin, Cin).astype(jnp.bfloat16)
    w2r = w2.reshape(9, Cin, Cout).astype(jnp.bfloat16)
    wscr = wsc.astype(jnp.bfloat16)

    kernel = functools.partial(basic_block_kernel, NB=NB, H=H, W=W, Cin=Cin, Cout=Cout)

    return pl.pallas_call(
        kernel,
        out_shape=jax.ShapeDtypeStruct((N, Ho, Wo, Cout), x_nhwc.dtype),
        grid_spec=pltpu.PrefetchScalarGridSpec(
            num_scalar_prefetch=0,
            grid=grid,
            in_specs=[
                pl.BlockSpec((NB, H, W, Cin), lambda g: (g, 0, 0, 0)),
                pl.BlockSpec((9, Cin, Cin), lambda g: (0, 0, 0)),
                pl.BlockSpec((1, Cin), lambda g: (0, 0)),
                pl.BlockSpec((9, Cin, Cout), lambda g: (0, 0, 0)),
                pl.BlockSpec((1, Cout), lambda g: (0, 0)),
                pl.BlockSpec((Cin, Cout), lambda g: (0, 0)),
                pl.BlockSpec((1, Cout), lambda g: (0, 0)),
            ],
            out_specs=pl.BlockSpec((NB, Ho, Wo, Cout), lambda g: (g, 0, 0, 0)),
            scratch_shapes=[
                pltpu.VMEM((NB, H + 2, W + 2, Cin), jnp.float32),   # halo buffer (relu(x), h1)
                pltpu.VMEM((NB, Ho, W, Cout), jnp.float32),         # H-pooled main branch
            ],
        ),
        compiler_params=pltpu.CompilerParams(
            dimension_semantics=("parallel",),
            vmem_limit_bytes=int(vmem_limit),
        ),
    )(x_nhwc, w1r, b1.reshape(1, Cin), w2r, b2.reshape(1, Cout), wscr, bsc.reshape(1, Cout))


def ref_forward(x_nhwc, params):
    """Pure-JAX reference of BasicBlock.forward (norm=None, nl=ReLU, pooling='max')."""
    w1, b1, w2, b2, wsc, bsc = params
    dn = ("NHWC", "HWIO", "NHWC")
    h = jax.nn.relu(x_nhwc)
    h = lax.conv_general_dilated(h, w1, (1, 1), "SAME", dimension_numbers=dn) + b1
    h = jax.nn.relu(h)
    h = lax.conv_general_dilated(h, w2, (1, 1), "SAME", dimension_numbers=dn) + b2
    h = lax.reduce_window(h, -jnp.inf, lax.max, (1, 2, 2, 1), (1, 2, 2, 1), "VALID")
    xp = lax.reduce_window(x_nhwc, -jnp.inf, lax.max, (1, 2, 2, 1), (1, 2, 2, 1), "VALID")
    sc = jnp.einsum("nhwc,cd->nhwd", xp, wsc) + bsc
    return h + sc


if __name__ == "__main__":
    N, Cin, H, W, Cout = 2, 4, 16, 16, 8

    key = jax.random.PRNGKey(0)
    ks = jax.random.split(key, 7)
    x_nchw = jax.random.normal(ks[0], (N, Cin, H, W), jnp.float32)       # PyTorch-style input
    w1 = jax.random.normal(ks[1], (3, 3, Cin, Cin), jnp.float32) * 0.1   # conv3x3(in, in), HWIO
    b1 = jax.random.normal(ks[2], (Cin,), jnp.float32) * 0.1
    w2 = jax.random.normal(ks[3], (3, 3, Cin, Cout), jnp.float32) * 0.1  # conv3x3(in, out), HWIO
    b2 = jax.random.normal(ks[4], (Cout,), jnp.float32) * 0.1
    wsc = jax.random.normal(ks[5], (Cin, Cout), jnp.float32) * 0.1       # shortcut conv1x1
    bsc = jax.random.normal(ks[6], (Cout,), jnp.float32) * 0.1
    params = (w1, b1, w2, b2, wsc, bsc)

    x_nhwc = jnp.transpose(x_nchw, (0, 2, 3, 1))  # NCHW -> NHWC for the kernel

    out = basic_block(x_nhwc, params)
    out = jax.block_until_ready(out)

    ref = ref_forward(x_nhwc, params)
    assert out.shape == (N, H // 2, W // 2, Cout), out.shape
    err = float(jnp.max(jnp.abs(out - ref)))
    # bf16 MXU operands (f32 accumulation) -> tolerance loosened vs. a pure-f32 run.
    assert jnp.allclose(out, ref, atol=2e-2, rtol=2e-2), err

    print("KERNEL_OK")
</pallas_src>

<mosaic_0001>
module attributes {stable_mosaic.version = 11 : i64} {
  func.func @basic_block_kernel(%arg0: i32, %arg1: memref<1x16x16x4xf32, #tpu.memory_space<vmem>>, %arg2: memref<9x4x4xbf16, #tpu.memory_space<vmem>>, %arg3: memref<1x4xf32, #tpu.memory_space<vmem>>, %arg4: memref<9x4x8xbf16, #tpu.memory_space<vmem>>, %arg5: memref<1x8xf32, #tpu.memory_space<vmem>>, %arg6: memref<4x8xbf16, #tpu.memory_space<vmem>>, %arg7: memref<1x8xf32, #tpu.memory_space<vmem>>, %arg8: memref<1x8x8x8xf32, #tpu.memory_space<vmem>>, %arg9: memref<1x18x18x4xf32, #tpu.memory_space<vmem>>, %arg10: memref<1x8x16x8xf32, #tpu.memory_space<vmem>>) attributes {dimension_semantics = [#tpu.dimension_semantics<parallel>], iteration_bounds = array<i64: 2>, scalar_prefetch = 0 : i64, scratch_operands = 2 : i64, tpu.core_type = #tpu.core_type<tc>, window_params = [{transform_indices = @transform_0, window_bounds = array<i64: 1, 16, 16, 4>}, {pipeline_mode = #tpu.pipeline_mode<synchronous>, transform_indices = @transform_1, window_bounds = array<i64: 9, 4, 4>}, {pipeline_mode = #tpu.pipeline_mode<synchronous>, transform_indices = @transform_2, window_bounds = array<i64: 1, 4>}, {pipeline_mode = #tpu.pipeline_mode<synchronous>, transform_indices = @transform_3, window_bounds = array<i64: 9, 4, 8>}, {pipeline_mode = #tpu.pipeline_mode<synchronous>, transform_indices = @transform_4, window_bounds = array<i64: 1, 8>}, {pipeline_mode = #tpu.pipeline_mode<synchronous>, transform_indices = @transform_5, window_bounds = array<i64: 4, 8>}, {pipeline_mode = #tpu.pipeline_mode<synchronous>, transform_indices = @transform_6, window_bounds = array<i64: 1, 8>}, {transform_indices = @transform_7, window_bounds = array<i64: 1, 8, 8, 8>}]} {
    %cst = arith.constant 0.000000e+00 : f32
    %0 = vector.broadcast %cst : f32 to vector<1x1x18x4xf32>
    %cst_0 = arith.constant 0.000000e+00 : f32
    %1 = vector.broadcast %cst_0 : f32 to vector<1x18x1x4xf32>
    %c0 = arith.constant 0 : index
    %c0_1 = arith.constant 0 : index
    %c0_2 = arith.constant 0 : index
    %c0_3 = arith.constant 0 : index
    %2 = vector.load %arg9[%c0, %c0_1, %c0_2, %c0_3] : memref<1x18x18x4xf32, #tpu.memory_space<vmem>>, vector<1x1x18x4xf32>
    tpu.vector_store %arg9[%c0, %c0_1, %c0_2, %c0_3], %0 {strides = array<i32>} : memref<1x18x18x4xf32, #tpu.memory_space<vmem>>, vector<1x1x18x4xf32>,
    %c0_4 = arith.constant 0 : index
    %c17 = arith.constant 17 : index
    %c0_5 = arith.constant 0 : index
    %c0_6 = arith.constant 0 : index
    %3 = vector.load %arg9[%c0_4, %c17, %c0_5, %c0_6] : memref<1x18x18x4xf32, #tpu.memory_space<vmem>>, vector<1x1x18x4xf32>
    tpu.vector_store %arg9[%c0_4, %c17, %c0_5, %c0_6], %0 {strides = array<i32>} : memref<1x18x18x4xf32, #tpu.memory_space<vmem>>, vector<1x1x18x4xf32>,
    %c0_7 = arith.constant 0 : index
    %c0_8 = arith.constant 0 : index
    %c0_9 = arith.constant 0 : index
    %c0_10 = arith.constant 0 : index
    %4 = vector.load %arg9[%c0_7, %c0_8, %c0_9, %c0_10] : memref<1x18x18x4xf32, #tpu.memory_space<vmem>>, vector<1x18x1x4xf32>
    tpu.vector_store %arg9[%c0_7, %c0_8, %c0_9, %c0_10], %1 {strides = array<i32>} : memref<1x18x18x4xf32, #tpu.memory_space<vmem>>, vector<1x18x1x4xf32>,
    %c0_11 = arith.constant 0 : index
    %c0_12 = arith.constant 0 : index
    %c17_13 = arith.constant 17 : index
    %c0_14 = arith.constant 0 : index
    %5 = vector.load %arg9[%c0_11, %c0_12, %c17_13, %c0_14] : memref<1x18x18x4xf32, #tpu.memory_space<vmem>>, vector<1x18x1x4xf32>
    tpu.vector_store %arg9[%c0_11, %c0_12, %c17_13, %c0_14], %1 {strides = array<i32>} : memref<1x18x18x4xf32, #tpu.memory_space<vmem>>, vector<1x18x1x4xf32>,
    %c0_15 = arith.constant 0 : index
    %c0_16 = arith.constant 0 : index
    %c0_17 = arith.constant 0 : index
    %c0_18 = arith.constant 0 : index
    %6 = vector.load %arg1[%c0_15, %c0_16, %c0_17, %c0_18] : memref<1x16x16x4xf32, #tpu.memory_space<vmem>>, vector<1x16x16x4xf32>
    %cst_19 = arith.constant 0.000000e+00 : f32
    %7 = vector.broadcast %cst_19 : f32 to vector<1x16x16x4xf32>
    %8 = arith.maximumf %6, %7 : vector<1x16x16x4xf32>
    %c0_20 = arith.constant 0 : index
    %c1 = arith.constant 1 : index
    %c1_21 = arith.constant 1 : index
    %c0_22 = arith.constant 0 : index
    %9 = vector.load %arg9[%c0_20, %c1, %c1_21, %c0_22] : memref<1x18x18x4xf32, #tpu.memory_space<vmem>>, vector<1x16x16x4xf32>
    tpu.vector_store %arg9[%c0_20, %c1, %c1_21, %c0_22], %8 {strides = array<i32>} : memref<1x18x18x4xf32, #tpu.memory_space<vmem>>, vector<1x16x16x4xf32>,
    %c0_23 = arith.constant 0 : index
    %c0_24 = arith.constant 0 : index
    %c0_25 = arith.constant 0 : index
    %c0_26 = arith.constant 0 : index
    %10 = vector.load %arg9[%c0_23, %c0_24, %c0_25, %c0_26] : memref<1x18x18x4xf32, #tpu.memory_space<vmem>>, vector<1x16x16x4xf32>
    %11 = vector.shape_cast %10 : vector<1x16x16x4xf32> to vector<256x4xf32>
    %12 = arith.truncf %11 : vector<256x4xf32> to vector<256x4xbf16>
    %c0_27 = arith.constant 0 : index
    %c0_28 = arith.constant 0 : index
    %c0_29 = arith.constant 0 : index
    %13 = vector.load %arg2[%c0_27, %c0_28, %c0_29] : memref<9x4x4xbf16, #tpu.memory_space<vmem>>, vector<1x4x4xbf16>
    %14 = vector.shape_cast %13 : vector<1x4x4xbf16> to vector<4x4xbf16>
    %cst_30 = arith.constant dense<0.000000e+00> : vector<256x4xf32>
    %15 = tpu.matmul %12, %14, %cst_30 {dimension_numbers = #tpu.dot_dimension_numbers<[1], [0], [0], [1], [0, 0, 1, 1], [], []>} : vector<256x4xbf16>, vector<4x4xbf16>, vector<256x4xf32> -> vector<256x4xf32>
    %c0_31 = arith.constant 0 : index
    %c0_32 = arith.constant 0 : index
    %c1_33 = arith.constant 1 : index
    %c0_34 = arith.constant 0 : index
    %16 = vector.load %arg9[%c0_31, %c0_32, %c1_33, %c0_34] : memref<1x18x18x4xf32, #tpu.memory_space<vmem>>, vector<1x16x16x4xf32>
    %17 = vector.shape_cast %16 : vector<1x16x16x4xf32> to vector<256x4xf32>
    %18 = arith.truncf %17 : vector<256x4xf32> to vector<256x4xbf16>
    %c1_35 = arith.constant 1 : index
    %c0_36 = arith.constant 0 : index
    %c0_37 = arith.constant 0 : index
    %19 = vector.load %arg2[%c1_35, %c0_36, %c0_37] : memref<9x4x4xbf16, #tpu.memory_space<vmem>>, vector<1x4x4xbf16>
    %20 = vector.shape_cast %19 : vector<1x4x4xbf16> to vector<4x4xbf16>
    %cst_38 = arith.constant dense<0.000000e+00> : vector<256x4xf32>
    %21 = tpu.matmul %18, %20, %cst_38 {dimension_numbers = #tpu.dot_dimension_numbers<[1], [0], [0], [1], [0, 0, 1, 1], [], []>} : vector<256x4xbf16>, vector<4x4xbf16>, vector<256x4xf32> -> vector<256x4xf32>
    %22 = arith.addf %15, %21 : vector<256x4xf32>
    %c0_39 = arith.constant 0 : index
    %c0_40 = arith.constant 0 : index
    %c2 = arith.constant 2 : index
    %c0_41 = arith.constant 0 : index
    %23 = vector.load %arg9[%c0_39, %c0_40, %c2, %c0_41] : memref<1x18x18x4xf32, #tpu.memory_space<vmem>>, vector<1x16x16x4xf32>
    %24 = vector.shape_cast %23 : vector<1x16x16x4xf32> to vector<256x4xf32>
    %25 = arith.truncf %24 : vector<256x4xf32> to vector<256x4xbf16>
    %c2_42 = arith.constant 2 : index
    %c0_43 = arith.constant 0 : index
    %c0_44 = arith.constant 0 : index
    %26 = vector.load %arg2[%c2_42, %c0_43, %c0_44] : memref<9x4x4xbf16, #tpu.memory_space<vmem>>, vector<1x4x4xbf16>
    %27 = vector.shape_cast %26 : vector<1x4x4xbf16> to vector<4x4xbf16>
    %cst_45 = arith.constant dense<0.000000e+00> : vector<256x4xf32>
    %28 = tpu.matmul %25, %27, %cst_45 {dimension_numbers = #tpu.dot_dimension_numbers<[1], [0], [0], [1], [0, 0, 1, 1], [], []>} : vector<256x4xbf16>, vector<4x4xbf16>, vector<256x4xf32> -> vector<256x4xf32>
    %29 = arith.addf %22, %28 : vector<256x4xf32>
    %c0_46 = arith.constant 0 : index
    %c1_47 = arith.constant 1 : index
    %c0_48 = arith.constant 0 : index
    %c0_49 = arith.constant 0 : index
    %30 = vector.load %arg9[%c0_46, %c1_47, %c0_48, %c0_49] : memref<1x18x18x4xf32, #tpu.memory_space<vmem>>, vector<1x16x16x4xf32>
    %31 = vector.shape_cast %30 : vector<1x16x16x4xf32> to vector<256x4xf32>
    %32 = arith.truncf %31 : vector<256x4xf32> to vector<256x4xbf16>
    %c3 = arith.constant 3 : index
    %c0_50 = arith.constant 0 : index
    %c0_51 = arith.constant 0 : index
    %33 = vector.load %arg2[%c3, %c0_50, %c0_51] : memref<9x4x4xbf16, #tpu.memory_space<vmem>>, vector<1x4x4xbf16>
    %34 = vector.shape_cast %33 : vector<1x4x4xbf16> to vector<4x4xbf16>
    %cst_52 = arith.constant dense<0.000000e+00> : vector<256x4xf32>
    %35 = tpu.matmul %32, %34, %cst_52 {dimension_numbers = #tpu.dot_dimension_numbers<[1], [0], [0], [1], [0, 0, 1, 1], [], []>} : vector<256x4xbf16>, vector<4x4xbf16>, vector<256x4xf32> -> vector<256x4xf32>
    %36 = arith.addf %29, %35 : vector<256x4xf32>
    %c0_53 = arith.constant 0 : index
    %c1_54 = arith.constant 1 : index
    %c1_55 = arith.constant 1 : index
    %c0_56 = arith.constant 0 : index
    %37 = vector.load %arg9[%c0_53, %c1_54, %c1_55, %c0_56] : memref<1x18x18x4xf32, #tpu.memory_space<vmem>>, vector<1x16x16x4xf32>
    %38 = vector.shape_cast %37 : vector<1x16x16x4xf32> to vector<256x4xf32>
    %39 = arith.truncf %38 : vector<256x4xf32> to vector<256x4xbf16>
    %c4 = arith.constant 4 : index
    %c0_57 = arith.constant 0 : index
    %c0_58 = arith.constant 0 : index
    %40 = vector.load %arg2[%c4, %c0_57, %c0_58] : memref<9x4x4xbf16, #tpu.memory_space<vmem>>, vector<1x4x4xbf16>
    %41 = vector.shape_cast %40 : vector<1x4x4xbf16> to vector<4x4xbf16>
    %cst_59 = arith.constant dense<0.000000e+00> : vector<256x4xf32>
    %42 = tpu.matmul %39, %41, %cst_59 {dimension_numbers = #tpu.dot_dimension_numbers<[1], [0], [0], [1], [0, 0, 1, 1], [], []>} : vector<256x4xbf16>, vector<4x4xbf16>, vector<256x4xf32> -> vector<256x4xf32>
    %43 = arith.addf %36, %42 : vector<256x4xf32>
    %c0_60 = arith.constant 0 : index
    %c1_61 = arith.constant 1 : index
    %c2_62 = arith.constant 2 : index
    %c0_63 = arith.constant 0 : index
    %44 = vector.load %arg9[%c0_60, %c1_61, %c2_62, %c0_63] : memref<1x18x18x4xf32, #tpu.memory_space<vmem>>, vector<1x16x16x4xf32>
    %45 = vector.shape_cast %44 : vector<1x16x16x4xf32> to vector<256x4xf32>
    %46 = arith.truncf %45 : vector<256x4xf32> to vector<256x4xbf16>
    %c5 = arith.constant 5 : index
    %c0_64 = arith.constant 0 : index
    %c0_65 = arith.constant 0 : index
    %47 = vector.load %arg2[%c5, %c0_64, %c0_65] : memref<9x4x4xbf16, #tpu.memory_space<vmem>>, vector<1x4x4xbf16>
    %48 = vector.shape_cast %47 : vector<1x4x4xbf16> to vector<4x4xbf16>
    %cst_66 = arith.constant dense<0.000000e+00> : vector<256x4xf32>
    %49 = tpu.matmul %46, %48, %cst_66 {dimension_numbers = #tpu.dot_dimension_numbers<[1], [0], [0], [1], [0, 0, 1, 1], [], []>} : vector<256x4xbf16>, vector<4x4xbf16>, vector<256x4xf32> -> vector<256x4xf32>
    %50 = arith.addf %43, %49 : vector<256x4xf32>
    %c0_67 = arith.constant 0 : index
    %c2_68 = arith.constant 2 : index
    %c0_69 = arith.constant 0 : index
    %c0_70 = arith.constant 0 : index
    %51 = vector.load %arg9[%c0_67, %c2_68, %c0_69, %c0_70] : memref<1x18x18x4xf32, #tpu.memory_space<vmem>>, vector<1x16x16x4xf32>
    %52 = vector.shape_cast %51 : vector<1x16x16x4xf32> to vector<256x4xf32>
    %53 = arith.truncf %52 : vector<256x4xf32> to vector<256x4xbf16>
    %c6 = arith.constant 6 : index
    %c0_71 = arith.constant 0 : index
    %c0_72 = arith.constant 0 : index
    %54 = vector.load %arg2[%c6, %c0_71, %c0_72] : memref<9x4x4xbf16, #tpu.memory_space<vmem>>, vector<1x4x4xbf16>
    %55 = vector.shape_cast %54 : vector<1x4x4xbf16> to vector<4x4xbf16>
    %cst_73 = arith.constant dense<0.000000e+00> : vector<256x4xf32>
    %56 = tpu.matmul %53, %55, %cst_73 {dimension_numbers = #tpu.dot_dimension_numbers<[1], [0], [0], [1], [0, 0, 1, 1], [], []>} : vector<256x4xbf16>, vector<4x4xbf16>, vector<256x4xf32> -> vector<256x4xf32>
    %57 = arith.addf %50, %56 : vector<256x4xf32>
    %c0_74 = arith.constant 0 : index
    %c2_75 = arith.constant 2 : index
    %c1_76 = arith.constant 1 : index
    %c0_77 = arith.constant 0 : index
    %58 = vector.load %arg9[%c0_74, %c2_75, %c1_76, %c0_77] : memref<1x18x18x4xf32, #tpu.memory_space<vmem>>, vector<1x16x16x4xf32>
    %59 = vector.shape_cast %58 : vector<1x16x16x4xf32> to vector<256x4xf32>
    %60 = arith.truncf %59 : vector<256x4xf32> to vector<256x4xbf16>
    %c7 = arith.constant 7 : index
    %c0_78 = arith.constant 0 : index
    %c0_79 = arith.constant 0 : index
    %61 = vector.load %arg2[%c7, %c0_78, %c0_79] : memref<9x4x4xbf16, #tpu.memory_space<vmem>>, vector<1x4x4xbf16>
    %62 = vector.shape_cast %61 : vector<1x4x4xbf16> to vector<4x4xbf16>
    %cst_80 = arith.constant dense<0.000000e+00> : vector<256x4xf32>
    %63 = tpu.matmul %60, %62, %cst_80 {dimension_numbers = #tpu.dot_dimension_numbers<[1], [0], [0], [1], [0, 0, 1, 1], [], []>} : vector<256x4xbf16>, vector<4x4xbf16>, vector<256x4xf32> -> vector<256x4xf32>
    %64 = arith.addf %57, %63 : vector<256x4xf32>
    %c0_81 = arith.constant 0 : index
    %c2_82 = arith.constant 2 : index
    %c2_83 = arith.constant 2 : index
    %c0_84 = arith.constant 0 : index
    %65 = vector.load %arg9[%c0_81, %c2_82, %c2_83, %c0_84] : memref<1x18x18x4xf32, #tpu.memory_space<vmem>>, vector<1x16x16x4xf32>
    %66 = vector.shape_cast %65 : vector<1x16x16x4xf32> to vector<256x4xf32>
    %67 = arith.truncf %66 : vector<256x4xf32> to vector<256x4xbf16>
    %c8 = arith.constant 8 : index
    %c0_85 = arith.constant 0 : index
    %c0_86 = arith.constant 0 : index
    %68 = vector.load %arg2[%c8, %c0_85, %c0_86] : memref<9x4x4xbf16, #tpu.memory_space<vmem>>, vector<1x4x4xbf16>
    %69 = vector.shape_cast %68 : vector<1x4x4xbf16> to vector<4x4xbf16>
    %cst_87 = arith.constant dense<0.000000e+00> : vector<256x4xf32>
    %70 = tpu.matmul %67, %69, %cst_87 {dimension_numbers = #tpu.dot_dimension_numbers<[1], [0], [0], [1], [0, 0, 1, 1], [], []>} : vector<256x4xbf16>, vector<4x4xbf16>, vector<256x4xf32> -> vector<256x4xf32>
    %71 = arith.addf %64, %70 : vector<256x4xf32>
    %c0_88 = arith.constant 0 : index
    %c0_89 = arith.constant 0 : index
    %72 = vector.load %arg3[%c0_88, %c0_89] : memref<1x4xf32, #tpu.memory_space<vmem>>, vector<1x4xf32>
    %73 = vector.broadcast %72 : vector<1x4xf32> to vector<256x4xf32>
    %74 = arith.addf %71, %73 : vector<256x4xf32>
    %cst_90 = arith.constant 0.000000e+00 : f32
    %75 = vector.broadcast %cst_90 : f32 to vector<256x4xf32>
    %76 = arith.maximumf %74, %75 : vector<256x4xf32>
    %77 = vector.shape_cast %76 : vector<256x4xf32> to vector<1x16x16x4xf32>
    %c0_91 = arith.constant 0 : index
    %c1_92 = arith.constant 1 : index
    %c1_93 = arith.constant 1 : index
    %c0_94 = arith.constant 0 : index
    %78 = vector.load %arg9[%c0_91, %c1_92, %c1_93, %c0_94] : memref<1x18x18x4xf32, #tpu.memory_space<vmem>>, vector<1x16x16x4xf32>
    tpu.vector_store %arg9[%c0_91, %c1_92, %c1_93, %c0_94], %77 {strides = array<i32>} : memref<1x18x18x4xf32, #tpu.memory_space<vmem>>, vector<1x16x16x4xf32>,
    %c0_95 = arith.constant 0 : index
    %c0_96 = arith.constant 0 : index
    %c0_97 = arith.constant 0 : index
    %c0_98 = arith.constant 0 : index
    %79 = vector.load %arg9[%c0_95, %c0_96, %c0_97, %c0_98] : memref<1x18x18x4xf32, #tpu.memory_space<vmem>>, vector<1x16x16x4xf32>
    %80 = vector.shape_cast %79 : vector<1x16x16x4xf32> to vector<256x4xf32>
    %81 = arith.truncf %80 : vector<256x4xf32> to vector<256x4xbf16>
    %c0_99 = arith.constant 0 : index
    %c0_100 = arith.constant 0 : index
    %c0_101 = arith.constant 0 : index
    %82 = vector.load %arg4[%c0_99, %c0_100, %c0_101] : memref<9x4x8xbf16, #tpu.memory_space<vmem>>, vector<1x4x8xbf16>
    %83 = vector.shape_cast %82 : vector<1x4x8xbf16> to vector<4x8xbf16>
    %cst_102 = arith.constant dense<0.000000e+00> : vector<256x8xf32>
    %84 = tpu.matmul %81, %83, %cst_102 {dimension_numbers = #tpu.dot_dimension_numbers<[1], [0], [0], [1], [0, 0, 1, 1], [], []>} : vector<256x4xbf16>, vector<4x8xbf16>, vector<256x8xf32> -> vector<256x8xf32>
    %c0_103 = arith.constant 0 : index
    %c0_104 = arith.constant 0 : index
    %c1_105 = arith.constant 1 : index
    %c0_106 = arith.constant 0 : index
    %85 = vector.load %arg9[%c0_103, %c0_104, %c1_105, %c0_106] : memref<1x18x18x4xf32, #tpu.memory_space<vmem>>, vector<1x16x16x4xf32>
    %86 = vector.shape_cast %85 : vector<1x16x16x4xf32> to vector<256x4xf32>
    %87 = arith.truncf %86 : vector<256x4xf32> to vector<256x4xbf16>
    %c1_107 = arith.constant 1 : index
    %c0_108 = arith.constant 0 : index
    %c0_109 = arith.constant 0 : index
    %88 = vector.load %arg4[%c1_107, %c0_108, %c0_109] : memref<9x4x8xbf16, #tpu.memory_space<vmem>>, vector<1x4x8xbf16>
    %89 = vector.shape_cast %88 : vector<1x4x8xbf16> to vector<4x8xbf16>
    %cst_110 = arith.constant dense<0.000000e+00> : vector<256x8xf32>
    %90 = tpu.matmul %87, %89, %cst_110 {dimension_numbers = #tpu.dot_dimension_numbers<[1], [0], [0], [1], [0, 0, 1, 1], [], []>} : vector<256x4xbf16>, vector<4x8xbf16>, vector<256x8xf32> -> vector<256x8xf32>
    %91 = arith.addf %84, %90 : vector<256x8xf32>
    %c0_111 = arith.constant 0 : index
    %c0_112 = arith.constant 0 : index
    %c2_113 = arith.constant 2 : index
    %c0_114 = arith.constant 0 : index
    %92 = vector.load %arg9[%c0_111, %c0_112, %c2_113, %c0_114] : memref<1x18x18x4xf32, #tpu.memory_space<vmem>>, vector<1x16x16x4xf32>
    %93 = vector.shape_cast %92 : vector<1x16x16x4xf32> to vector<256x4xf32>
    %94 = arith.truncf %93 : vector<256x4xf32> to vector<256x4xbf16>
    %c2_115 = arith.constant 2 : index
    %c0_116 = arith.constant 0 : index
    %c0_117 = arith.constant 0 : index
    %95 = vector.load %arg4[%c2_115, %c0_116, %c0_117] : memref<9x4x8xbf16, #tpu.memory_space<vmem>>, vector<1x4x8xbf16>
    %96 = vector.shape_cast %95 : vector<1x4x8xbf16> to vector<4x8xbf16>
    %cst_118 = arith.constant dense<0.000000e+00> : vector<256x8xf32>
    %97 = tpu.matmul %94, %96, %cst_118 {dimension_numbers = #tpu.dot_dimension_numbers<[1], [0], [0], [1], [0, 0, 1, 1], [], []>} : vector<256x4xbf16>, vector<4x8xbf16>, vector<256x8xf32> -> vector<256x8xf32>
    %98 = arith.addf %91, %97 : vector<256x8xf32>
    %c0_119 = arith.constant 0 : index
    %c1_120 = arith.constant 1 : index
    %c0_121 = arith.constant 0 : index
    %c0_122 = arith.constant 0 : index
    %99 = vector.load %arg9[%c0_119, %c1_120, %c0_121, %c0_122] : memref<1x18x18x4xf32, #tpu.memory_space<vmem>>, vector<1x16x16x4xf32>
    %100 = vector.shape_cast %99 : vector<1x16x16x4xf32> to vector<256x4xf32>
    %101 = arith.truncf %100 : vector<256x4xf32> to vector<256x4xbf16>
    %c3_123 = arith.constant 3 : index
    %c0_124 = arith.constant 0 : index
    %c0_125 = arith.constant 0 : index
    %102 = vector.load %arg4[%c3_123, %c0_124, %c0_125] : memref<9x4x8xbf16, #tpu.memory_space<vmem>>, vector<1x4x8xbf16>
    %103 = vector.shape_cast %102 : vector<1x4x8xbf16> to vector<4x8xbf16>
    %cst_126 = arith.constant dense<0.000000e+00> : vector<256x8xf32>
    %104 = tpu.matmul %101, %103, %cst_126 {dimension_numbers = #tpu.dot_dimension_numbers<[1], [0], [0], [1], [0, 0, 1, 1], [], []>} : vector<256x4xbf16>, vector<4x8xbf16>, vector<256x8xf32> -> vector<256x8xf32>
    %105 = arith.addf %98, %104 : vector<256x8xf32>
    %c0_127 = arith.constant 0 : index
    %c1_128 = arith.constant 1 : index
    %c1_129 = arith.constant 1 : index
    %c0_130 = arith.constant 0 : index
    %106 = vector.load %arg9[%c0_127, %c1_128, %c1_129, %c0_130] : memref<1x18x18x4xf32, #tpu.memory_space<vmem>>, vector<1x16x16x4xf32>
    %107 = vector.shape_cast %106 : vector<1x16x16x4xf32> to vector<256x4xf32>
    %108 = arith.truncf %107 : vector<256x4xf32> to vector<256x4xbf16>
    %c4_131 = arith.constant 4 : index
    %c0_132 = arith.constant 0 : index
    %c0_133 = arith.constant 0 : index
    %109 = vector.load %arg4[%c4_131, %c0_132, %c0_133] : memref<9x4x8xbf16, #tpu.memory_space<vmem>>, vector<1x4x8xbf16>
    %110 = vector.shape_cast %109 : vector<1x4x8xbf16> to vector<4x8xbf16>
    %cst_134 = arith.constant dense<0.000000e+00> : vector<256x8xf32>
    %111 = tpu.matmul %108, %110, %cst_134 {dimension_numbers = #tpu.dot_dimension_numbers<[1], [0], [0], [1], [0, 0, 1, 1], [], []>} : vector<256x4xbf16>, vector<4x8xbf16>, vector<256x8xf32> -> vector<256x8xf32>
    %112 = arith.addf %105, %111 : vector<256x8xf32>
    %c0_135 = arith.constant 0 : index
    %c1_136 = arith.constant 1 : index
    %c2_137 = arith.constant 2 : index
    %c0_138 = arith.constant 0 : index
    %113 = vector.load %arg9[%c0_135, %c1_136, %c2_137, %c0_138] : memref<1x18x18x4xf32, #tpu.memory_space<vmem>>, vector<1x16x16x4xf32>
    %114 = vector.shape_cast %113 : vector<1x16x16x4xf32> to vector<256x4xf32>
    %115 = arith.truncf %114 : vector<256x4xf32> to vector<256x4xbf16>
    %c5_139 = arith.constant 5 : index
    %c0_140 = arith.constant 0 : index
    %c0_141 = arith.constant 0 : index
    %116 = vector.load %arg4[%c5_139, %c0_140, %c0_141] : memref<9x4x8xbf16, #tpu.memory_space<vmem>>, vector<1x4x8xbf16>
    %117 = vector.shape_cast %116 : vector<1x4x8xbf16> to vector<4x8xbf16>
    %cst_142 = arith.constant dense<0.000000e+00> : vector<256x8xf32>
    %118 = tpu.matmul %115, %117, %cst_142 {dimension_numbers = #tpu.dot_dimension_numbers<[1], [0], [0], [1], [0, 0, 1, 1], [], []>} : vector<256x4xbf16>, vector<4x8xbf16>, vector<256x8xf32> -> vector<256x8xf32>
    %119 = arith.addf %112, %118 : vector<256x8xf32>
    %c0_143 = arith.constant 0 : index
    %c2_144 = arith.constant 2 : index
    %c0_145 = arith.constant 0 : index
    %c0_146 = arith.constant 0 : index
    %120 = vector.load %arg9[%c0_143, %c2_144, %c0_145, %c0_146] : memref<1x18x18x4xf32, #tpu.memory_space<vmem>>, vector<1x16x16x4xf32>
    %121 = vector.shape_cast %120 : vector<1x16x16x4xf32> to vector<256x4xf32>
    %122 = arith.truncf %121 : vector<256x4xf32> to vector<256x4xbf16>
    %c6_147 = arith.constant 6 : index
    %c0_148 = arith.constant 0 : index
    %c0_149 = arith.constant 0 : index
    %123 = vector.load %arg4[%c6_147, %c0_148, %c0_149] : memref<9x4x8xbf16, #tpu.memory_space<vmem>>, vector<1x4x8xbf16>
    %124 = vector.shape_cast %123 : vector<1x4x8xbf16> to vector<4x8xbf16>
    %cst_150 = arith.constant dense<0.000000e+00> : vector<256x8xf32>
    %125 = tpu.matmul %122, %124, %cst_150 {dimension_numbers = #tpu.dot_dimension_numbers<[1], [0], [0], [1], [0, 0, 1, 1], [], []>} : vector<256x4xbf16>, vector<4x8xbf16>, vector<256x8xf32> -> vector<256x8xf32>
    %126 = arith.addf %119, %125 : vector<256x8xf32>
    %c0_151 = arith.constant 0 : index
    %c2_152 = arith.constant 2 : index
    %c1_153 = arith.constant 1 : index
    %c0_154 = arith.constant 0 : index
    %127 = vector.load %arg9[%c0_151, %c2_152, %c1_153, %c0_154] : memref<1x18x18x4xf32, #tpu.memory_space<vmem>>, vector<1x16x16x4xf32>
    %128 = vector.shape_cast %127 : vector<1x16x16x4xf32> to vector<256x4xf32>
    %129 = arith.truncf %128 : vector<256x4xf32> to vector<256x4xbf16>
    %c7_155 = arith.constant 7 : index
    %c0_156 = arith.constant 0 : index
    %c0_157 = arith.constant 0 : index
    %130 = vector.load %arg4[%c7_155, %c0_156, %c0_157] : memref<9x4x8xbf16, #tpu.memory_space<vmem>>, vector<1x4x8xbf16>
    %131 = vector.shape_cast %130 : vector<1x4x8xbf16> to vector<4x8xbf16>
    %cst_158 = arith.constant dense<0.000000e+00> : vector<256x8xf32>
    %132 = tpu.matmul %129, %131, %cst_158 {dimension_numbers = #tpu.dot_dimension_numbers<[1], [0], [0], [1], [0, 0, 1, 1], [], []>} : vector<256x4xbf16>, vector<4x8xbf16>, vector<256x8xf32> -> vector<256x8xf32>
    %133 = arith.addf %126, %132 : vector<256x8xf32>
    %c0_159 = arith.constant 0 : index
    %c2_160 = arith.constant 2 : index
    %c2_161 = arith.constant 2 : index
    %c0_162 = arith.constant 0 : index
    %134 = vector.load %arg9[%c0_159, %c2_160, %c2_161, %c0_162] : memref<1x18x18x4xf32, #tpu.memory_space<vmem>>, vector<1x16x16x4xf32>
    %135 = vector.shape_cast %134 : vector<1x16x16x4xf32> to vector<256x4xf32>
    %136 = arith.truncf %135 : vector<256x4xf32> to vector<256x4xbf16>
    %c8_163 = arith.constant 8 : index
    %c0_164 = arith.constant 0 : index
    %c0_165 = arith.constant 0 : index
    %137 = vector.load %arg4[%c8_163, %c0_164, %c0_165] : memref<9x4x8xbf16, #tpu.memory_space<vmem>>, vector<1x4x8xbf16>
    %138 = vector.shape_cast %137 : vector<1x4x8xbf16> to vector<4x8xbf16>
    %cst_166 = arith.constant dense<0.000000e+00> : vector<256x8xf32>
    %139 = tpu.matmul %136, %138, %cst_166 {dimension_numbers = #tpu.dot_dimension_numbers<[1], [0], [0], [1], [0, 0, 1, 1], [], []>} : vector<256x4xbf16>, vector<4x8xbf16>, vector<256x8xf32> -> vector<256x8xf32>
    %140 = arith.addf %133, %139 : vector<256x8xf32>
    %c0_167 = arith.constant 0 : index
    %c0_168 = arith.constant 0 : index
    %141 = vector.load %arg5[%c0_167, %c0_168] : memref<1x8xf32, #tpu.memory_space<vmem>>, vector<1x8xf32>
    %142 = vector.broadcast %141 : vector<1x8xf32> to vector<256x8xf32>
    %143 = arith.addf %140, %142 : vector<256x8xf32>
    %144 = vector.shape_cast %143 : vector<256x8xf32> to vector<1x8x2x16x8xf32>
    %145 = vector.extract_strided_slice %144 {offsets = [0, 0, 0, 0, 0], sizes = [1, 8, 1, 16, 8], strides = [1, 1, 1, 1, 1]} : vector<1x8x2x16x8xf32> to vector<1x8x1x16x8xf32>
    %146 = vector.shape_cast %145 : vector<1x8x1x16x8xf32> to vector<1x8x16x8xf32>
    %147 = vector.extract_strided_slice %144 {offsets = [0, 0, 1, 0, 0], sizes = [1, 8, 1, 16, 8], strides = [1, 1, 1, 1, 1]} : vector<1x8x2x16x8xf32> to vector<1x8x1x16x8xf32>
    %148 = vector.shape_cast %147 : vector<1x8x1x16x8xf32> to vector<1x8x16x8xf32>
    %149 = arith.maximumf %146, %148 : vector<1x8x16x8xf32>
    %c0_169 = arith.constant 0 : index
    %c0_170 = arith.constant 0 : index
    %c0_171 = arith.constant 0 : index
    %c0_172 = arith.constant 0 : index
    %150 = vector.load %arg10[%c0_169, %c0_170, %c0_171, %c0_172] : memref<1x8x16x8xf32, #tpu.memory_space<vmem>>, vector<1x8x16x8xf32>
    tpu.vector_store %arg10[%c0_169, %c0_170, %c0_171, %c0_172], %149 {strides = array<i32>} : memref<1x8x16x8xf32, #tpu.memory_space<vmem>>, vector<1x8x16x8xf32>,
    %c0_173 = arith.constant 0 : index
    %c0_174 = arith.constant 0 : index
    %c0_175 = arith.constant 0 : index
    %c0_176 = arith.constant 0 : index
    %151 = tpu.strided_load %arg10[%c0_173, %c0_174, %c0_175, %c0_176] {strides = array<i32: 1, 1, 2, 1>} : memref<1x8x16x8xf32, #tpu.memory_space<vmem>>, vector<1x8x8x8xf32>
    %c0_177 = arith.constant 0 : index
    %c0_178 = arith.constant 0 : index
    %c1_179 = arith.constant 1 : index
    %c0_180 = arith.constant 0 : index
    %152 = tpu.strided_load %arg10[%c0_177, %c0_178, %c1_179, %c0_180] {strides = array<i32: 1, 1, 2, 1>} : memref<1x8x16x8xf32, #tpu.memory_space<vmem>>, vector<1x8x8x8xf32>
    %153 = arith.maximumf %151, %152 : vector<1x8x8x8xf32>
    %c0_181 = arith.constant 0 : index
    %c0_182 = arith.constant 0 : index
    %c0_183 = arith.constant 0 : index
    %c0_184 = arith.constant 0 : index
    %154 = tpu.strided_load %arg1[%c0_181, %c0_182, %c0_183, %c0_184] {strides = array<i32: 1, 1, 2, 1>} : memref<1x16x16x4xf32, #tpu.memory_space<vmem>>, vector<1x16x8x4xf32>
    %c0_185 = arith.constant 0 : index
    %c0_186 = arith.constant 0 : index
    %c1_187 = arith.constant 1 : index
    %c0_188 = arith.constant 0 : index
    %155 = tpu.strided_load %arg1[%c0_185, %c0_186, %c1_187, %c0_188] {strides = array<i32: 1, 1, 2, 1>} : memref<1x16x16x4xf32, #tpu.memory_space<vmem>>, vector<1x16x8x4xf32>
    %156 = arith.maximumf %154, %155 : vector<1x16x8x4xf32>
    %157 = vector.shape_cast %156 : vector<1x16x8x4xf32> to vector<1x8x2x8x4xf32>
    %158 = vector.extract_strided_slice %157 {offsets = [0, 0, 0, 0, 0], sizes = [1, 8, 1, 8, 4], strides = [1, 1, 1, 1, 1]} : vector<1x8x2x8x4xf32> to vector<1x8x1x8x4xf32>
    %159 = vector.shape_cast %158 : vector<1x8x1x8x4xf32> to vector<1x8x8x4xf32>
    %160 = vector.extract_strided_slice %157 {offsets = [0, 0, 1, 0, 0], sizes = [1, 8, 1, 8, 4], strides = [1, 1, 1, 1, 1]} : vector<1x8x2x8x4xf32> to vector<1x8x1x8x4xf32>
    %161 = vector.shape_cast %160 : vector<1x8x1x8x4xf32> to vector<1x8x8x4xf32>
    %162 = arith.maximumf %159, %161 : vector<1x8x8x4xf32>
    %163 = vector.shape_cast %162 : vector<1x8x8x4xf32> to vector<64x4xf32>
    %164 = arith.truncf %163 : vector<64x4xf32> to vector<64x4xbf16>
    %c0_189 = arith.constant 0 : index
    %c0_190 = arith.constant 0 : index
    %165 = vector.load %arg6[%c0_189, %c0_190] : memref<4x8xbf16, #tpu.memory_space<vmem>>, vector<4x8xbf16>
    %cst_191 = arith.constant dense<0.000000e+00> : vector<64x8xf32>
    %166 = tpu.matmul %164, %165, %cst_191 {dimension_numbers = #tpu.dot_dimension_numbers<[1], [0], [0], [1], [0, 0, 1, 1], [], []>} : vector<64x4xbf16>, vector<4x8xbf16>, vector<64x8xf32> -> vector<64x8xf32>
    %c0_192 = arith.constant 0 : index
    %c0_193 = arith.constant 0 : index
    %167 = vector.load %arg7[%c0_192, %c0_193] : memref<1x8xf32, #tpu.memory_space<vmem>>, vector<1x8xf32>
    %168 = vector.broadcast %167 : vector<1x8xf32> to vector<64x8xf32>
    %169 = arith.addf %166, %168 : vector<64x8xf32>
    %170 = vector.shape_cast %169 : vector<64x8xf32> to vector<1x8x8x8xf32>
    %171 = arith.addf %153, %170 : vector<1x8x8x8xf32>
    %c0_194 = arith.constant 0 : index
    %c0_195 = arith.constant 0 : index
    %c0_196 = arith.constant 0 : index
    %c0_197 = arith.constant 0 : index
    %172 = vector.load %arg8[%c0_194, %c0_195, %c0_196, %c0_197] : memref<1x8x8x8xf32, #tpu.memory_space<vmem>>, vector<1x8x8x8xf32>
    tpu.vector_store %arg8[%c0_194, %c0_195, %c0_196, %c0_197], %171 {strides = array<i32>} : memref<1x8x8x8xf32, #tpu.memory_space<vmem>>, vector<1x8x8x8xf32>,
    return
  }
  func.func @transform_0(%arg0: i32) -> (i32, i32, i32, i32) {
    %c0_i32 = arith.constant 0 : i32
    %c0_i32_0 = arith.constant 0 : i32
    %c0_i32_1 = arith.constant 0 : i32
    %c0_i32_2 = arith.constant 0 : i32
    return %arg0, %c0_i32, %c0_i32_0, %c0_i32_1 : i32, i32, i32, i32
  }
  func.func @transform_1(%arg0: i32) -> (i32, i32, i32) {
    %c0_i32 = arith.constant 0 : i32
    %c0_i32_0 = arith.constant 0 : i32
    %c0_i32_1 = arith.constant 0 : i32
    %c0_i32_2 = arith.constant 0 : i32
    return %c0_i32, %c0_i32_0, %c0_i32_1 : i32, i32, i32
  }
  func.func @transform_2(%arg0: i32) -> (i32, i32) {
    %c0_i32 = arith.constant 0 : i32
    %c0_i32_0 = arith.constant 0 : i32
    %c0_i32_1 = arith.constant 0 : i32
    return %c0_i32, %c0_i32_0 : i32, i32
  }
  func.func @transform_3(%arg0: i32) -> (i32, i32, i32) {
    %c0_i32 = arith.constant 0 : i32
    %c0_i32_0 = arith.constant 0 : i32
    %c0_i32_1 = arith.constant 0 : i32
    %c0_i32_2 = arith.constant 0 : i32
    return %c0_i32, %c0_i32_0, %c0_i32_1 : i32, i32, i32
  }
  func.func @transform_4(%arg0: i32) -> (i32, i32) {
    %c0_i32 = arith.constant 0 : i32
    %c0_i32_0 = arith.constant 0 : i32
    %c0_i32_1 = arith.constant 0 : i32
    return %c0_i32, %c0_i32_0 : i32, i32
  }
  func.func @transform_5(%arg0: i32) -> (i32, i32) {
    %c0_i32 = arith.constant 0 : i32
    %c0_i32_0 = arith.constant 0 : i32
    %c0_i32_1 = arith.constant 0 : i32
    return %c0_i32, %c0_i32_0 : i32, i32
  }
  func.func @transform_6(%arg0: i32) -> (i32, i32) {
    %c0_i32 = arith.constant 0 : i32
    %c0_i32_0 = arith.constant 0 : i32
    %c0_i32_1 = arith.constant 0 : i32
    return %c0_i32, %c0_i32_0 : i32, i32
  }
  func.func @transform_7(%arg0: i32) -> (i32, i32, i32, i32) {
    %c0_i32 = arith.constant 0 : i32
    %c0_i32_0 = arith.constant 0 : i32
    %c0_i32_1 = arith.constant 0 : i32
    %c0_i32_2 = arith.constant 0 : i32
    return %arg0, %c0_i32, %c0_i32_0, %c0_i32_1 : i32, i32, i32, i32
  }
}

</mosaic_0001>

<llo_original>
// kernel: tpu_custom_call.1
$region0: #{tpu_custom_call.1}
  #allocation0 [shape = 'u32[]', space=smem, size = 0x4, offset = 0x4, fixed_abs, tag = 'smem constant byte address 0x4 - core index']
  #allocation1 [shape = 'u32[144,128]{1,0:T(1,128)}', space=vmem, size = 0x12000, scoped, tag = 'internal scratch']
  #allocation2 [shape = 'f32[1,18,18,4]{3,2,1,0:T(8,128)}', space=vmem, size = 0x36000, scoped, tag = 'scratch operand']
  #allocation3 [shape = 'f32[1,8,16,8]{3,2,1,0:T(8,128)}', space=vmem, size = 0x10000, scoped, tag = 'scratch operand']
  %s0 = inlined_call_operand.vmem [shape: f32[2,16,16,4], index: 0, kind: input, shape index: {}]
  %s1 = inlined_call_operand.vmem [shape: bf16[9,4,4], index: 1, kind: input, shape index: {}]
  %s2 = inlined_call_operand.vmem [shape: f32[1,4], index: 2, kind: input, shape index: {}]
  %s3 = inlined_call_operand.vmem [shape: bf16[9,4,8], index: 3, kind: input, shape index: {}]
  %s4 = inlined_call_operand.vmem [shape: f32[1,8], index: 4, kind: input, shape index: {}]
  %s5 = inlined_call_operand.vmem [shape: bf16[4,8], index: 5, kind: input, shape index: {}]
  %s6 = inlined_call_operand.vmem [shape: f32[1,8], index: 6, kind: input, shape index: {}]
  %s7 = inlined_call_operand.hbm [shape: f32[2,8,8,8], index: 7, kind: output, shape index: {}]
  %s8 = sld [smem:[#allocation0]]
  $region61: #{tpu_custom_call.1} parent=0
    _
  %s10 = ssub.s32 1, %s8
  %s11 = scalar_select 0, %s10, %s8
  $region1: #{tpu_custom_call.1} parent=0
    #allocation4 [shape = 'u8[65536]{0}', space=vmem, size = 0x10000, scoped, tag = 'output window, operand 0']
    #allocation5 [shape = 's32[2]{0}', space=sflag, size = 0x8, scoped, tag = 'scoped memory for tpu_custom_call.1']
    %12 = vsyncpa [#allocation5], 0
    %s13 = scalar_lea.sflag [#allocation5], 1
    %14 = vsyncpa %s13, 0
    loop: start=0, step=1, limit=4
    $region2: #{tpu_custom_call.1} parent=1 // loop_pre_header
      _
    $region3: #{tpu_custom_call.1} parent=1 // loop_header
      %s16 = sphi 0, %s20
      %p17 = scmp.ge.s32.totalorder %s16, 4
      %s26 = sphi 0, %s28
      %s29 = sphi 0, %s26
      %s30 = sphi 0, %s29
      %s46 = sphi 0, %s30
      %s50 = sphi 0, %s50
      %s52 = sphi 0, %s50
      %s53 = sphi 0, %s52
      %s67 = sphi 0, %s53
      %s71 = sphi 0, %s71
      %s73 = sphi 0, %s71
      %s74 = sphi 0, %s73
      %s88 = sphi 0, %s74
      %s92 = sphi 0, %s92
      %s94 = sphi 0, %s92
      %s95 = sphi 0, %s94
      %s109 = sphi 0, %s95
      %s113 = sphi 0, %s113
      %s115 = sphi 0, %s113
      %s116 = sphi 0, %s115
      %s130 = sphi 0, %s116
      %s134 = sphi 0, %s134
      %s136 = sphi 0, %s134
      %s137 = sphi 0, %s136
      %s151 = sphi 0, %s137
      %s155 = sphi 0, %s155
      %s157 = sphi 0, %s155
      %s158 = sphi 0, %s157
      %s172 = sphi 0, %s158
      %s178 = sphi 0, %s180
      %s181 = sphi 0, %s178
      %s182 = sphi 0, %s181
      %s198 = sphi 0, %s182
    $region4: #{tpu_custom_call.1} parent=1 // loop_header_branch
      %19 = sbr.rel (%p17) target = $region8
    $region5: #{tpu_custom_call.1} parent=1 // loop_body
      %s21 = ssub.s32 %s16, 1
      %s22 = ssub.s32 %s16, 2
      %s23 = sadd.s32 %s16, 1
      %s24 = ssub.s32 %s16, %s23
      %p25 = scmp.eq.s32.totalorder %s24, 0
      %s27 = sadd.s32 %s26, 1
      %s28 = scalar_select %p25, %s26, %s27
      %p31 = pneg %p25
      %p32 = scmp.eq.s32.totalorder %s16, 1
      %p33 = por %p31, %p32
      %p34 = scmp.ne.s32.totalorder %s26, %s29
      %p35 = scmp.eq.s32.totalorder %s16, 0
      %p36 = por %p34, %p35
      %p37 = scmp.ne.s32.totalorder %s26, %s29
      %p38 = scmp.eq.s32.totalorder %s21, 1
      %p39 = por %p37, %p38
      %p40 = scmp.ne.s32.totalorder %s29, %s30
      %p41 = scmp.eq.s32.totalorder %s21, 0
      %p42 = por %p40, %p41
      %p43 = scmp.ne.s32.totalorder %s29, %s30
      %p44 = scmp.eq.s32.totalorder %s22, 1
      %p45 = por %p43, %p44
      %p47 = scmp.ne.s32.totalorder %s30, %s46
      %p48 = scmp.eq.s32.totalorder %s22, 0
      %p49 = por %p47, %p48
      %s51 = sadd.s32 %s50, 1
      %p54 = scmp.eq.s32.totalorder %s16, 1
      %p55 = scmp.ne.s32.totalorder %s50, %s52
      %p56 = scmp.eq.s32.totalorder %s16, 0
      %p57 = por %p55, %p56
      %p58 = scmp.ne.s32.totalorder %s50, %s52
      %p59 = scmp.eq.s32.totalorder %s21, 1
      %p60 = por %p58, %p59
      %p61 = scmp.ne.s32.totalorder %s52, %s53
      %p62 = scmp.eq.s32.totalorder %s21, 0
      %p63 = por %p61, %p62
      %p64 = scmp.ne.s32.totalorder %s52, %s53
      %p65 = scmp.eq.s32.totalorder %s22, 1
      %p66 = por %p64, %p65
      %p68 = scmp.ne.s32.totalorder %s53, %s67
      %p69 = scmp.eq.s32.totalorder %s22, 0
      %p70 = por %p68, %p69
      %s72 = sadd.s32 %s71, 1
      %p75 = scmp.eq.s32.totalorder %s16, 1
      %p76 = scmp.ne.s32.totalorder %s71, %s73
      %p77 = scmp.eq.s32.totalorder %s16, 0
      %p78 = por %p76, %p77
      %p79 = scmp.ne.s32.totalorder %s71, %s73
      %p80 = scmp.eq.s32.totalorder %s21, 1
      %p81 = por %p79, %p80
      %p82 = scmp.ne.s32.totalorder %s73, %s74
      %p83 = scmp.eq.s32.totalorder %s21, 0
      %p84 = por %p82, %p83
      %p85 = scmp.ne.s32.totalorder %s73, %s74
      %p86 = scmp.eq.s32.totalorder %s22, 1
      %p87 = por %p85, %p86
      %p89 = scmp.ne.s32.totalorder %s74, %s88
      %p90 = scmp.eq.s32.totalorder %s22, 0
      %p91 = por %p89, %p90
      %s93 = sadd.s32 %s92, 1
      %p96 = scmp.eq.s32.totalorder %s16, 1
      %p97 = scmp.ne.s32.totalorder %s92, %s94
      %p98 = scmp.eq.s32.totalorder %s16, 0
      %p99 = por %p97, %p98
      %p100 = scmp.ne.s32.totalorder %s92, %s94
      %p101 = scmp.eq.s32.totalorder %s21, 1
      %p102 = por %p100, %p101
      %p103 = scmp.ne.s32.totalorder %s94, %s95
      %p104 = scmp.eq.s32.totalorder %s21, 0
      %p105 = por %p103, %p104
      %p106 = scmp.ne.s32.totalorder %s94, %s95
      %p107 = scmp.eq.s32.totalorder %s22, 1
      %p108 = por %p106, %p107
      %p110 = scmp.ne.s32.totalorder %s95, %s109
      %p111 = scmp.eq.s32.totalorder %s22, 0
      %p112 = por %p110, %p111
      %s114 = sadd.s32 %s113, 1
      %p117 = scmp.eq.s32.totalorder %s16, 1
      %p118 = scmp.ne.s32.totalorder %s113, %s115
      %p119 = scmp.eq.s32.totalorder %s16, 0
      %p120 = por %p118, %p119
      %p121 = scmp.ne.s32.totalorder %s113, %s115
      %p122 = scmp.eq.s32.totalorder %s21, 1
      %p123 = por %p121, %p122
      %p124 = scmp.ne.s32.totalorder %s115, %s116
      %p125 = scmp.eq.s32.totalorder %s21, 0
      %p126 = por %p124, %p125
      %p127 = scmp.ne.s32.totalorder %s115, %s116
      %p128 = scmp.eq.s32.totalorder %s22, 1
      %p129 = por %p127, %p128
      %p131 = scmp.ne.s32.totalorder %s116, %s130
      %p132 = scmp.eq.s32.totalorder %s22, 0
      %p133 = por %p131, %p132
      %s135 = sadd.s32 %s134, 1
      %p138 = scmp.eq.s32.totalorder %s16, 1
      %p139 = scmp.ne.s32.totalorder %s134, %s136
      %p140 = scmp.eq.s32.totalorder %s16, 0
      %p141 = por %p139, %p140
      %p142 = scmp.ne.s32.totalorder %s134, %s136
      %p143 = scmp.eq.s32.totalorder %s21, 1
      %p144 = por %p142, %p143
      %p145 = scmp.ne.s32.totalorder %s136, %s137
      %p146 = scmp.eq.s32.totalorder %s21, 0
      %p147 = por %p145, %p146
      %p148 = scmp.ne.s32.totalorder %s136, %s137
      %p149 = scmp.eq.s32.totalorder %s22, 1
      %p150 = por %p148, %p149
      %p152 = scmp.ne.s32.totalorder %s137, %s151
      %p153 = scmp.eq.s32.totalorder %s22, 0
      %p154 = por %p152, %p153
      %s156 = sadd.s32 %s155, 1
      %p159 = scmp.eq.s32.totalorder %s16, 1
      %p160 = scmp.ne.s32.totalorder %s155, %s157
      %p161 = scmp.eq.s32.totalorder %s16, 0
      %p162 = por %p160, %p161
      %p163 = scmp.ne.s32.totalorder %s155, %s157
      %p164 = scmp.eq.s32.totalorder %s21, 1
      %p165 = por %p163, %p164
      %p166 = scmp.ne.s32.totalorder %s157, %s158
      %p167 = scmp.eq.s32.totalorder %s21, 0
      %p168 = por %p166, %p167
      %p169 = scmp.ne.s32.totalorder %s157, %s158
      %p170 = scmp.eq.s32.totalorder %s22, 1
      %p171 = por %p169, %p170
      %p173 = scmp.ne.s32.totalorder %s158, %s172
      %p174 = scmp.eq.s32.totalorder %s22, 0
      %p175 = por %p173, %p174
      %s176 = ssub.s32 %s16, %s23
      %p177 = scmp.eq.s32.totalorder %s176, 0
      %s179 = sadd.s32 %s178, 1
      %s180 = scalar_select %p177, %s178, %s179
      %p183 = pneg %p177
      %p184 = scmp.eq.s32.totalorder %s16, 1
      %p185 = por %p183, %p184
      %p186 = scmp.ne.s32.totalorder %s178, %s181
      %p187 = scmp.eq.s32.totalorder %s16, 0
      %p188 = por %p186, %p187
      %p189 = scmp.ne.s32.totalorder %s178, %s181
      %p190 = scmp.eq.s32.totalorder %s21, 1
      %p191 = por %p189, %p190
      %p192 = scmp.ne.s32.totalorder %s181, %s182
      %p193 = scmp.eq.s32.totalorder %s21, 0
      %p194 = por %p192, %p193
      %p195 = scmp.ne.s32.totalorder %s181, %s182
      %p196 = scmp.eq.s32.totalorder %s22, 1
      %p197 = por %p195, %p196
      %p199 = scmp.ne.s32.totalorder %s182, %s198
      %p200 = scmp.eq.s32.totalorder %s22, 0
      %p201 = por %p199, %p200
      %p202 = scmp.le.s32.totalorder 1, %s16
      %p203 = scmp.lt.s32.totalorder %s16, 3
      %p204 = pnand %p202, %p203
      %p205 = pneg %p204
      // Predicated region
      $region9: #{tpu_custom_call.1} parent=5 // pred_check
        _
      $region10: #{tpu_custom_call.1} parent=5 // pred_check_branch
        %207 = sbr.rel (%p204) target = $region12
      $region11: #{tpu_custom_call.1} parent=5 // pred_region
        %s208 = ssub.s32 %s16, 1
        // Predicated region
        $region13: #{tpu_custom_call.1} parent=11 // pred_check
          %p209 = pneg %p63
        $region14: #{tpu_custom_call.1} parent=11 // pred_check_branch
          %211 = sbr.rel (%p209) target = $region16
        $region15: #{tpu_custom_call.1} parent=11 // pred_region
          _
        $region16: #{tpu_custom_call.1} parent=11 // pred_fallthru
          _
        // Predicated region
        $region17: #{tpu_custom_call.1} parent=11 // pred_check
          %p212 = pneg %p84
        $region18: #{tpu_custom_call.1} parent=11 // pred_check_branch
          %214 = sbr.rel (%p212) target = $region20
        $region19: #{tpu_custom_call.1} parent=11 // pred_region
          _
        $region20: #{tpu_custom_call.1} parent=11 // pred_fallthru
          _
        // Predicated region
        $region21: #{tpu_custom_call.1} parent=11 // pred_check
          %p215 = pneg %p105
        $region22: #{tpu_custom_call.1} parent=11 // pred_check_branch
          %217 = sbr.rel (%p215) target = $region24
        $region23: #{tpu_custom_call.1} parent=11 // pred_region
          _
        $region24: #{tpu_custom_call.1} parent=11 // pred_fallthru
          _
        // Predicated region
        $region25: #{tpu_custom_call.1} parent=11 // pred_check
          %p218 = pneg %p126
        $region26: #{tpu_custom_call.1} parent=11 // pred_check_branch
          %220 = sbr.rel (%p218) target = $region28
        $region27: #{tpu_custom_call.1} parent=11 // pred_region
          _
        $region28: #{tpu_custom_call.1} parent=11 // pred_fallthru
          _
        // Predicated region
        $region29: #{tpu_custom_call.1} parent=11 // pred_check
          %p221 = pneg %p147
        $region30: #{tpu_custom_call.1} parent=11 // pred_check_branch
          %223 = sbr.rel (%p221) target = $region32
        $region31: #{tpu_custom_call.1} parent=11 // pred_region
          _
        $region32: #{tpu_custom_call.1} parent=11 // pred_fallthru
          _
        // Predicated region
        $region33: #{tpu_custom_call.1} parent=11 // pred_check
          %p224 = pneg %p168
        $region34: #{tpu_custom_call.1} parent=11 // pred_check_branch
          %226 = sbr.rel (%p224) target = $region36
        $region35: #{tpu_custom_call.1} parent=11 // pred_region
          _
        $region36: #{tpu_custom_call.1} parent=11 // pred_fallthru
          _
      $region12: #{tpu_custom_call.1} parent=5 // pred_fallthru
        _
      %p227 = scmp.lt.s32.totalorder %s16, 2
      // Predicated region
      $region37: #{tpu_custom_call.1} parent=5 // pred_check
        %p228 = pneg %p227
      $region38: #{tpu_custom_call.1} parent=5 // pred_check_branch
        %230 = sbr.rel (%p228) target = $region40
      $region39: #{tpu_custom_call.1} parent=5 // pred_region
        // Predicated region
        $region41: #{tpu_custom_call.1} parent=39 // pred_check
          %p231 = pneg %p36
        $region42: #{tpu_custom_call.1} parent=39 // pred_check_branch
          %233 = sbr.rel (%p231) target = $region44
        $region43: #{tpu_custom_call.1} parent=39 // pred_region
          %p234 = scmp.lt.s32.totalorder %s16, 1
          %s235 = scalar_select %p234, %s16, 1
          %s236 = smul.addr %s235, 32
          %s237 = smul.addr %s236, 8
          %s238 = scalar_lea.vmem %s0, %s237
        $region44: #{tpu_custom_call.1} parent=39 // pred_fallthru
          _
      $region40: #{tpu_custom_call.1} parent=5 // pred_fallthru
        _
      %p239 = scmp.le.s32.totalorder 1, %s16
      %p240 = scmp.lt.s32.totalorder %s16, 3
      %p241 = pnand %p239, %p240
      %p242 = pneg %p241
      // Predicated region
      $region45: #{tpu_custom_call.1} parent=5 // pred_check
        _
      $region46: #{tpu_custom_call.1} parent=5 // pred_check_branch
        %244 = sbr.rel (%p241) target = $region48
      $region47: #{tpu_custom_call.1} parent=5 // pred_region
        %s245 = ssub.s32 %s16, 1
        %p246 = scmp.lt.s32.totalorder %s21, 1
        %s247 = scalar_select %p246, %s21, 1
        %s248 = smul.addr %s247, 32
        %s249 = smul.addr %s248, 8
        %s250 = scalar_lea.vmem %s0, %s249
        %p251 = pneg %p42
        %p252 = pneg %p39
        %p253 = pneg %p63
        %p254 = pneg %p60
        %p255 = pneg %p84
        %p256 = pneg %p81
        %p257 = pneg %p105
        %p258 = pneg %p102
        %p259 = pneg %p126
        %p260 = pneg %p123
        %p261 = pneg %p147
        %p262 = pneg %p144
        %p263 = pneg %p168
        %p264 = pneg %p165
        %p265 = pneg %p194
        %p266 = pneg %p191
        %s267 = sand.u32 %s181, 1
        %s268 = scalar_lea.sflag [#allocation5], %s267
        %s269 = sand.u32 %s181, 1
        %s270 = smul.addr %s269, 64
        %s271 = scalar_lea.vmem [#allocation4], %s270
        %p272 = scmp.lt.s32.totalorder %s21, 1
        %s273 = scalar_select %p272, %s21, 1
        %s274 = smul.addr %s273, 32
        %s275 = smul.addr %s274, 8
        %s276 = scalar_lea.vmem %s0, %s275
        %vm278 = vcmask 31744
        %279 = vst.msk [vmem:[#allocation2] sm:$0xff] %vm278, 0.0
        %280 = vst.msk [vmem:[#allocation2 + $0x8] sm:$0xff] %vm278, 0.0
        %vm281 = vcmask 25600
        %282 = vst.msk [vmem:[#allocation2 + $0x10] sm:$0x3] %vm281, 0.0
        %s283 = scalar_lea.vmem [#allocation2], 408
        %284 = vst.msk [vmem:[%s283] sm:$0xff] %vm278, 0.0
        %285 = vst.msk [vmem:[%s283 + $0x8] sm:$0xff] %vm278, 0.0
        %286 = vst.msk [vmem:[%s283 + $0x10] sm:$0x3] %vm281, 0.0
        %vm287 = vcmask 24576
        %288 = vst.msk [vmem:[#allocation2] sm:$0x1] %vm287, 0.0
        %289 = vst.msk [vmem:[#allocation2 + $0x18] sm:$0x1] %vm287, 0.0
        %290 = vst.msk [vmem:[#allocation2 + $0x30] sm:$0x1] %vm287, 0.0
        %291 = vst.msk [vmem:[#allocation2 + $0x48] sm:$0x1] %vm287, 0.0
        %292 = vst.msk [vmem:[#allocation2 + $0x60] sm:$0x1] %vm287, 0.0
        %293 = vst.msk [vmem:[#allocation2 + $0x78] sm:$0x1] %vm287, 0.0
        %294 = vst.msk [vmem:[#allocation2 + $0x90] sm:$0x1] %vm287, 0.0
        %295 = vst.msk [vmem:[#allocation2 + $0xa8] sm:$0x1] %vm287, 0.0
        %296 = vst.msk [vmem:[#allocation2 + $0xc0] sm:$0x1] %vm287, 0.0
        %297 = vst.msk [vmem:[#allocation2 + $0xd8] sm:$0x1] %vm287, 0.0
        %298 = vst.msk [vmem:[#allocation2 + $0xf0] sm:$0x1] %vm287, 0.0
        %299 = vst.msk [vmem:[#allocation2 + $0x108] sm:$0x1] %vm287, 0.0
        %300 = vst.msk [vmem:[#allocation2 + $0x120] sm:$0x1] %vm287, 0.0
        %301 = vst.msk [vmem:[#allocation2 + $0x138] sm:$0x1] %vm287, 0.0
        %302 = vst.msk [vmem:[#allocation2 + $0x150] sm:$0x1] %vm287, 0.0
        %303 = vst.msk [vmem:[#allocation2 + $0x168] sm:$0x1] %vm287, 0.0
        %304 = vst.msk [vmem:[#allocation2 + $0x180] sm:$0x1] %vm287, 0.0
        %305 = vst.msk [vmem:[#allocation2 + $0x198] sm:$0x1] %vm287, 0.0
        %306 = vst.msk [vmem:[#allocation2 + $0x11] sm:$0x1] %vm287, 0.0
        %307 = vst.msk [vmem:[#allocation2 + $0x29] sm:$0x1] %vm287, 0.0
        %308 = vst.msk [vmem:[#allocation2 + $0x41] sm:$0x1] %vm287, 0.0
        %309 = vst.msk [vmem:[#allocation2 + $0x59] sm:$0x1] %vm287, 0.0
        %310 = vst.msk [vmem:[#allocation2 + $0x71] sm:$0x1] %vm287, 0.0
        %311 = vst.msk [vmem:[#allocation2 + $0x89] sm:$0x1] %vm287, 0.0
        %312 = vst.msk [vmem:[#allocation2 + $0xa1] sm:$0x1] %vm287, 0.0
        %313 = vst.msk [vmem:[#allocation2 + $0xb9] sm:$0x1] %vm287, 0.0
        %314 = vst.msk [vmem:[#allocation2 + $0xd1] sm:$0x1] %vm287, 0.0
        %315 = vst.msk [vmem:[#allocation2 + $0xe9] sm:$0x1] %vm287, 0.0
        %316 = vst.msk [vmem:[#allocation2 + $0x101] sm:$0x1] %vm287, 0.0
        %317 = vst.msk [vmem:[#allocation2 + $0x119] sm:$0x1] %vm287, 0.0
        %318 = vst.msk [vmem:[#allocation2 + $0x131] sm:$0x1] %vm287, 0.0
        %319 = vst.msk [vmem:[#allocation2 + $0x149] sm:$0x1] %vm287, 0.0
        %320 = vst.msk [vmem:[#allocation2 + $0x161] sm:$0x1] %vm287, 0.0
        %321 = vst.msk [vmem:[#allocation2 + $0x179] sm:$0x1] %vm287, 0.0
        %322 = vst.msk [vmem:[#allocation2 + $0x191] sm:$0x1] %vm287, 0.0
        %323 = vst.msk [vmem:[#allocation2 + $0x1a9] sm:$0x1] %vm287, 0.0
        %v324 = vld [vmem:[%s276] sm:$0xff]
        %v325 = vld [vmem:[%s276 + $0x8] sm:$0xff]
        %v326 = vld [vmem:[%s276 + $0x10] sm:$0xff]
        %v327 = vld [vmem:[%s276 + $0x18] sm:$0xff]
        %v328 = vld [vmem:[%s276 + $0x20] sm:$0xff]
        %v329 = vld [vmem:[%s276 + $0x28] sm:$0xff]
        %v330 = vld [vmem:[%s276 + $0x30] sm:$0xff]
        %v331 = vld [vmem:[%s276 + $0x38] sm:$0xff]
        %v332 = vld [vmem:[%s276 + $0x40] sm:$0xff]
        %v333 = vld [vmem:[%s276 + $0x48] sm:$0xff]
        %v334 = vld [vmem:[%s276 + $0x50] sm:$0xff]
        %v335 = vld [vmem:[%s276 + $0x58] sm:$0xff]
        %v336 = vld [vmem:[%s276 + $0x60] sm:$0xff]
        %v337 = vld [vmem:[%s276 + $0x68] sm:$0xff]
        %v338 = vld [vmem:[%s276 + $0x70] sm:$0xff]
        %v339 = vld [vmem:[%s276 + $0x78] sm:$0xff]
        %v340 = vld [vmem:[%s276 + $0x80] sm:$0xff]
        %v341 = vld [vmem:[%s276 + $0x88] sm:$0xff]
        %v342 = vld [vmem:[%s276 + $0x90] sm:$0xff]
        %v343 = vld [vmem:[%s276 + $0x98] sm:$0xff]
        %v344 = vld [vmem:[%s276 + $0xa0] sm:$0xff]
        %v345 = vld [vmem:[%s276 + $0xa8] sm:$0xff]
        %v346 = vld [vmem:[%s276 + $0xb0] sm:$0xff]
        %v347 = vld [vmem:[%s276 + $0xb8] sm:$0xff]
        %v348 = vld [vmem:[%s276 + $0xc0] sm:$0xff]
        %v349 = vld [vmem:[%s276 + $0xc8] sm:$0xff]
        %v350 = vld [vmem:[%s276 + $0xd0] sm:$0xff]
        %v351 = vld [vmem:[%s276 + $0xd8] sm:$0xff]
        %v352 = vld [vmem:[%s276 + $0xe0] sm:$0xff]
        %v353 = vld [vmem:[%s276 + $0xe8] sm:$0xff]
        %v354 = vld [vmem:[%s276 + $0xf0] sm:$0xff]
        %v355 = vld [vmem:[%s276 + $0xf8] sm:$0xff]
        %v356 = vmax.f32 %v324, 0.0
        %v357 = vmax.f32 %v325, 0.0
        %v358 = vmax.f32 %v326, 0.0
        %v359 = vmax.f32 %v327, 0.0
        %v360 = vmax.f32 %v328, 0.0
        %v361 = vmax.f32 %v329, 0.0
        %v362 = vmax.f32 %v330, 0.0
        %v363 = vmax.f32 %v331, 0.0
        %v364 = vmax.f32 %v332, 0.0
        %v365 = vmax.f32 %v333, 0.0
        %v366 = vmax.f32 %v334, 0.0
        %v367 = vmax.f32 %v335, 0.0
        %v368 = vmax.f32 %v336, 0.0
        %v369 = vmax.f32 %v337, 0.0
        %v370 = vmax.f32 %v338, 0.0
        %v371 = vmax.f32 %v339, 0.0
        %v372 = vmax.f32 %v340, 0.0
        %v373 = vmax.f32 %v341, 0.0
        %v374 = vmax.f32 %v342, 0.0
        %v375 = vmax.f32 %v343, 0.0
        %v376 = vmax.f32 %v344, 0.0
        %v377 = vmax.f32 %v345, 0.0
        %v378 = vmax.f32 %v346, 0.0
        %v379 = vmax.f32 %v347, 0.0
        %v380 = vmax.f32 %v348, 0.0
        %v381 = vmax.f32 %v349, 0.0
        %v382 = vmax.f32 %v350, 0.0
        %v383 = vmax.f32 %v351, 0.0
        %v384 = vmax.f32 %v352, 0.0
        %v385 = vmax.f32 %v353, 0.0
        %v386 = vmax.f32 %v354, 0.0
        %v387 = vmax.f32 %v355, 0.0
        %s388 = scalar_lea.vmem [#allocation2], 24
        %389 = vst.msk [vmem:[%s388 + $0x1] sm:$0xff] %vm278, %v356
        %390 = vst.msk [vmem:[%s388 + $0x9] sm:$0xff] %vm278, %v357
        %391 = vst.msk [vmem:[%s388 + $0x19] sm:$0xff] %vm278, %v358
        %392 = vst.msk [vmem:[%s388 + $0x21] sm:$0xff] %vm278, %v359
        %393 = vst.msk [vmem:[%s388 + $0x31] sm:$0xff] %vm278, %v360
        %394 = vst.msk [vmem:[%s388 + $0x39] sm:$0xff] %vm278, %v361
        %395 = vst.msk [vmem:[%s388 + $0x49] sm:$0xff] %vm278, %v362
        %396 = vst.msk [vmem:[%s388 + $0x51] sm:$0xff] %vm278, %v363
        %397 = vst.msk [vmem:[%s388 + $0x61] sm:$0xff] %vm278, %v364
        %398 = vst.msk [vmem:[%s388 + $0x69] sm:$0xff] %vm278, %v365
        %399 = vst.msk [vmem:[%s388 + $0x79] sm:$0xff] %vm278, %v366
        %400 = vst.msk [vmem:[%s388 + $0x81] sm:$0xff] %vm278, %v367
        %401 = vst.msk [vmem:[%s388 + $0x91] sm:$0xff] %vm278, %v368
        %402 = vst.msk [vmem:[%s388 + $0x99] sm:$0xff] %vm278, %v369
        %403 = vst.msk [vmem:[%s388 + $0xa9] sm:$0xff] %vm278, %v370
        %404 = vst.msk [vmem:[%s388 + $0xb1] sm:$0xff] %vm278, %v371
        %405 = vst.msk [vmem:[%s388 + $0xc1] sm:$0xff] %vm278, %v372
        %406 = vst.msk [vmem:[%s388 + $0xc9] sm:$0xff] %vm278, %v373
        %407 = vst.msk [vmem:[%s388 + $0xd9] sm:$0xff] %vm278, %v374
        %408 = vst.msk [vmem:[%s388 + $0xe1] sm:$0xff] %vm278, %v375
        %409 = vst.msk [vmem:[%s388 + $0xf1] sm:$0xff] %vm278, %v376
        %410 = vst.msk [vmem:[%s388 + $0xf9] sm:$0xff] %vm278, %v377
        %411 = vst.msk [vmem:[%s388 + $0x109] sm:$0xff] %vm278, %v378
        %412 = vst.msk [vmem:[%s388 + $0x111] sm:$0xff] %vm278, %v379
        %413 = vst.msk [vmem:[%s388 + $0x121] sm:$0xff] %vm278, %v380
        %414 = vst.msk [vmem:[%s388 + $0x129] sm:$0xff] %vm278, %v381
        %415 = vst.msk [vmem:[%s388 + $0x139] sm:$0xff] %vm278, %v382
        %416 = vst.msk [vmem:[%s388 + $0x141] sm:$0xff] %vm278, %v383
        %417 = vst.msk [vmem:[%s388 + $0x151] sm:$0xff] %vm278, %v384
        %418 = vst.msk [vmem:[%s388 + $0x159] sm:$0xff] %vm278, %v385
        %419 = vst.msk [vmem:[%s388 + $0x169] sm:$0xff] %vm278, %v386
        %420 = vst.msk [vmem:[%s388 + $0x171] sm:$0xff] %vm278, %v387
        %v421 = vld [vmem:[#allocation2] sm:$0xff]
        %v422 = vld [vmem:[#allocation2 + $0x8] sm:$0xff]
        %v423 = vld [vmem:[#allocation2 + $0x18] sm:$0xff]
        %v424 = vld [vmem:[#allocation2 + $0x20] sm:$0xff]
        %v425 = vld [vmem:[#allocation2 + $0x30] sm:$0xff]
        %v426 = vld [vmem:[#allocation2 + $0x38] sm:$0xff]
        %v427 = vld [vmem:[#allocation2 + $0x48] sm:$0xff]
        %v428 = vld [vmem:[#allocation2 + $0x50] sm:$0xff]
        %v429 = vld [vmem:[#allocation2 + $0x60] sm:$0xff]
        %v430 = vld [vmem:[#allocation2 + $0x68] sm:$0xff]
        %v431 = vld [vmem:[#allocation2 + $0x78] sm:$0xff]
        %v432 = vld [vmem:[#allocation2 + $0x80] sm:$0xff]
        %v433 = vld [vmem:[#allocation2 + $0x90] sm:$0xff]
        %v434 = vld [vmem:[#allocation2 + $0x98] sm:$0xff]
        %v435 = vld [vmem:[#allocation2 + $0xa8] sm:$0xff]
        %v436 = vld [vmem:[#allocation2 + $0xb0] sm:$0xff]
        %v437 = vld [vmem:[#allocation2 + $0xc0] sm:$0xff]
        %v438 = vld [vmem:[#allocation2 + $0xc8] sm:$0xff]
        %v439 = vld [vmem:[#allocation2 + $0xd8] sm:$0xff]
        %v440 = vld [vmem:[#allocation2 + $0xe0] sm:$0xff]
        %v441 = vld [vmem:[#allocation2 + $0xf0] sm:$0xff]
        %v442 = vld [vmem:[#allocation2 + $0xf8] sm:$0xff]
        %v443 = vld [vmem:[#allocation2 + $0x108] sm:$0xff]
        %v444 = vld [vmem:[#allocation2 + $0x110] sm:$0xff]
        %v445 = vld [vmem:[#allocation2 + $0x120] sm:$0xff]
        %v446 = vld [vmem:[#allocation2 + $0x128] sm:$0xff]
        %v447 = vld [vmem:[#allocation2 + $0x138] sm:$0xff]
        %v448 = vld [vmem:[#allocation2 + $0x140] sm:$0xff]
        %v449 = vld [vmem:[#allocation2 + $0x150] sm:$0xff]
        %v450 = vld [vmem:[#allocation2 + $0x158] sm:$0xff]
        %v451 = vld [vmem:[#allocation2 + $0x168] sm:$0xff]
        %v452 = vld [vmem:[#allocation2 + $0x170] sm:$0xff]
        %v453 = vpack.c.bf16 %v422, %v421
        %v454 = vpack.c.bf16 %v424, %v423
        %v455 = vpack.c.bf16 %v426, %v425
        %v456 = vpack.c.bf16 %v428, %v427
        %v457 = vpack.c.bf16 %v430, %v429
        %v458 = vpack.c.bf16 %v432, %v431
        %v459 = vpack.c.bf16 %v434, %v433
        %v460 = vpack.c.bf16 %v436, %v435
        %v461 = vpack.c.bf16 %v438, %v437
        %v462 = vpack.c.bf16 %v440, %v439
        %v463 = vpack.c.bf16 %v442, %v441
        %v464 = vpack.c.bf16 %v444, %v443
        %v465 = vpack.c.bf16 %v446, %v445
        %v466 = vpack.c.bf16 %v448, %v447
        %v467 = vpack.c.bf16 %v450, %v449
        %v468 = vpack.c.bf16 %v452, %v451
        %v469 = vld [vmem:[%s1] sm:$0x3]
        %v470 = vld [vmem:[#allocation2 + $0x1] sm:$0xff]
        %v471 = vld [vmem:[#allocation2 + $0x9] sm:$0xff]
        %v472 = vld [vmem:[#allocation2 + $0x19] sm:$0xff]
        %v473 = vld [vmem:[#allocation2 + $0x21] sm:$0xff]
        %v474 = vld [vmem:[#allocation2 + $0x31] sm:$0xff]
        %v475 = vld [vmem:[#allocation2 + $0x39] sm:$0xff]
        %v476 = vld [vmem:[#allocation2 + $0x49] sm:$0xff]
        %v477 = vld [vmem:[#allocation2 + $0x51] sm:$0xff]
        %v478 = vld [vmem:[#allocation2 + $0x61] sm:$0xff]
        %v479 = vld [vmem:[#allocation2 + $0x69] sm:$0xff]
        %v480 = vld [vmem:[#allocation2 + $0x79] sm:$0xff]
        %v481 = vld [vmem:[#allocation2 + $0x81] sm:$0xff]
        %v482 = vld [vmem:[#allocation2 + $0x91] sm:$0xff]
        %v483 = vld [vmem:[#allocation2 + $0x99] sm:$0xff]
        %v484 = vld [vmem:[#allocation2 + $0xa9] sm:$0xff]
        %v485 = vld [vmem:[#allocation2 + $0xb1] sm:$0xff]
        %v486 = vld [vmem:[#allocation2 + $0xc1] sm:$0xff]
        %v487 = vld [vmem:[#allocation2 + $0xc9] sm:$0xff]
        %v488 = vld [vmem:[#allocation2 + $0xd9] sm:$0xff]
        %v489 = vld [vmem:[#allocation2 + $0xe1] sm:$0xff]
        %v490 = vld [vmem:[#allocation2 + $0xf1] sm:$0xff]
        %v491 = vld [vmem:[#allocation2 + $0xf9] sm:$0xff]
        %v492 = vld [vmem:[#allocation2 + $0x109] sm:$0xff]
        %v493 = vld [vmem:[#allocation2 + $0x111] sm:$0xff]
        %v494 = vld [vmem:[#allocation2 + $0x121] sm:$0xff]
        %v495 = vld [vmem:[#allocation2 + $0x129] sm:$0xff]
        %v496 = vld [vmem:[#allocation2 + $0x139] sm:$0xff]
        %v497 = vld [vmem:[#allocation2 + $0x141] sm:$0xff]
        %v498 = vld [vmem:[#allocation2 + $0x151] sm:$0xff]
        %v499 = vld [vmem:[#allocation2 + $0x159] sm:$0xff]
        %v500 = vld [vmem:[#allocation2 + $0x169] sm:$0xff]
        %v501 = vld [vmem:[#allocation2 + $0x171] sm:$0xff]
        %v502 = vpack.c.bf16 %v471, %v470
        %v503 = vpack.c.bf16 %v473, %v472
        %v504 = vpack.c.bf16 %v475, %v474
        %v505 = vpack.c.bf16 %v477, %v476
        %v506 = vpack.c.bf16 %v479, %v478
        %v507 = vpack.c.bf16 %v481, %v480
        %v508 = vpack.c.bf16 %v483, %v482
        %v509 = vpack.c.bf16 %v485, %v484
        %v510 = vpack.c.bf16 %v487, %v486
        %v511 = vpack.c.bf16 %v489, %v488
        %v512 = vpack.c.bf16 %v491, %v490
        %v513 = vpack.c.bf16 %v493, %v492
        %v514 = vpack.c.bf16 %v495, %v494
        %v515 = vpack.c.bf16 %v497, %v496
        %v516 = vpack.c.bf16 %v499, %v498
        %v517 = vpack.c.bf16 %v501, %v500
        %s518 = scalar_lea.vmem %s1, 2
        %v519 = vld [vmem:[%s518] sm:$0x3]
        %v521 = vsel %vm278, %v502, 0
        %v524 = vsel %vm278, %v503, 0
        %v527 = vsel %vm278, %v504, 0
        %v530 = vsel %vm278, %v505, 0
        %v533 = vsel %vm278, %v506, 0
        %v536 = vsel %vm278, %v507, 0
        %v539 = vsel %vm278, %v508, 0
        %v542 = vsel %vm278, %v509, 0
        %v545 = vsel %vm278, %v510, 0
        %v548 = vsel %vm278, %v511, 0
        %v551 = vsel %vm278, %v512, 0
        %v554 = vsel %vm278, %v513, 0
        %v557 = vsel %vm278, %v514, 0
        %v560 = vsel %vm278, %v515, 0
        %v563 = vsel %vm278, %v516, 0
        %v566 = vsel %vm278, %v517, 0
        %vm568 = vcmask 1041408
        %v570 = vsel %vm568, %v519, 0
        %572 = vmatprep.subr.bf16.mxu0 0
        %573 = vmatpush1.bf16.msra.mxu0 0
        %574 = vmatprep.subr.bf16.mxu0 0
        %575 = vmatpush1.bf16.msra.mxu0 0
        %576 = vmatprep.subr.bf16.mxu0 0
        %577 = vmatpush1.bf16.msra.mxu0 0
        %578 = vmatprep.subr.bf16.mxu0 0
        %579 = vmatpush1.bf16.msra.mxu0 0
        %580 = vmatprep.subr.bf16.mxu0 0
        %581 = vmatpush1.bf16.msra.mxu0 0
        %582 = vmatprep.subr.bf16.mxu0 0
        %583 = vmatpush1.bf16.msra.mxu0 0
        %584 = vmatprep.subr.bf16.mxu0 0
        %585 = vmatpush1.bf16.msra.mxu0 0
        %586 = vmatprep.subr.bf16.mxu0 0
        %587 = vmatpush1.bf16.msra.mxu0 %v570
        %588 = vmatprep.subr.bf16.mxu0 0
        %589 = vmatpush2.bf16.msra.mxu0 0
        %590 = vmatprep.subr.bf16.mxu0 0
        %591 = vmatpush2.bf16.msra.mxu0 0
        %592 = vmatprep.subr.bf16.mxu0 0
        %593 = vmatpush2.bf16.msra.mxu0 0
        %594 = vmatprep.subr.bf16.mxu0 0
        %595 = vmatpush2.bf16.msra.mxu0 0
        %596 = vmatprep.subr.bf16.mxu0 0
        %597 = vmatpush2.bf16.msra.mxu0 0
        %598 = vmatprep.subr.bf16.mxu0 0
        %599 = vmatpush2.bf16.msra.mxu0 0
        %600 = vmatprep.subr.bf16.mxu0 0
        %601 = vmatpush2.bf16.msra.mxu0 0
        %602 = vmatprep.subr.bf16.mxu0 0
        %603 = vmatpush2.bf16.msra.mxu0 0
        %604 = vmatprep.mubr.bf16.mxu0 0
        %605 = vmatmul.mubr.bf16.gmra.mxu0 %v521
        %v606 = vpop.f32.mrf.mxu0
        %v607 = vadd.f32 0.0, %v606
        %v608 = vpop.f32.mrf.mxu0
        %v609 = vpop.f32.mrf.mxu0
        %v610 = vadd.f32 0.0, %v609
        %v611 = vpop.f32.mrf.mxu0
        %612 = vmatprep.mubr.bf16.mxu0 0
        %613 = vmatmul.mubr.bf16.gmra.mxu0 %v524
        %v614 = vpop.f32.mrf.mxu0
        %v615 = vadd.f32 0.0, %v614
        %v616 = vpop.f32.mrf.mxu0
        %v617 = vpop.f32.mrf.mxu0
        %v618 = vadd.f32 0.0, %v617
        %v619 = vpop.f32.mrf.mxu0
        %620 = vmatprep.mubr.bf16.mxu0 0
        %621 = vmatmul.mubr.bf16.gmra.mxu0 %v527
        %v622 = vpop.f32.mrf.mxu0
        %v623 = vadd.f32 0.0, %v622
        %v624 = vpop.f32.mrf.mxu0
        %v625 = vpop.f32.mrf.mxu0
        %v626 = vadd.f32 0.0, %v625
        %v627 = vpop.f32.mrf.mxu0
        %628 = vmatprep.mubr.bf16.mxu0 0
        %629 = vmatmul.mubr.bf16.gmra.mxu0 %v530
        %v630 = vpop.f32.mrf.mxu0
        %v631 = vadd.f32 0.0, %v630
        %v632 = vpop.f32.mrf.mxu0
        %v633 = vpop.f32.mrf.mxu0
        %v634 = vadd.f32 0.0, %v633
        %v635 = vpop.f32.mrf.mxu0
        %636 = vmatprep.mubr.bf16.mxu0 0
        %637 = vmatmul.mubr.bf16.gmra.mxu0 %v533
        %v638 = vpop.f32.mrf.mxu0
        %v639 = vadd.f32 0.0, %v638
        %v640 = vpop.f32.mrf.mxu0
        %v641 = vpop.f32.mrf.mxu0
        %v642 = vadd.f32 0.0, %v641
        %v643 = vpop.f32.mrf.mxu0
        %644 = vmatprep.mubr.bf16.mxu0 0
        %645 = vmatmul.mubr.bf16.gmra.mxu0 %v536
        %v646 = vpop.f32.mrf.mxu0
        %v647 = vadd.f32 0.0, %v646
        %v648 = vpop.f32.mrf.mxu0
        %v649 = vpop.f32.mrf.mxu0
        %v650 = vadd.f32 0.0, %v649
        %v651 = vpop.f32.mrf.mxu0
        %652 = vmatprep.mubr.bf16.mxu0 0
        %653 = vmatmul.mubr.bf16.gmra.mxu0 %v539
        %v654 = vpop.f32.mrf.mxu0
        %v655 = vadd.f32 0.0, %v654
        %v656 = vpop.f32.mrf.mxu0
        %v657 = vpop.f32.mrf.mxu0
        %v658 = vadd.f32 0.0, %v657
        %v659 = vpop.f32.mrf.mxu0
        %660 = vmatprep.mubr.bf16.mxu0 0
        %661 = vmatmul.mubr.bf16.gmra.mxu0 %v542
        %v662 = vpop.f32.mrf.mxu0
        %v663 = vadd.f32 0.0, %v662
        %v664 = vpop.f32.mrf.mxu0
        %v665 = vpop.f32.mrf.mxu0
        %v666 = vadd.f32 0.0, %v665
        %v667 = vpop.f32.mrf.mxu0
        %668 = vmatprep.mubr.bf16.mxu0 0
        %669 = vmatmul.mubr.bf16.gmra.mxu0 %v545
        %v670 = vpop.f32.mrf.mxu0
        %v671 = vadd.f32 0.0, %v670
        %v672 = vpop.f32.mrf.mxu0
        %v673 = vpop.f32.mrf.mxu0
        %v674 = vadd.f32 0.0, %v673
        %v675 = vpop.f32.mrf.mxu0
        %676 = vmatprep.mubr.bf16.mxu0 0
        %677 = vmatmul.mubr.bf16.gmra.mxu0 %v548
        %v678 = vpop.f32.mrf.mxu0
        %v679 = vadd.f32 0.0, %v678
        %v680 = vpop.f32.mrf.mxu0
        %v681 = vpop.f32.mrf.mxu0
        %v682 = vadd.f32 0.0, %v681
        %v683 = vpop.f32.mrf.mxu0
        %684 = vmatprep.mubr.bf16.mxu0 0
        %685 = vmatmul.mubr.bf16.gmra.mxu0 %v551
        %v686 = vpop.f32.mrf.mxu0
        %v687 = vadd.f32 0.0, %v686
        %v688 = vpop.f32.mrf.mxu0
        %v689 = vpop.f32.mrf.mxu0
        %v690 = vadd.f32 0.0, %v689
        %v691 = vpop.f32.mrf.mxu0
        %692 = vmatprep.mubr.bf16.mxu0 0
        %693 = vmatmul.mubr.bf16.gmra.mxu0 %v554
        %v694 = vpop.f32.mrf.mxu0
        %v695 = vadd.f32 0.0, %v694
        %v696 = vpop.f32.mrf.mxu0
        %v697 = vpop.f32.mrf.mxu0
        %v698 = vadd.f32 0.0, %v697
        %v699 = vpop.f32.mrf.mxu0
        %700 = vmatprep.mubr.bf16.mxu0 0
        %701 = vmatmul.mubr.bf16.gmra.mxu0 %v557
        %v702 = vpop.f32.mrf.mxu0
        %v703 = vadd.f32 0.0, %v702
        %v704 = vpop.f32.mrf.mxu0
        %v705 = vpop.f32.mrf.mxu0
        %v706 = vadd.f32 0.0, %v705
        %v707 = vpop.f32.mrf.mxu0
        %708 = vmatprep.mubr.bf16.mxu0 0
        %709 = vmatmul.mubr.bf16.gmra.mxu0 %v560
        %v710 = vpop.f32.mrf.mxu0
        %v711 = vadd.f32 0.0, %v710
        %v712 = vpop.f32.mrf.mxu0
        %v713 = vpop.f32.mrf.mxu0
        %v714 = vadd.f32 0.0, %v713
        %v715 = vpop.f32.mrf.mxu0
        %716 = vmatprep.mubr.bf16.mxu0 0
        %717 = vmatmul.mubr.bf16.gmra.mxu0 %v563
        %v718 = vpop.f32.mrf.mxu0
        %v719 = vadd.f32 0.0, %v718
        %v720 = vpop.f32.mrf.mxu0
        %v721 = vpop.f32.mrf.mxu0
        %v722 = vadd.f32 0.0, %v721
        %v723 = vpop.f32.mrf.mxu0
        %724 = vmatprep.mubr.bf16.mxu0 0
        %725 = vmatmul.mubr.bf16.gmra.mxu0 %v566
        %v726 = vpop.f32.mrf.mxu0
        %v727 = vadd.f32 0.0, %v726
        %v728 = vpop.f32.mrf.mxu0
        %v729 = vpop.f32.mrf.mxu0
        %v730 = vadd.f32 0.0, %v729
        %v731 = vpop.f32.mrf.mxu0
        %732 = vdwg.mxu0
        %v734 = vsel %vm278, %v453, 0
        %v737 = vsel %vm278, %v454, 0
        %v740 = vsel %vm278, %v455, 0
        %v743 = vsel %vm278, %v456, 0
        %v746 = vsel %vm278, %v457, 0
        %v749 = vsel %vm278, %v458, 0
        %v752 = vsel %vm278, %v459, 0
        %v755 = vsel %vm278, %v460, 0
        %v758 = vsel %vm278, %v461, 0
        %v761 = vsel %vm278, %v462, 0
        %v764 = vsel %vm278, %v463, 0
        %v767 = vsel %vm278, %v464, 0
        %v770 = vsel %vm278, %v465, 0
        %v773 = vsel %vm278, %v466, 0
        %v776 = vsel %vm278, %v467, 0
        %v779 = vsel %vm278, %v468, 0
        %v782 = vsel %vm568, %v469, 0
        %784 = vmatprep.subr.bf16.mxu0 0
        %785 = vmatpush1.bf16.msra.mxu0 0
        %786 = vmatprep.subr.bf16.mxu0 0
        %787 = vmatpush1.bf16.msra.mxu0 0
        %788 = vmatprep.subr.bf16.mxu0 0
        %789 = vmatpush1.bf16.msra.mxu0 0
        %790 = vmatprep.subr.bf16.mxu0 0
        %791 = vmatpush1.bf16.msra.mxu0 0
        %792 = vmatprep.subr.bf16.mxu0 0
        %793 = vmatpush1.bf16.msra.mxu0 0
        %794 = vmatprep.subr.bf16.mxu0 0
        %795 = vmatpush1.bf16.msra.mxu0 0
        %796 = vmatprep.subr.bf16.mxu0 0
        %797 = vmatpush1.bf16.msra.mxu0 0
        %798 = vmatprep.subr.bf16.mxu0 0
        %799 = vmatpush1.bf16.msra.mxu0 %v782
        %800 = vmatprep.subr.bf16.mxu0 0
        %801 = vmatpush2.bf16.msra.mxu0 0
        %802 = vmatprep.subr.bf16.mxu0 0
        %803 = vmatpush2.bf16.msra.mxu0 0
        %804 = vmatprep.subr.bf16.mxu0 0
        %805 = vmatpush2.bf16.msra.mxu0 0
        %806 = vmatprep.subr.bf16.mxu0 0
        %807 = vmatpush2.bf16.msra.mxu0 0
        %808 = vmatprep.subr.bf16.mxu0 0
        %809 = vmatpush2.bf16.msra.mxu0 0
        %810 = vmatprep.subr.bf16.mxu0 0
        %811 = vmatpush2.bf16.msra.mxu0 0
        %812 = vmatprep.subr.bf16.mxu0 0
        %813 = vmatpush2.bf16.msra.mxu0 0
        %814 = vmatprep.subr.bf16.mxu0 0
        %815 = vmatpush2.bf16.msra.mxu0 0
        %816 = vmatprep.mubr.bf16.mxu0 0
        %817 = vmatmul.mubr.bf16.gmra.mxu0 %v734
        %v818 = vpop.f32.mrf.mxu0
        %v819 = vadd.f32 %v607, %v818
        %v820 = vpop.f32.mrf.mxu0
        %v821 = vpop.f32.mrf.mxu0
        %v822 = vadd.f32 %v610, %v821
        %v823 = vpop.f32.mrf.mxu0
        %824 = vmatprep.mubr.bf16.mxu0 0
        %825 = vmatmul.mubr.bf16.gmra.mxu0 %v737
        %v826 = vpop.f32.mrf.mxu0
        %v827 = vadd.f32 %v615, %v826
        %v828 = vpop.f32.mrf.mxu0
        %v829 = vpop.f32.mrf.mxu0
        %v830 = vadd.f32 %v618, %v829
        %v831 = vpop.f32.mrf.mxu0
        %832 = vmatprep.mubr.bf16.mxu0 0
        %833 = vmatmul.mubr.bf16.gmra.mxu0 %v740
        %v834 = vpop.f32.mrf.mxu0
        %v835 = vadd.f32 %v623, %v834
        %v836 = vpop.f32.mrf.mxu0
        %v837 = vpop.f32.mrf.mxu0
        %v838 = vadd.f32 %v626, %v837
        %v839 = vpop.f32.mrf.mxu0
        %840 = vmatprep.mubr.bf16.mxu0 0
        %841 = vmatmul.mubr.bf16.gmra.mxu0 %v743
        %v842 = vpop.f32.mrf.mxu0
        %v843 = vadd.f32 %v631, %v842
        %v844 = vpop.f32.mrf.mxu0
        %v845 = vpop.f32.mrf.mxu0
        %v846 = vadd.f32 %v634, %v845
        %v847 = vpop.f32.mrf.mxu0
        %848 = vmatprep.mubr.bf16.mxu0 0
        %849 = vmatmul.mubr.bf16.gmra.mxu0 %v746
        %v850 = vpop.f32.mrf.mxu0
        %v851 = vadd.f32 %v639, %v850
        %v852 = vpop.f32.mrf.mxu0
        %v853 = vpop.f32.mrf.mxu0
        %v854 = vadd.f32 %v642, %v853
        %v855 = vpop.f32.mrf.mxu0
        %856 = vmatprep.mubr.bf16.mxu0 0
        %857 = vmatmul.mubr.bf16.gmra.mxu0 %v749
        %v858 = vpop.f32.mrf.mxu0
        %v859 = vadd.f32 %v647, %v858
        %v860 = vpop.f32.mrf.mxu0
        %v861 = vpop.f32.mrf.mxu0
        %v862 = vadd.f32 %v650, %v861
        %v863 = vpop.f32.mrf.mxu0
        %864 = vmatprep.mubr.bf16.mxu0 0
        %865 = vmatmul.mubr.bf16.gmra.mxu0 %v752
        %v866 = vpop.f32.mrf.mxu0
        %v867 = vadd.f32 %v655, %v866
        %v868 = vpop.f32.mrf.mxu0
        %v869 = vpop.f32.mrf.mxu0
        %v870 = vadd.f32 %v658, %v869
        %v871 = vpop.f32.mrf.mxu0
        %872 = vmatprep.mubr.bf16.mxu0 0
        %873 = vmatmul.mubr.bf16.gmra.mxu0 %v755
        %v874 = vpop.f32.mrf.mxu0
        %v875 = vadd.f32 %v663, %v874
        %v876 = vpop.f32.mrf.mxu0
        %v877 = vpop.f32.mrf.mxu0
        %v878 = vadd.f32 %v666, %v877
        %v879 = vpop.f32.mrf.mxu0
        %880 = vmatprep.mubr.bf16.mxu0 0
        %881 = vmatmul.mubr.bf16.gmra.mxu0 %v758
        %v882 = vpop.f32.mrf.mxu0
        %v883 = vadd.f32 %v671, %v882
        %v884 = vpop.f32.mrf.mxu0
        %v885 = vpop.f32.mrf.mxu0
        %v886 = vadd.f32 %v674, %v885
        %v887 = vpop.f32.mrf.mxu0
        %888 = vmatprep.mubr.bf16.mxu0 0
        %889 = vmatmul.mubr.bf16.gmra.mxu0 %v761
        %v890 = vpop.f32.mrf.mxu0
        %v891 = vadd.f32 %v679, %v890
        %v892 = vpop.f32.mrf.mxu0
        %v893 = vpop.f32.mrf.mxu0
        %v894 = vadd.f32 %v682, %v893
        %v895 = vpop.f32.mrf.mxu0
        %896 = vmatprep.mubr.bf16.mxu0 0
        %897 = vmatmul.mubr.bf16.gmra.mxu0 %v764
        %v898 = vpop.f32.mrf.mxu0
        %v899 = vadd.f32 %v687, %v898
        %v900 = vpop.f32.mrf.mxu0
        %v901 = vpop.f32.mrf.mxu0
        %v902 = vadd.f32 %v690, %v901
        %v903 = vpop.f32.mrf.mxu0
        %904 = vmatprep.mubr.bf16.mxu0 0
        %905 = vmatmul.mubr.bf16.gmra.mxu0 %v767
        %v906 = vpop.f32.mrf.mxu0
        %v907 = vadd.f32 %v695, %v906
        %v908 = vpop.f32.mrf.mxu0
        %v909 = vpop.f32.mrf.mxu0
        %v910 = vadd.f32 %v698, %v909
        %v911 = vpop.f32.mrf.mxu0
        %912 = vmatprep.mubr.bf16.mxu0 0
        %913 = vmatmul.mubr.bf16.gmra.mxu0 %v770
        %v914 = vpop.f32.mrf.mxu0
        %v915 = vadd.f32 %v703, %v914
        %v916 = vpop.f32.mrf.mxu0
        %v917 = vpop.f32.mrf.mxu0
        %v918 = vadd.f32 %v706, %v917
        %v919 = vpop.f32.mrf.mxu0
        %920 = vmatprep.mubr.bf16.mxu0 0
        %921 = vmatmul.mubr.bf16.gmra.mxu0 %v773
        %v922 = vpop.f32.mrf.mxu0
        %v923 = vadd.f32 %v711, %v922
        %v924 = vpop.f32.mrf.mxu0
        %v925 = vpop.f32.mrf.mxu0
        %v926 = vadd.f32 %v714, %v925
        %v927 = vpop.f32.mrf.mxu0
        %928 = vmatprep.mubr.bf16.mxu0 0
        %929 = vmatmul.mubr.bf16.gmra.mxu0 %v776
        %v930 = vpop.f32.mrf.mxu0
        %v931 = vadd.f32 %v719, %v930
        %v932 = vpop.f32.mrf.mxu0
        %v933 = vpop.f32.mrf.mxu0
        %v934 = vadd.f32 %v722, %v933
        %v935 = vpop.f32.mrf.mxu0
        %936 = vmatprep.mubr.bf16.mxu0 0
        %937 = vmatmul.mubr.bf16.gmra.mxu0 %v779
        %v938 = vpop.f32.mrf.mxu0
        %v939 = vadd.f32 %v727, %v938
        %v940 = vpop.f32.mrf.mxu0
        %v941 = vpop.f32.mrf.mxu0
        %v942 = vadd.f32 %v730, %v941
        %v943 = vpop.f32.mrf.mxu0
        %944 = vdwg.mxu0
        %v945 = vld [vmem:[#allocation2 + $0x2] sm:$0xff]
        %v946 = vld [vmem:[#allocation2 + $0xa] sm:$0xff]
        %v947 = vld [vmem:[#allocation2 + $0x1a] sm:$0xff]
        %v948 = vld [vmem:[#allocation2 + $0x22] sm:$0xff]
        %v949 = vld [vmem:[#allocation2 + $0x32] sm:$0xff]
        %v950 = vld [vmem:[#allocation2 + $0x3a] sm:$0xff]
        %v951 = vld [vmem:[#allocation2 + $0x4a] sm:$0xff]
        %v952 = vld [vmem:[#allocation2 + $0x52] sm:$0xff]
        %v953 = vld [vmem:[#allocation2 + $0x62] sm:$0xff]
        %v954 = vld [vmem:[#allocation2 + $0x6a] sm:$0xff]
        %v955 = vld [vmem:[#allocation2 + $0x7a] sm:$0xff]
        %v956 = vld [vmem:[#allocation2 + $0x82] sm:$0xff]
        %v957 = vld [vmem:[#allocation2 + $0x92] sm:$0xff]
        %v958 = vld [vmem:[#allocation2 + $0x9a] sm:$0xff]
        %v959 = vld [vmem:[#allocation2 + $0xaa] sm:$0xff]
        %v960 = vld [vmem:[#allocation2 + $0xb2] sm:$0xff]
        %v961 = vld [vmem:[#allocation2 + $0xc2] sm:$0xff]
        %v962 = vld [vmem:[#allocation2 + $0xca] sm:$0xff]
        %v963 = vld [vmem:[#allocation2 + $0xda] sm:$0xff]
        %v964 = vld [vmem:[#allocation2 + $0xe2] sm:$0xff]
        %v965 = vld [vmem:[#allocation2 + $0xf2] sm:$0xff]
        %v966 = vld [vmem:[#allocation2 + $0xfa] sm:$0xff]
        %v967 = vld [vmem:[#allocation2 + $0x10a] sm:$0xff]
        %v968 = vld [vmem:[#allocation2 + $0x112] sm:$0xff]
        %v969 = vld [vmem:[#allocation2 + $0x122] sm:$0xff]
        %v970 = vld [vmem:[#allocation2 + $0x12a] sm:$0xff]
        %v971 = vld [vmem:[#allocation2 + $0x13a] sm:$0xff]
        %v972 = vld [vmem:[#allocation2 + $0x142] sm:$0xff]
        %v973 = vld [vmem:[#allocation2 + $0x152] sm:$0xff]
        %v974 = vld [vmem:[#allocation2 + $0x15a] sm:$0xff]
        %v975 = vld [vmem:[#allocation2 + $0x16a] sm:$0xff]
        %v976 = vld [vmem:[#allocation2 + $0x172] sm:$0xff]
        %v977 = vpack.c.bf16 %v946, %v945
        %v978 = vpack.c.bf16 %v948, %v947
        %v979 = vpack.c.bf16 %v950, %v949
        %v980 = vpack.c.bf16 %v952, %v951
        %v981 = vpack.c.bf16 %v954, %v953
        %v982 = vpack.c.bf16 %v956, %v955
        %v983 = vpack.c.bf16 %v958, %v957
        %v984 = vpack.c.bf16 %v960, %v959
        %v985 = vpack.c.bf16 %v962, %v961
        %v986 = vpack.c.bf16 %v964, %v963
        %v987 = vpack.c.bf16 %v966, %v965
        %v988 = vpack.c.bf16 %v968, %v967
        %v989 = vpack.c.bf16 %v970, %v969
        %v990 = vpack.c.bf16 %v972, %v971
        %v991 = vpack.c.bf16 %v974, %v973
        %v992 = vpack.c.bf16 %v976, %v975
        %s993 = scalar_lea.vmem %s1, 4
        %v994 = vld [vmem:[%s993] sm:$0x3]
        %v996 = vsel %vm278, %v977, 0
        %v999 = vsel %vm278, %v978, 0
        %v1002 = vsel %vm278, %v979, 0
        %v1005 = vsel %vm278, %v980, 0
        %v1008 = vsel %vm278, %v981, 0
        %v1011 = vsel %vm278, %v982, 0
        %v1014 = vsel %vm278, %v983, 0
        %v1017 = vsel %vm278, %v984, 0
        %v1020 = vsel %vm278, %v985, 0
        %v1023 = vsel %vm278, %v986, 0
        %v1026 = vsel %vm278, %v987, 0
        %v1029 = vsel %vm278, %v988, 0
        %v1032 = vsel %vm278, %v989, 0
        %v1035 = vsel %vm278, %v990, 0
        %v1038 = vsel %vm278, %v991, 0
        %v1041 = vsel %vm278, %v992, 0
        %v1044 = vsel %vm568, %v994, 0
        %1046 = vmatprep.subr.bf16.mxu0 0
        %1047 = vmatpush1.bf16.msra.mxu0 0
        %1048 = vmatprep.subr.bf16.mxu0 0
        %1049 = vmatpush1.bf16.msra.mxu0 0
        %1050 = vmatprep.subr.bf16.mxu0 0
        %1051 = vmatpush1.bf16.msra.mxu0 0
        %1052 = vmatprep.subr.bf16.mxu0 0
        %1053 = vmatpush1.bf16.msra.mxu0 0
        %1054 = vmatprep.subr.bf16.mxu0 0
        %1055 = vmatpush1.bf16.msra.mxu0 0
        %1056 = vmatprep.subr.bf16.mxu0 0
        %1057 = vmatpush1.bf16.msra.mxu0 0
        %1058 = vmatprep.subr.bf16.mxu0 0
        %1059 = vmatpush1.bf16.msra.mxu0 0
        %1060 = vmatprep.subr.bf16.mxu0 0
        %1061 = vmatpush1.bf16.msra.mxu0 %v1044
        %1062 = vmatprep.subr.bf16.mxu0 0
        %1063 = vmatpush2.bf16.msra.mxu0 0
        %1064 = vmatprep.subr.bf16.mxu0 0
        %1065 = vmatpush2.bf16.msra.mxu0 0
        %1066 = vmatprep.subr.bf16.mxu0 0
        %1067 = vmatpush2.bf16.msra.mxu0 0
        %1068 = vmatprep.subr.bf16.mxu0 0
        %1069 = vmatpush2.bf16.msra.mxu0 0
        %1070 = vmatprep.subr.bf16.mxu0 0
        %1071 = vmatpush2.bf16.msra.mxu0 0
        %1072 = vmatprep.subr.bf16.mxu0 0
        %1073 = vmatpush2.bf16.msra.mxu0 0
        %1074 = vmatprep.subr.bf16.mxu0 0
        %1075 = vmatpush2.bf16.msra.mxu0 0
        %1076 = vmatprep.subr.bf16.mxu0 0
        %1077 = vmatpush2.bf16.msra.mxu0 0
        %1078 = vmatprep.mubr.bf16.mxu0 0
        %1079 = vmatmul.mubr.bf16.gmra.mxu0 %v996
        %v1080 = vpop.f32.mrf.mxu0
        %v1081 = vadd.f32 0.0, %v1080
        %v1082 = vpop.f32.mrf.mxu0
        %v1083 = vpop.f32.mrf.mxu0
        %v1084 = vadd.f32 0.0, %v1083
        %v1085 = vpop.f32.mrf.mxu0
        %1086 = vmatprep.mubr.bf16.mxu0 0
        %1087 = vmatmul.mubr.bf16.gmra.mxu0 %v999
        %v1088 = vpop.f32.mrf.mxu0
        %v1089 = vadd.f32 0.0, %v1088
        %v1090 = vpop.f32.mrf.mxu0
        %v1091 = vpop.f32.mrf.mxu0
        %v1092 = vadd.f32 0.0, %v1091
        %v1093 = vpop.f32.mrf.mxu0
        %1094 = vmatprep.mubr.bf16.mxu0 0
        %1095 = vmatmul.mubr.bf16.gmra.mxu0 %v1002
        %v1096 = vpop.f32.mrf.mxu0
        %v1097 = vadd.f32 0.0, %v1096
        %v1098 = vpop.f32.mrf.mxu0
        %v1099 = vpop.f32.mrf.mxu0
        %v1100 = vadd.f32 0.0, %v1099
        %v1101 = vpop.f32.mrf.mxu0
        %1102 = vmatprep.mubr.bf16.mxu0 0
        %1103 = vmatmul.mubr.bf16.gmra.mxu0 %v1005
        %v1104 = vpop.f32.mrf.mxu0
        %v1105 = vadd.f32 0.0, %v1104
        %v1106 = vpop.f32.mrf.mxu0
        %v1107 = vpop.f32.mrf.mxu0
        %v1108 = vadd.f32 0.0, %v1107
        %v1109 = vpop.f32.mrf.mxu0
        %1110 = vmatprep.mubr.bf16.mxu0 0
        %1111 = vmatmul.mubr.bf16.gmra.mxu0 %v1008
        %v1112 = vpop.f32.mrf.mxu0
        %v1113 = vadd.f32 0.0, %v1112
        %v1114 = vpop.f32.mrf.mxu0
        %v1115 = vpop.f32.mrf.mxu0
        %v1116 = vadd.f32 0.0, %v1115
        %v1117 = vpop.f32.mrf.mxu0
        %1118 = vmatprep.mubr.bf16.mxu0 0
        %1119 = vmatmul.mubr.bf16.gmra.mxu0 %v1011
        %v1120 = vpop.f32.mrf.mxu0
        %v1121 = vadd.f32 0.0, %v1120
        %v1122 = vpop.f32.mrf.mxu0
        %v1123 = vpop.f32.mrf.mxu0
        %v1124 = vadd.f32 0.0, %v1123
        %v1125 = vpop.f32.mrf.mxu0
        %1126 = vmatprep.mubr.bf16.mxu0 0
        %1127 = vmatmul.mubr.bf16.gmra.mxu0 %v1014
        %v1128 = vpop.f32.mrf.mxu0
        %v1129 = vadd.f32 0.0, %v1128
        %v1130 = vpop.f32.mrf.mxu0
        %v1131 = vpop.f32.mrf.mxu0
        %v1132 = vadd.f32 0.0, %v1131
        %v1133 = vpop.f32.mrf.mxu0
        %1134 = vmatprep.mubr.bf16.mxu0 0
        %1135 = vmatmul.mubr.bf16.gmra.mxu0 %v1017
        %v1136 = vpop.f32.mrf.mxu0
        %v1137 = vadd.f32 0.0, %v1136
        %v1138 = vpop.f32.mrf.mxu0
        %v1139 = vpop.f32.mrf.mxu0
        %v1140 = vadd.f32 0.0, %v1139
        %v1141 = vpop.f32.mrf.mxu0
        %1142 = vmatprep.mubr.bf16.mxu0 0
        %1143 = vmatmul.mubr.bf16.gmra.mxu0 %v1020
        %v1144 = vpop.f32.mrf.mxu0
        %v1145 = vadd.f32 0.0, %v1144
        %v1146 = vpop.f32.mrf.mxu0
        %v1147 = vpop.f32.mrf.mxu0
        %v1148 = vadd.f32 0.0, %v1147
        %v1149 = vpop.f32.mrf.mxu0
        %1150 = vmatprep.mubr.bf16.mxu0 0
        %1151 = vmatmul.mubr.bf16.gmra.mxu0 %v1023
        %v1152 = vpop.f32.mrf.mxu0
        %v1153 = vadd.f32 0.0, %v1152
        %v1154 = vpop.f32.mrf.mxu0
        %v1155 = vpop.f32.mrf.mxu0
        %v1156 = vadd.f32 0.0, %v1155
        %v1157 = vpop.f32.mrf.mxu0
        %1158 = vmatprep.mubr.bf16.mxu0 0
        %1159 = vmatmul.mubr.bf16.gmra.mxu0 %v1026
        %v1160 = vpop.f32.mrf.mxu0
        %v1161 = vadd.f32 0.0, %v1160
        %v1162 = vpop.f32.mrf.mxu0
        %v1163 = vpop.f32.mrf.mxu0
        %v1164 = vadd.f32 0.0, %v1163
        %v1165 = vpop.f32.mrf.mxu0
        %1166 = vmatprep.mubr.bf16.mxu0 0
        %1167 = vmatmul.mubr.bf16.gmra.mxu0 %v1029
        %v1168 = vpop.f32.mrf.mxu0
        %v1169 = vadd.f32 0.0, %v1168
        %v1170 = vpop.f32.mrf.mxu0
        %v1171 = vpop.f32.mrf.mxu0
        %v1172 = vadd.f32 0.0, %v1171
        %v1173 = vpop.f32.mrf.mxu0
        %1174 = vmatprep.mubr.bf16.mxu0 0
        %1175 = vmatmul.mubr.bf16.gmra.mxu0 %v1032
        %v1176 = vpop.f32.mrf.mxu0
        %v1177 = vadd.f32 0.0, %v1176
        %v1178 = vpop.f32.mrf.mxu0
        %v1179 = vpop.f32.mrf.mxu0
        %v1180 = vadd.f32 0.0, %v1179
        %v1181 = vpop.f32.mrf.mxu0
        %1182 = vmatprep.mubr.bf16.mxu0 0
        %1183 = vmatmul.mubr.bf16.gmra.mxu0 %v1035
        %v1184 = vpop.f32.mrf.mxu0
        %v1185 = vadd.f32 0.0, %v1184
        %v1186 = vpop.f32.mrf.mxu0
        %v1187 = vpop.f32.mrf.mxu0
        %v1188 = vadd.f32 0.0, %v1187
        %v1189 = vpop.f32.mrf.mxu0
        %1190 = vmatprep.mubr.bf16.mxu0 0
        %1191 = vmatmul.mubr.bf16.gmra.mxu0 %v1038
        %v1192 = vpop.f32.mrf.mxu0
        %v1193 = vadd.f32 0.0, %v1192
        %v1194 = vpop.f32.mrf.mxu0
        %v1195 = vpop.f32.mrf.mxu0
        %v1196 = vadd.f32 0.0, %v1195
        %v1197 = vpop.f32.mrf.mxu0
        %1198 = vmatprep.mubr.bf16.mxu0 0
        %1199 = vmatmul.mubr.bf16.gmra.mxu0 %v1041
        %v1200 = vpop.f32.mrf.mxu0
        %v1201 = vadd.f32 0.0, %v1200
        %v1202 = vpop.f32.mrf.mxu0
        %v1203 = vpop.f32.mrf.mxu0
        %v1204 = vadd.f32 0.0, %v1203
        %v1205 = vpop.f32.mrf.mxu0
        %1206 = vdwg.mxu0
        %v1207 = vadd.f32 %v819, %v1081
        %v1208 = vadd.f32 %v822, %v1084
        %v1209 = vadd.f32 %v827, %v1089
        %v1210 = vadd.f32 %v830, %v1092
        %v1211 = vadd.f32 %v835, %v1097
        %v1212 = vadd.f32 %v838, %v1100
        %v1213 = vadd.f32 %v843, %v1105
        %v1214 = vadd.f32 %v846, %v1108
        %v1215 = vadd.f32 %v851, %v1113
        %v1216 = vadd.f32 %v854, %v1116
        %v1217 = vadd.f32 %v859, %v1121
        %v1218 = vadd.f32 %v862, %v1124
        %v1219 = vadd.f32 %v867, %v1129
        %v1220 = vadd.f32 %v870, %v1132
        %v1221 = vadd.f32 %v875, %v1137
        %v1222 = vadd.f32 %v878, %v1140
        %v1223 = vadd.f32 %v883, %v1145
        %v1224 = vadd.f32 %v886, %v1148
        %v1225 = vadd.f32 %v891, %v1153
        %v1226 = vadd.f32 %v894, %v1156
        %v1227 = vadd.f32 %v899, %v1161
        %v1228 = vadd.f32 %v902, %v1164
        %v1229 = vadd.f32 %v907, %v1169
        %v1230 = vadd.f32 %v910, %v1172
        %v1231 = vadd.f32 %v915, %v1177
        %v1232 = vadd.f32 %v918, %v1180
        %v1233 = vadd.f32 %v923, %v1185
        %v1234 = vadd.f32 %v926, %v1188
        %v1235 = vadd.f32 %v931, %v1193
        %v1236 = vadd.f32 %v934, %v1196
        %v1237 = vadd.f32 %v939, %v1201
        %v1238 = vadd.f32 %v942, %v1204
        %v1239 = vld [vmem:[%s388] sm:$0xff]
        %v1240 = vld [vmem:[%s388 + $0x8] sm:$0xff]
        %v1241 = vld [vmem:[%s388 + $0x18] sm:$0xff]
        %v1242 = vld [vmem:[%s388 + $0x20] sm:$0xff]
        %v1243 = vld [vmem:[%s388 + $0x30] sm:$0xff]
        %v1244 = vld [vmem:[%s388 + $0x38] sm:$0xff]
        %v1245 = vld [vmem:[%s388 + $0x48] sm:$0xff]
        %v1246 = vld [vmem:[%s388 + $0x50] sm:$0xff]
        %v1247 = vld [vmem:[%s388 + $0x60] sm:$0xff]
        %v1248 = vld [vmem:[%s388 + $0x68] sm:$0xff]
        %v1249 = vld [vmem:[%s388 + $0x78] sm:$0xff]
        %v1250 = vld [vmem:[%s388 + $0x80] sm:$0xff]
        %v1251 = vld [vmem:[%s388 + $0x90] sm:$0xff]
        %v1252 = vld [vmem:[%s388 + $0x98] sm:$0xff]
        %v1253 = vld [vmem:[%s388 + $0xa8] sm:$0xff]
        %v1254 = vld [vmem:[%s388 + $0xb0] sm:$0xff]
        %v1255 = vld [vmem:[%s388 + $0xc0] sm:$0xff]
        %v1256 = vld [vmem:[%s388 + $0xc8] sm:$0xff]
        %v1257 = vld [vmem:[%s388 + $0xd8] sm:$0xff]
        %v1258 = vld [vmem:[%s388 + $0xe0] sm:$0xff]
        %v1259 = vld [vmem:[%s388 + $0xf0] sm:$0xff]
        %v1260 = vld [vmem:[%s388 + $0xf8] sm:$0xff]
        %v1261 = vld [vmem:[%s388 + $0x108] sm:$0xff]
        %v1262 = vld [vmem:[%s388 + $0x110] sm:$0xff]
        %v1263 = vld [vmem:[%s388 + $0x120] sm:$0xff]
        %v1264 = vld [vmem:[%s388 + $0x128] sm:$0xff]
        %v1265 = vld [vmem:[%s388 + $0x138] sm:$0xff]
        %v1266 = vld [vmem:[%s388 + $0x140] sm:$0xff]
        %v1267 = vld [vmem:[%s388 + $0x150] sm:$0xff]
        %v1268 = vld [vmem:[%s388 + $0x158] sm:$0xff]
        %v1269 = vld [vmem:[%s388 + $0x168] sm:$0xff]
        %v1270 = vld [vmem:[%s388 + $0x170] sm:$0xff]
        %v1271 = vpack.c.bf16 %v1240, %v1239
        %v1272 = vpack.c.bf16 %v1242, %v1241
        %v1273 = vpack.c.bf16 %v1244, %v1243
        %v1274 = vpack.c.bf16 %v1246, %v1245
        %v1275 = vpack.c.bf16 %v1248, %v1247
        %v1276 = vpack.c.bf16 %v1250, %v1249
        %v1277 = vpack.c.bf16 %v1252, %v1251
        %v1278 = vpack.c.bf16 %v1254, %v1253
        %v1279 = vpack.c.bf16 %v1256, %v1255
        %v1280 = vpack.c.bf16 %v1258, %v1257
        %v1281 = vpack.c.bf16 %v1260, %v1259
        %v1282 = vpack.c.bf16 %v1262, %v1261
        %v1283 = vpack.c.bf16 %v1264, %v1263
        %v1284 = vpack.c.bf16 %v1266, %v1265
        %v1285 = vpack.c.bf16 %v1268, %v1267
        %v1286 = vpack.c.bf16 %v1270, %v1269
        %s1287 = scalar_lea.vmem %s1, 6
        %v1288 = vld [vmem:[%s1287] sm:$0x3]
        %v1290 = vsel %vm278, %v1271, 0
        %v1293 = vsel %vm278, %v1272, 0
        %v1296 = vsel %vm278, %v1273, 0
        %v1299 = vsel %vm278, %v1274, 0
        %v1302 = vsel %vm278, %v1275, 0
        %v1305 = vsel %vm278, %v1276, 0
        %v1308 = vsel %vm278, %v1277, 0
        %v1311 = vsel %vm278, %v1278, 0
        %v1314 = vsel %vm278, %v1279, 0
        %v1317 = vsel %vm278, %v1280, 0
        %v1320 = vsel %vm278, %v1281, 0
        %v1323 = vsel %vm278, %v1282, 0
        %v1326 = vsel %vm278, %v1283, 0
        %v1329 = vsel %vm278, %v1284, 0
        %v1332 = vsel %vm278, %v1285, 0
        %v1335 = vsel %vm278, %v1286, 0
        %v1338 = vsel %vm568, %v1288, 0
        %1340 = vmatprep.subr.bf16.mxu0 0
        %1341 = vmatpush1.bf16.msra.mxu0 0
        %1342 = vmatprep.subr.bf16.mxu0 0
        %1343 = vmatpush1.bf16.msra.mxu0 0
        %1344 = vmatprep.subr.bf16.mxu0 0
        %1345 = vmatpush1.bf16.msra.mxu0 0
        %1346 = vmatprep.subr.bf16.mxu0 0
        %1347 = vmatpush1.bf16.msra.mxu0 0
        %1348 = vmatprep.subr.bf16.mxu0 0
        %1349 = vmatpush1.bf16.msra.mxu0 0
        %1350 = vmatprep.subr.bf16.mxu0 0
        %1351 = vmatpush1.bf16.msra.mxu0 0
        %1352 = vmatprep.subr.bf16.mxu0 0
        %1353 = vmatpush1.bf16.msra.mxu0 0
        %1354 = vmatprep.subr.bf16.mxu0 0
        %1355 = vmatpush1.bf16.msra.mxu0 %v1338
        %1356 = vmatprep.subr.bf16.mxu0 0
        %1357 = vmatpush2.bf16.msra.mxu0 0
        %1358 = vmatprep.subr.bf16.mxu0 0
        %1359 = vmatpush2.bf16.msra.mxu0 0
        %1360 = vmatprep.subr.bf16.mxu0 0
        %1361 = vmatpush2.bf16.msra.mxu0 0
        %1362 = vmatprep.subr.bf16.mxu0 0
        %1363 = vmatpush2.bf16.msra.mxu0 0
        %1364 = vmatprep.subr.bf16.mxu0 0
        %1365 = vmatpush2.bf16.msra.mxu0 0
        %1366 = vmatprep.subr.bf16.mxu0 0
        %1367 = vmatpush2.bf16.msra.mxu0 0
        %1368 = vmatprep.subr.bf16.mxu0 0
        %1369 = vmatpush2.bf16.msra.mxu0 0
        %1370 = vmatprep.subr.bf16.mxu0 0
        %1371 = vmatpush2.bf16.msra.mxu0 0
        %1372 = vmatprep.mubr.bf16.mxu0 0
        %1373 = vmatmul.mubr.bf16.gmra.mxu0 %v1290
        %v1374 = vpop.f32.mrf.mxu0
        %v1375 = vadd.f32 0.0, %v1374
        %v1376 = vpop.f32.mrf.mxu0
        %v1377 = vpop.f32.mrf.mxu0
        %v1378 = vadd.f32 0.0, %v1377
        %v1379 = vpop.f32.mrf.mxu0
        %1380 = vmatprep.mubr.bf16.mxu0 0
        %1381 = vmatmul.mubr.bf16.gmra.mxu0 %v1293
        %v1382 = vpop.f32.mrf.mxu0
        %v1383 = vadd.f32 0.0, %v1382
        %v1384 = vpop.f32.mrf.mxu0
        %v1385 = vpop.f32.mrf.mxu0
        %v1386 = vadd.f32 0.0, %v1385
        %v1387 = vpop.f32.mrf.mxu0
        %1388 = vmatprep.mubr.bf16.mxu0 0
        %1389 = vmatmul.mubr.bf16.gmra.mxu0 %v1296
        %v1390 = vpop.f32.mrf.mxu0
        %v1391 = vadd.f32 0.0, %v1390
        %v1392 = vpop.f32.mrf.mxu0
        %v1393 = vpop.f32.mrf.mxu0
        %v1394 = vadd.f32 0.0, %v1393
        %v1395 = vpop.f32.mrf.mxu0
        %1396 = vmatprep.mubr.bf16.mxu0 0
        %1397 = vmatmul.mubr.bf16.gmra.mxu0 %v1299
        %v1398 = vpop.f32.mrf.mxu0
        %v1399 = vadd.f32 0.0, %v1398
        %v1400 = vpop.f32.mrf.mxu0
        %v1401 = vpop.f32.mrf.mxu0
        %v1402 = vadd.f32 0.0, %v1401
        %v1403 = vpop.f32.mrf.mxu0
        %1404 = vmatprep.mubr.bf16.mxu0 0
        %1405 = vmatmul.mubr.bf16.gmra.mxu0 %v1302
        %v1406 = vpop.f32.mrf.mxu0
        %v1407 = vadd.f32 0.0, %v1406
        %v1408 = vpop.f32.mrf.mxu0
        %v1409 = vpop.f32.mrf.mxu0
        %v1410 = vadd.f32 0.0, %v1409
        %v1411 = vpop.f32.mrf.mxu0
        %1412 = vmatprep.mubr.bf16.mxu0 0
        %1413 = vmatmul.mubr.bf16.gmra.mxu0 %v1305
        %v1414 = vpop.f32.mrf.mxu0
        %v1415 = vadd.f32 0.0, %v1414
        %v1416 = vpop.f32.mrf.mxu0
        %v1417 = vpop.f32.mrf.mxu0
        %v1418 = vadd.f32 0.0, %v1417
        %v1419 = vpop.f32.mrf.mxu0
        %1420 = vmatprep.mubr.bf16.mxu0 0
        %1421 = vmatmul.mubr.bf16.gmra.mxu0 %v1308
        %v1422 = vpop.f32.mrf.mxu0
        %v1423 = vadd.f32 0.0, %v1422
        %v1424 = vpop.f32.mrf.mxu0
        %v1425 = vpop.f32.mrf.mxu0
        %v1426 = vadd.f32 0.0, %v1425
        %v1427 = vpop.f32.mrf.mxu0
        %1428 = vmatprep.mubr.bf16.mxu0 0
        %1429 = vmatmul.mubr.bf16.gmra.mxu0 %v1311
        %v1430 = vpop.f32.mrf.mxu0
        %v1431 = vadd.f32 0.0, %v1430
        %v1432 = vpop.f32.mrf.mxu0
        %v1433 = vpop.f32.mrf.mxu0
        %v1434 = vadd.f32 0.0, %v1433
        %v1435 = vpop.f32.mrf.mxu0
        %1436 = vmatprep.mubr.bf16.mxu0 0
        %1437 = vmatmul.mubr.bf16.gmra.mxu0 %v1314
        %v1438 = vpop.f32.mrf.mxu0
        %v1439 = vadd.f32 0.0, %v1438
        %v1440 = vpop.f32.mrf.mxu0
        %v1441 = vpop.f32.mrf.mxu0
        %v1442 = vadd.f32 0.0, %v1441
        %v1443 = vpop.f32.mrf.mxu0
        %1444 = vmatprep.mubr.bf16.mxu0 0
        %1445 = vmatmul.mubr.bf16.gmra.mxu0 %v1317
        %v1446 = vpop.f32.mrf.mxu0
        %v1447 = vadd.f32 0.0, %v1446
        %v1448 = vpop.f32.mrf.mxu0
        %v1449 = vpop.f32.mrf.mxu0
        %v1450 = vadd.f32 0.0, %v1449
        %v1451 = vpop.f32.mrf.mxu0
        %1452 = vmatprep.mubr.bf16.mxu0 0
        %1453 = vmatmul.mubr.bf16.gmra.mxu0 %v1320
        %v1454 = vpop.f32.mrf.mxu0
        %v1455 = vadd.f32 0.0, %v1454
        %v1456 = vpop.f32.mrf.mxu0
        %v1457 = vpop.f32.mrf.mxu0
        %v1458 = vadd.f32 0.0, %v1457
        %v1459 = vpop.f32.mrf.mxu0
        %1460 = vmatprep.mubr.bf16.mxu0 0
        %1461 = vmatmul.mubr.bf16.gmra.mxu0 %v1323
        %v1462 = vpop.f32.mrf.mxu0
        %v1463 = vadd.f32 0.0, %v1462
        %v1464 = vpop.f32.mrf.mxu0
        %v1465 = vpop.f32.mrf.mxu0
        %v1466 = vadd.f32 0.0, %v1465
        %v1467 = vpop.f32.mrf.mxu0
        %1468 = vmatprep.mubr.bf16.mxu0 0
        %1469 = vmatmul.mubr.bf16.gmra.mxu0 %v1326
        %v1470 = vpop.f32.mrf.mxu0
        %v1471 = vadd.f32 0.0, %v1470
        %v1472 = vpop.f32.mrf.mxu0
        %v1473 = vpop.f32.mrf.mxu0
        %v1474 = vadd.f32 0.0, %v1473
        %v1475 = vpop.f32.mrf.mxu0
        %1476 = vmatprep.mubr.bf16.mxu0 0
        %1477 = vmatmul.mubr.bf16.gmra.mxu0 %v1329
        %v1478 = vpop.f32.mrf.mxu0
        %v1479 = vadd.f32 0.0, %v1478
        %v1480 = vpop.f32.mrf.mxu0
        %v1481 = vpop.f32.mrf.mxu0
        %v1482 = vadd.f32 0.0, %v1481
        %v1483 = vpop.f32.mrf.mxu0
        %1484 = vmatprep.mubr.bf16.mxu0 0
        %1485 = vmatmul.mubr.bf16.gmra.mxu0 %v1332
        %v1486 = vpop.f32.mrf.mxu0
        %v1487 = vadd.f32 0.0, %v1486
        %v1488 = vpop.f32.mrf.mxu0
        %v1489 = vpop.f32.mrf.mxu0
        %v1490 = vadd.f32 0.0, %v1489
        %v1491 = vpop.f32.mrf.mxu0
        %1492 = vmatprep.mubr.bf16.mxu0 0
        %1493 = vmatmul.mubr.bf16.gmra.mxu0 %v1335
        %v1494 = vpop.f32.mrf.mxu0
        %v1495 = vadd.f32 0.0, %v1494
        %v1496 = vpop.f32.mrf.mxu0
        %v1497 = vpop.f32.mrf.mxu0
        %v1498 = vadd.f32 0.0, %v1497
        %v1499 = vpop.f32.mrf.mxu0
        %1500 = vdwg.mxu0
        %v1501 = vadd.f32 %v1207, %v1375
        %v1502 = vadd.f32 %v1208, %v1378
        %v1503 = vadd.f32 %v1209, %v1383
        %v1504 = vadd.f32 %v1210, %v1386
        %v1505 = vadd.f32 %v1211, %v1391
        %v1506 = vadd.f32 %v1212, %v1394
        %v1507 = vadd.f32 %v1213, %v1399
        %v1508 = vadd.f32 %v1214, %v1402
        %v1509 = vadd.f32 %v1215, %v1407
        %v1510 = vadd.f32 %v1216, %v1410
        %v1511 = vadd.f32 %v1217, %v1415
        %v1512 = vadd.f32 %v1218, %v1418
        %v1513 = vadd.f32 %v1219, %v1423
        %v1514 = vadd.f32 %v1220, %v1426
        %v1515 = vadd.f32 %v1221, %v1431
        %v1516 = vadd.f32 %v1222, %v1434
        %v1517 = vadd.f32 %v1223, %v1439
        %v1518 = vadd.f32 %v1224, %v1442
        %v1519 = vadd.f32 %v1225, %v1447
        %v1520 = vadd.f32 %v1226, %v1450
        %v1521 = vadd.f32 %v1227, %v1455
        %v1522 = vadd.f32 %v1228, %v1458
        %v1523 = vadd.f32 %v1229, %v1463
        %v1524 = vadd.f32 %v1230, %v1466
        %v1525 = vadd.f32 %v1231, %v1471
        %v1526 = vadd.f32 %v1232, %v1474
        %v1527 = vadd.f32 %v1233, %v1479
        %v1528 = vadd.f32 %v1234, %v1482
        %v1529 = vadd.f32 %v1235, %v1487
        %v1530 = vadd.f32 %v1236, %v1490
        %v1531 = vadd.f32 %v1237, %v1495
        %v1532 = vadd.f32 %v1238, %v1498
        %v1533 = vld [vmem:[%s388 + $0x1] sm:$0xff]
        %v1534 = vld [vmem:[%s388 + $0x9] sm:$0xff]
        %v1535 = vld [vmem:[%s388 + $0x19] sm:$0xff]
        %v1536 = vld [vmem:[%s388 + $0x21] sm:$0xff]
        %v1537 = vld [vmem:[%s388 + $0x31] sm:$0xff]
        %v1538 = vld [vmem:[%s388 + $0x39] sm:$0xff]
        %v1539 = vld [vmem:[%s388 + $0x49] sm:$0xff]
        %v1540 = vld [vmem:[%s388 + $0x51] sm:$0xff]
        %v1541 = vld [vmem:[%s388 + $0x61] sm:$0xff]
        %v1542 = vld [vmem:[%s388 + $0x69] sm:$0xff]
        %v1543 = vld [vmem:[%s388 + $0x79] sm:$0xff]
        %v1544 = vld [vmem:[%s388 + $0x81] sm:$0xff]
        %v1545 = vld [vmem:[%s388 + $0x91] sm:$0xff]
        %v1546 = vld [vmem:[%s388 + $0x99] sm:$0xff]
        %v1547 = vld [vmem:[%s388 + $0xa9] sm:$0xff]
        %v1548 = vld [vmem:[%s388 + $0xb1] sm:$0xff]
        %v1549 = vld [vmem:[%s388 + $0xc1] sm:$0xff]
        %v1550 = vld [vmem:[%s388 + $0xc9] sm:$0xff]
        %v1551 = vld [vmem:[%s388 + $0xd9] sm:$0xff]
        %v1552 = vld [vmem:[%s388 + $0xe1] sm:$0xff]
        %v1553 = vld [vmem:[%s388 + $0xf1] sm:$0xff]
        %v1554 = vld [vmem:[%s388 + $0xf9] sm:$0xff]
        %v1555 = vld [vmem:[%s388 + $0x109] sm:$0xff]
        %v1556 = vld [vmem:[%s388 + $0x111] sm:$0xff]
        %v1557 = vld [vmem:[%s388 + $0x121] sm:$0xff]
        %v1558 = vld [vmem:[%s388 + $0x129] sm:$0xff]
        %v1559 = vld [vmem:[%s388 + $0x139] sm:$0xff]
        %v1560 = vld [vmem:[%s388 + $0x141] sm:$0xff]
        %v1561 = vld [vmem:[%s388 + $0x151] sm:$0xff]
        %v1562 = vld [vmem:[%s388 + $0x159] sm:$0xff]
        %v1563 = vld [vmem:[%s388 + $0x169] sm:$0xff]
        %v1564 = vld [vmem:[%s388 + $0x171] sm:$0xff]
        %v1565 = vpack.c.bf16 %v1534, %v1533
        %v1566 = vpack.c.bf16 %v1536, %v1535
        %v1567 = vpack.c.bf16 %v1538, %v1537
        %v1568 = vpack.c.bf16 %v1540, %v1539
        %v1569 = vpack.c.bf16 %v1542, %v1541
        %v1570 = vpack.c.bf16 %v1544, %v1543
        %v1571 = vpack.c.bf16 %v1546, %v1545
        %v1572 = vpack.c.bf16 %v1548, %v1547
        %v1573 = vpack.c.bf16 %v1550, %v1549
        %v1574 = vpack.c.bf16 %v1552, %v1551
        %v1575 = vpack.c.bf16 %v1554, %v1553
        %v1576 = vpack.c.bf16 %v1556, %v1555
        %v1577 = vpack.c.bf16 %v1558, %v1557
        %v1578 = vpack.c.bf16 %v1560, %v1559
        %v1579 = vpack.c.bf16 %v1562, %v1561
        %v1580 = vpack.c.bf16 %v1564, %v1563
        %s1581 = scalar_lea.vmem %s1, 8
        %v1582 = vld [vmem:[%s1581] sm:$0x3]
        %v1584 = vsel %vm278, %v1565, 0
        %v1587 = vsel %vm278, %v1566, 0
        %v1590 = vsel %vm278, %v1567, 0
        %v1593 = vsel %vm278, %v1568, 0
        %v1596 = vsel %vm278, %v1569, 0
        %v1599 = vsel %vm278, %v1570, 0
        %v1602 = vsel %vm278, %v1571, 0
        %v1605 = vsel %vm278, %v1572, 0
        %v1608 = vsel %vm278, %v1573, 0
        %v1611 = vsel %vm278, %v1574, 0
        %v1614 = vsel %vm278, %v1575, 0
        %v1617 = vsel %vm278, %v1576, 0
        %v1620 = vsel %vm278, %v1577, 0
        %v1623 = vsel %vm278, %v1578, 0
        %v1626 = vsel %vm278, %v1579, 0
        %v1629 = vsel %vm278, %v1580, 0
        %v1632 = vsel %vm568, %v1582, 0
        %1634 = vmatprep.subr.bf16.mxu0 0
        %1635 = vmatpush1.bf16.msra.mxu0 0
        %1636 = vmatprep.subr.bf16.mxu0 0
        %1637 = vmatpush1.bf16.msra.mxu0 0
        %1638 = vmatprep.subr.bf16.mxu0 0
        %1639 = vmatpush1.bf16.msra.mxu0 0
        %1640 = vmatprep.subr.bf16.mxu0 0
        %1641 = vmatpush1.bf16.msra.mxu0 0
        %1642 = vmatprep.subr.bf16.mxu0 0
        %1643 = vmatpush1.bf16.msra.mxu0 0
        %1644 = vmatprep.subr.bf16.mxu0 0
        %1645 = vmatpush1.bf16.msra.mxu0 0
        %1646 = vmatprep.subr.bf16.mxu0 0
        %1647 = vmatpush1.bf16.msra.mxu0 0
        %1648 = vmatprep.subr.bf16.mxu0 0
        %1649 = vmatpush1.bf16.msra.mxu0 %v1632
        %1650 = vmatprep.subr.bf16.mxu0 0
        %1651 = vmatpush2.bf16.msra.mxu0 0
        %1652 = vmatprep.subr.bf16.mxu0 0
        %1653 = vmatpush2.bf16.msra.mxu0 0
        %1654 = vmatprep.subr.bf16.mxu0 0
        %1655 = vmatpush2.bf16.msra.mxu0 0
        %1656 = vmatprep.subr.bf16.mxu0 0
        %1657 = vmatpush2.bf16.msra.mxu0 0
        %1658 = vmatprep.subr.bf16.mxu0 0
        %1659 = vmatpush2.bf16.msra.mxu0 0
        %1660 = vmatprep.subr.bf16.mxu0 0
        %1661 = vmatpush2.bf16.msra.mxu0 0
        %1662 = vmatprep.subr.bf16.mxu0 0
        %1663 = vmatpush2.bf16.msra.mxu0 0
        %1664 = vmatprep.subr.bf16.mxu0 0
        %1665 = vmatpush2.bf16.msra.mxu0 0
        %1666 = vmatprep.mubr.bf16.mxu0 0
        %1667 = vmatmul.mubr.bf16.gmra.mxu0 %v1584
        %v1668 = vpop.f32.mrf.mxu0
        %v1669 = vadd.f32 0.0, %v1668
        %v1670 = vpop.f32.mrf.mxu0
        %v1671 = vpop.f32.mrf.mxu0
        %v1672 = vadd.f32 0.0, %v1671
        %v1673 = vpop.f32.mrf.mxu0
        %1674 = vmatprep.mubr.bf16.mxu0 0
        %1675 = vmatmul.mubr.bf16.gmra.mxu0 %v1587
        %v1676 = vpop.f32.mrf.mxu0
        %v1677 = vadd.f32 0.0, %v1676
        %v1678 = vpop.f32.mrf.mxu0
        %v1679 = vpop.f32.mrf.mxu0
        %v1680 = vadd.f32 0.0, %v1679
        %v1681 = vpop.f32.mrf.mxu0
        %1682 = vmatprep.mubr.bf16.mxu0 0
        %1683 = vmatmul.mubr.bf16.gmra.mxu0 %v1590
        %v1684 = vpop.f32.mrf.mxu0
        %v1685 = vadd.f32 0.0, %v1684
        %v1686 = vpop.f32.mrf.mxu0
        %v1687 = vpop.f32.mrf.mxu0
        %v1688 = vadd.f32 0.0, %v1687
        %v1689 = vpop.f32.mrf.mxu0
        %1690 = vmatprep.mubr.bf16.mxu0 0
        %1691 = vmatmul.mubr.bf16.gmra.mxu0 %v1593
        %v1692 = vpop.f32.mrf.mxu0
        %v1693 = vadd.f32 0.0, %v1692
        %v1694 = vpop.f32.mrf.mxu0
        %v1695 = vpop.f32.mrf.mxu0
        %v1696 = vadd.f32 0.0, %v1695
        %v1697 = vpop.f32.mrf.mxu0
        %1698 = vmatprep.mubr.bf16.mxu0 0
        %1699 = vmatmul.mubr.bf16.gmra.mxu0 %v1596
        %v1700 = vpop.f32.mrf.mxu0
        %v1701 = vadd.f32 0.0, %v1700
        %v1702 = vpop.f32.mrf.mxu0
        %v1703 = vpop.f32.mrf.mxu0
        %v1704 = vadd.f32 0.0, %v1703
        %v1705 = vpop.f32.mrf.mxu0
        %1706 = vmatprep.mubr.bf16.mxu0 0
        %1707 = vmatmul.mubr.bf16.gmra.mxu0 %v1599
        %v1708 = vpop.f32.mrf.mxu0
        %v1709 = vadd.f32 0.0, %v1708
        %v1710 = vpop.f32.mrf.mxu0
        %v1711 = vpop.f32.mrf.mxu0
        %v1712 = vadd.f32 0.0, %v1711
        %v1713 = vpop.f32.mrf.mxu0
        %1714 = vmatprep.mubr.bf16.mxu0 0
        %1715 = vmatmul.mubr.bf16.gmra.mxu0 %v1602
        %v1716 = vpop.f32.mrf.mxu0
        %v1717 = vadd.f32 0.0, %v1716
        %v1718 = vpop.f32.mrf.mxu0
        %v1719 = vpop.f32.mrf.mxu0
        %v1720 = vadd.f32 0.0, %v1719
        %v1721 = vpop.f32.mrf.mxu0
        %1722 = vmatprep.mubr.bf16.mxu0 0
        %1723 = vmatmul.mubr.bf16.gmra.mxu0 %v1605
        %v1724 = vpop.f32.mrf.mxu0
        %v1725 = vadd.f32 0.0, %v1724
        %v1726 = vpop.f32.mrf.mxu0
        %v1727 = vpop.f32.mrf.mxu0
        %v1728 = vadd.f32 0.0, %v1727
        %v1729 = vpop.f32.mrf.mxu0
        %1730 = vmatprep.mubr.bf16.mxu0 0
        %1731 = vmatmul.mubr.bf16.gmra.mxu0 %v1608
        %v1732 = vpop.f32.mrf.mxu0
        %v1733 = vadd.f32 0.0, %v1732
        %v1734 = vpop.f32.mrf.mxu0
        %v1735 = vpop.f32.mrf.mxu0
        %v1736 = vadd.f32 0.0, %v1735
        %v1737 = vpop.f32.mrf.mxu0
        %1738 = vmatprep.mubr.bf16.mxu0 0
        %1739 = vmatmul.mubr.bf16.gmra.mxu0 %v1611
        %v1740 = vpop.f32.mrf.mxu0
        %v1741 = vadd.f32 0.0, %v1740
        %v1742 = vpop.f32.mrf.mxu0
        %v1743 = vpop.f32.mrf.mxu0
        %v1744 = vadd.f32 0.0, %v1743
        %v1745 = vpop.f32.mrf.mxu0
        %1746 = vmatprep.mubr.bf16.mxu0 0
        %1747 = vmatmul.mubr.bf16.gmra.mxu0 %v1614
        %v1748 = vpop.f32.mrf.mxu0
        %v1749 = vadd.f32 0.0, %v1748
        %v1750 = vpop.f32.mrf.mxu0
        %v1751 = vpop.f32.mrf.mxu0
        %v1752 = vadd.f32 0.0, %v1751
        %v1753 = vpop.f32.mrf.mxu0
        %1754 = vmatprep.mubr.bf16.mxu0 0
        %1755 = vmatmul.mubr.bf16.gmra.mxu0 %v1617
        %v1756 = vpop.f32.mrf.mxu0
        %v1757 = vadd.f32 0.0, %v1756
        %v1758 = vpop.f32.mrf.mxu0
        %v1759 = vpop.f32.mrf.mxu0
        %v1760 = vadd.f32 0.0, %v1759
        %v1761 = vpop.f32.mrf.mxu0
        %1762 = vmatprep.mubr.bf16.mxu0 0
        %1763 = vmatmul.mubr.bf16.gmra.mxu0 %v1620
        %v1764 = vpop.f32.mrf.mxu0
        %v1765 = vadd.f32 0.0, %v1764
        %v1766 = vpop.f32.mrf.mxu0
        %v1767 = vpop.f32.mrf.mxu0
        %v1768 = vadd.f32 0.0, %v1767
        %v1769 = vpop.f32.mrf.mxu0
        %1770 = vmatprep.mubr.bf16.mxu0 0
        %1771 = vmatmul.mubr.bf16.gmra.mxu0 %v1623
        %v1772 = vpop.f32.mrf.mxu0
        %v1773 = vadd.f32 0.0, %v1772
        %v1774 = vpop.f32.mrf.mxu0
        %v1775 = vpop.f32.mrf.mxu0
        %v1776 = vadd.f32 0.0, %v1775
        %v1777 = vpop.f32.mrf.mxu0
        %1778 = vmatprep.mubr.bf16.mxu0 0
        %1779 = vmatmul.mubr.bf16.gmra.mxu0 %v1626
        %v1780 = vpop.f32.mrf.mxu0
        %v1781 = vadd.f32 0.0, %v1780
        %v1782 = vpop.f32.mrf.mxu0
        %v1783 = vpop.f32.mrf.mxu0
        %v1784 = vadd.f32 0.0, %v1783
        %v1785 = vpop.f32.mrf.mxu0
        %1786 = vmatprep.mubr.bf16.mxu0 0
        %1787 = vmatmul.mubr.bf16.gmra.mxu0 %v1629
        %v1788 = vpop.f32.mrf.mxu0
        %v1789 = vadd.f32 0.0, %v1788
        %v1790 = vpop.f32.mrf.mxu0
        %v1791 = vpop.f32.mrf.mxu0
        %v1792 = vadd.f32 0.0, %v1791
        %v1793 = vpop.f32.mrf.mxu0
        %1794 = vdwg.mxu0
        %v1795 = vadd.f32 %v1501, %v1669
        %v1796 = vadd.f32 %v1502, %v1672
        %v1797 = vadd.f32 %v1503, %v1677
        %v1798 = vadd.f32 %v1504, %v1680
        %v1799 = vadd.f32 %v1505, %v1685
        %v1800 = vadd.f32 %v1506, %v1688
        %v1801 = vadd.f32 %v1507, %v1693
        %v1802 = vadd.f32 %v1508, %v1696
        %v1803 = vadd.f32 %v1509, %v1701
        %v1804 = vadd.f32 %v1510, %v1704
        %v1805 = vadd.f32 %v1511, %v1709
        %v1806 = vadd.f32 %v1512, %v1712
        %v1807 = vadd.f32 %v1513, %v1717
        %v1808 = vadd.f32 %v1514, %v1720
        %v1809 = vadd.f32 %v1515, %v1725
        %v1810 = vadd.f32 %v1516, %v1728
        %v1811 = vadd.f32 %v1517, %v1733
        %v1812 = vadd.f32 %v1518, %v1736
        %v1813 = vadd.f32 %v1519, %v1741
        %v1814 = vadd.f32 %v1520, %v1744
        %v1815 = vadd.f32 %v1521, %v1749
        %v1816 = vadd.f32 %v1522, %v1752
        %v1817 = vadd.f32 %v1523, %v1757
        %v1818 = vadd.f32 %v1524, %v1760
        %v1819 = vadd.f32 %v1525, %v1765
        %v1820 = vadd.f32 %v1526, %v1768
        %v1821 = vadd.f32 %v1527, %v1773
        %v1822 = vadd.f32 %v1528, %v1776
        %v1823 = vadd.f32 %v1529, %v1781
        %v1824 = vadd.f32 %v1530, %v1784
        %v1825 = vadd.f32 %v1531, %v1789
        %v1826 = vadd.f32 %v1532, %v1792
        %v1827 = vld [vmem:[%s388 + $0x2] sm:$0xff]
        %v1828 = vld [vmem:[%s388 + $0xa] sm:$0xff]
        %v1829 = vld [vmem:[%s388 + $0x1a] sm:$0xff]
        %v1830 = vld [vmem:[%s388 + $0x22] sm:$0xff]
        %v1831 = vld [vmem:[%s388 + $0x32] sm:$0xff]
        %v1832 = vld [vmem:[%s388 + $0x3a] sm:$0xff]
        %v1833 = vld [vmem:[%s388 + $0x4a] sm:$0xff]
        %v1834 = vld [vmem:[%s388 + $0x52] sm:$0xff]
        %v1835 = vld [vmem:[%s388 + $0x62] sm:$0xff]
        %v1836 = vld [vmem:[%s388 + $0x6a] sm:$0xff]
        %v1837 = vld [vmem:[%s388 + $0x7a] sm:$0xff]
        %v1838 = vld [vmem:[%s388 + $0x82] sm:$0xff]
        %v1839 = vld [vmem:[%s388 + $0x92] sm:$0xff]
        %v1840 = vld [vmem:[%s388 + $0x9a] sm:$0xff]
        %v1841 = vld [vmem:[%s388 + $0xaa] sm:$0xff]
        %v1842 = vld [vmem:[%s388 + $0xb2] sm:$0xff]
        %v1843 = vld [vmem:[%s388 + $0xc2] sm:$0xff]
        %v1844 = vld [vmem:[%s388 + $0xca] sm:$0xff]
        %v1845 = vld [vmem:[%s388 + $0xda] sm:$0xff]
        %v1846 = vld [vmem:[%s388 + $0xe2] sm:$0xff]
        %v1847 = vld [vmem:[%s388 + $0xf2] sm:$0xff]
        %v1848 = vld [vmem:[%s388 + $0xfa] sm:$0xff]
        %v1849 = vld [vmem:[%s388 + $0x10a] sm:$0xff]
        %v1850 = vld [vmem:[%s388 + $0x112] sm:$0xff]
        %v1851 = vld [vmem:[%s388 + $0x122] sm:$0xff]
        %v1852 = vld [vmem:[%s388 + $0x12a] sm:$0xff]
        %v1853 = vld [vmem:[%s388 + $0x13a] sm:$0xff]
        %v1854 = vld [vmem:[%s388 + $0x142] sm:$0xff]
        %v1855 = vld [vmem:[%s388 + $0x152] sm:$0xff]
        %v1856 = vld [vmem:[%s388 + $0x15a] sm:$0xff]
        %v1857 = vld [vmem:[%s388 + $0x16a] sm:$0xff]
        %v1858 = vld [vmem:[%s388 + $0x172] sm:$0xff]
        %v1859 = vpack.c.bf16 %v1828, %v1827
        %v1860 = vpack.c.bf16 %v1830, %v1829
        %v1861 = vpack.c.bf16 %v1832, %v1831
        %v1862 = vpack.c.bf16 %v1834, %v1833
        %v1863 = vpack.c.bf16 %v1836, %v1835
        %v1864 = vpack.c.bf16 %v1838, %v1837
        %v1865 = vpack.c.bf16 %v1840, %v1839
        %v1866 = vpack.c.bf16 %v1842, %v1841
        %v1867 = vpack.c.bf16 %v1844, %v1843
        %v1868 = vpack.c.bf16 %v1846, %v1845
        %v1869 = vpack.c.bf16 %v1848, %v1847
        %v1870 = vpack.c.bf16 %v1850, %v1849
        %v1871 = vpack.c.bf16 %v1852, %v1851
        %v1872 = vpack.c.bf16 %v1854, %v1853
        %v1873 = vpack.c.bf16 %v1856, %v1855
        %v1874 = vpack.c.bf16 %v1858, %v1857
        %s1875 = scalar_lea.vmem %s1, 10
        %v1876 = vld [vmem:[%s1875] sm:$0x3]
        %v1878 = vsel %vm278, %v1859, 0
        %v1881 = vsel %vm278, %v1860, 0
        %v1884 = vsel %vm278, %v1861, 0
        %v1887 = vsel %vm278, %v1862, 0
        %v1890 = vsel %vm278, %v1863, 0
        %v1893 = vsel %vm278, %v1864, 0
        %v1896 = vsel %vm278, %v1865, 0
        %v1899 = vsel %vm278, %v1866, 0
        %v1902 = vsel %vm278, %v1867, 0
        %v1905 = vsel %vm278, %v1868, 0
        %v1908 = vsel %vm278, %v1869, 0
        %v1911 = vsel %vm278, %v1870, 0
        %v1914 = vsel %vm278, %v1871, 0
        %v1917 = vsel %vm278, %v1872, 0
        %v1920 = vsel %vm278, %v1873, 0
        %v1923 = vsel %vm278, %v1874, 0
        %v1926 = vsel %vm568, %v1876, 0
        %1928 = vmatprep.subr.bf16.mxu0 0
        %1929 = vmatpush1.bf16.msra.mxu0 0
        %1930 = vmatprep.subr.bf16.mxu0 0
        %1931 = vmatpush1.bf16.msra.mxu0 0
        %1932 = vmatprep.subr.bf16.mxu0 0
        %1933 = vmatpush1.bf16.msra.mxu0 0
        %1934 = vmatprep.subr.bf16.mxu0 0
        %1935 = vmatpush1.bf16.msra.mxu0 0
        %1936 = vmatprep.subr.bf16.mxu0 0
        %1937 = vmatpush1.bf16.msra.mxu0 0
        %1938 = vmatprep.subr.bf16.mxu0 0
        %1939 = vmatpush1.bf16.msra.mxu0 0
        %1940 = vmatprep.subr.bf16.mxu0 0
        %1941 = vmatpush1.bf16.msra.mxu0 0
        %1942 = vmatprep.subr.bf16.mxu0 0
        %1943 = vmatpush1.bf16.msra.mxu0 %v1926
        %1944 = vmatprep.subr.bf16.mxu0 0
        %1945 = vmatpush2.bf16.msra.mxu0 0
        %1946 = vmatprep.subr.bf16.mxu0 0
        %1947 = vmatpush2.bf16.msra.mxu0 0
        %1948 = vmatprep.subr.bf16.mxu0 0
        %1949 = vmatpush2.bf16.msra.mxu0 0
        %1950 = vmatprep.subr.bf16.mxu0 0
        %1951 = vmatpush2.bf16.msra.mxu0 0
        %1952 = vmatprep.subr.bf16.mxu0 0
        %1953 = vmatpush2.bf16.msra.mxu0 0
        %1954 = vmatprep.subr.bf16.mxu0 0
        %1955 = vmatpush2.bf16.msra.mxu0 0
        %1956 = vmatprep.subr.bf16.mxu0 0
        %1957 = vmatpush2.bf16.msra.mxu0 0
        %1958 = vmatprep.subr.bf16.mxu0 0
        %1959 = vmatpush2.bf16.msra.mxu0 0
        %1960 = vmatprep.mubr.bf16.mxu0 0
        %1961 = vmatmul.mubr.bf16.gmra.mxu0 %v1878
        %v1962 = vpop.f32.mrf.mxu0
        %v1963 = vadd.f32 0.0, %v1962
        %v1964 = vpop.f32.mrf.mxu0
        %v1965 = vpop.f32.mrf.mxu0
        %v1966 = vadd.f32 0.0, %v1965
        %v1967 = vpop.f32.mrf.mxu0
        %1968 = vmatprep.mubr.bf16.mxu0 0
        %1969 = vmatmul.mubr.bf16.gmra.mxu0 %v1881
        %v1970 = vpop.f32.mrf.mxu0
        %v1971 = vadd.f32 0.0, %v1970
        %v1972 = vpop.f32.mrf.mxu0
        %v1973 = vpop.f32.mrf.mxu0
        %v1974 = vadd.f32 0.0, %v1973
        %v1975 = vpop.f32.mrf.mxu0
        %1976 = vmatprep.mubr.bf16.mxu0 0
        %1977 = vmatmul.mubr.bf16.gmra.mxu0 %v1884
        %v1978 = vpop.f32.mrf.mxu0
        %v1979 = vadd.f32 0.0, %v1978
        %v1980 = vpop.f32.mrf.mxu0
        %v1981 = vpop.f32.mrf.mxu0
        %v1982 = vadd.f32 0.0, %v1981
        %v1983 = vpop.f32.mrf.mxu0
        %1984 = vmatprep.mubr.bf16.mxu0 0
        %1985 = vmatmul.mubr.bf16.gmra.mxu0 %v1887
        %v1986 = vpop.f32.mrf.mxu0
        %v1987 = vadd.f32 0.0, %v1986
        %v1988 = vpop.f32.mrf.mxu0
        %v1989 = vpop.f32.mrf.mxu0
        %v1990 = vadd.f32 0.0, %v1989
        %v1991 = vpop.f32.mrf.mxu0
        %1992 = vmatprep.mubr.bf16.mxu0 0
        %1993 = vmatmul.mubr.bf16.gmra.mxu0 %v1890
        %v1994 = vpop.f32.mrf.mxu0
        %v1995 = vadd.f32 0.0, %v1994
        %v1996 = vpop.f32.mrf.mxu0
        %v1997 = vpop.f32.mrf.mxu0
        %v1998 = vadd.f32 0.0, %v1997
        %v1999 = vpop.f32.mrf.mxu0
        %2000 = vmatprep.mubr.bf16.mxu0 0
        %2001 = vmatmul.mubr.bf16.gmra.mxu0 %v1893
        %v2002 = vpop.f32.mrf.mxu0
        %v2003 = vadd.f32 0.0, %v2002
        %v2004 = vpop.f32.mrf.mxu0
        %v2005 = vpop.f32.mrf.mxu0
        %v2006 = vadd.f32 0.0, %v2005
        %v2007 = vpop.f32.mrf.mxu0
        %2008 = vmatprep.mubr.bf16.mxu0 0
        %2009 = vmatmul.mubr.bf16.gmra.mxu0 %v1896
        %v2010 = vpop.f32.mrf.mxu0
        %v2011 = vadd.f32 0.0, %v2010
        %v2012 = vpop.f32.mrf.mxu0
        %v2013 = vpop.f32.mrf.mxu0
        %v2014 = vadd.f32 0.0, %v2013
        %v2015 = vpop.f32.mrf.mxu0
        %2016 = vmatprep.mubr.bf16.mxu0 0
        %2017 = vmatmul.mubr.bf16.gmra.mxu0 %v1899
        %v2018 = vpop.f32.mrf.mxu0
        %v2019 = vadd.f32 0.0, %v2018
        %v2020 = vpop.f32.mrf.mxu0
        %v2021 = vpop.f32.mrf.mxu0
        %v2022 = vadd.f32 0.0, %v2021
        %v2023 = vpop.f32.mrf.mxu0
        %2024 = vmatprep.mubr.bf16.mxu0 0
        %2025 = vmatmul.mubr.bf16.gmra.mxu0 %v1902
        %v2026 = vpop.f32.mrf.mxu0
        %v2027 = vadd.f32 0.0, %v2026
        %v2028 = vpop.f32.mrf.mxu0
        %v2029 = vpop.f32.mrf.mxu0
        %v2030 = vadd.f32 0.0, %v2029
        %v2031 = vpop.f32.mrf.mxu0
        %2032 = vmatprep.mubr.bf16.mxu0 0
        %2033 = vmatmul.mubr.bf16.gmra.mxu0 %v1905
        %v2034 = vpop.f32.mrf.mxu0
        %v2035 = vadd.f32 0.0, %v2034
        %v2036 = vpop.f32.mrf.mxu0
        %v2037 = vpop.f32.mrf.mxu0
        %v2038 = vadd.f32 0.0, %v2037
        %v2039 = vpop.f32.mrf.mxu0
        %2040 = vmatprep.mubr.bf16.mxu0 0
        %2041 = vmatmul.mubr.bf16.gmra.mxu0 %v1908
        %v2042 = vpop.f32.mrf.mxu0
        %v2043 = vadd.f32 0.0, %v2042
        %v2044 = vpop.f32.mrf.mxu0
        %v2045 = vpop.f32.mrf.mxu0
        %v2046 = vadd.f32 0.0, %v2045
        %v2047 = vpop.f32.mrf.mxu0
        %2048 = vmatprep.mubr.bf16.mxu0 0
        %2049 = vmatmul.mubr.bf16.gmra.mxu0 %v1911
        %v2050 = vpop.f32.mrf.mxu0
        %v2051 = vadd.f32 0.0, %v2050
        %v2052 = vpop.f32.mrf.mxu0
        %v2053 = vpop.f32.mrf.mxu0
        %v2054 = vadd.f32 0.0, %v2053
        %v2055 = vpop.f32.mrf.mxu0
        %2056 = vmatprep.mubr.bf16.mxu0 0
        %2057 = vmatmul.mubr.bf16.gmra.mxu0 %v1914
        %v2058 = vpop.f32.mrf.mxu0
        %v2059 = vadd.f32 0.0, %v2058
        %v2060 = vpop.f32.mrf.mxu0
        %v2061 = vpop.f32.mrf.mxu0
        %v2062 = vadd.f32 0.0, %v2061
        %v2063 = vpop.f32.mrf.mxu0
        %2064 = vmatprep.mubr.bf16.mxu0 0
        %2065 = vmatmul.mubr.bf16.gmra.mxu0 %v1917
        %v2066 = vpop.f32.mrf.mxu0
        %v2067 = vadd.f32 0.0, %v2066
        %v2068 = vpop.f32.mrf.mxu0
        %v2069 = vpop.f32.mrf.mxu0
        %v2070 = vadd.f32 0.0, %v2069
        %v2071 = vpop.f32.mrf.mxu0
        %2072 = vmatprep.mubr.bf16.mxu0 0
        %2073 = vmatmul.mubr.bf16.gmra.mxu0 %v1920
        %v2074 = vpop.f32.mrf.mxu0
        %v2075 = vadd.f32 0.0, %v2074
        %v2076 = vpop.f32.mrf.mxu0
        %v2077 = vpop.f32.mrf.mxu0
        %v2078 = vadd.f32 0.0, %v2077
        %v2079 = vpop.f32.mrf.mxu0
        %2080 = vmatprep.mubr.bf16.mxu0 0
        %2081 = vmatmul.mubr.bf16.gmra.mxu0 %v1923
        %v2082 = vpop.f32.mrf.mxu0
        %v2083 = vadd.f32 0.0, %v2082
        %v2084 = vpop.f32.mrf.mxu0
        %v2085 = vpop.f32.mrf.mxu0
        %v2086 = vadd.f32 0.0, %v2085
        %v2087 = vpop.f32.mrf.mxu0
        %2088 = vdwg.mxu0
        %v2089 = vadd.f32 %v1795, %v1963
        %v2090 = vadd.f32 %v1796, %v1966
        %v2091 = vadd.f32 %v1797, %v1971
        %v2092 = vadd.f32 %v1798, %v1974
        %v2093 = vadd.f32 %v1799, %v1979
        %v2094 = vadd.f32 %v1800, %v1982
        %v2095 = vadd.f32 %v1801, %v1987
        %v2096 = vadd.f32 %v1802, %v1990
        %v2097 = vadd.f32 %v1803, %v1995
        %v2098 = vadd.f32 %v1804, %v1998
        %v2099 = vadd.f32 %v1805, %v2003
        %v2100 = vadd.f32 %v1806, %v2006
        %v2101 = vadd.f32 %v1807, %v2011
        %v2102 = vadd.f32 %v1808, %v2014
        %v2103 = vadd.f32 %v1809, %v2019
        %v2104 = vadd.f32 %v1810, %v2022
        %v2105 = vadd.f32 %v1811, %v2027
        %v2106 = vadd.f32 %v1812, %v2030
        %v2107 = vadd.f32 %v1813, %v2035
        %v2108 = vadd.f32 %v1814, %v2038
        %v2109 = vadd.f32 %v1815, %v2043
        %v2110 = vadd.f32 %v1816, %v2046
        %v2111 = vadd.f32 %v1817, %v2051
        %v2112 = vadd.f32 %v1818, %v2054
        %v2113 = vadd.f32 %v1819, %v2059
        %v2114 = vadd.f32 %v1820, %v2062
        %v2115 = vadd.f32 %v1821, %v2067
        %v2116 = vadd.f32 %v1822, %v2070
        %v2117 = vadd.f32 %v1823, %v2075
        %v2118 = vadd.f32 %v1824, %v2078
        %v2119 = vadd.f32 %v1825, %v2083
        %v2120 = vadd.f32 %v1826, %v2086
        %s2121 = scalar_lea.vmem [#allocation2], 48
        %v2122 = vld [vmem:[%s2121] sm:$0xff]
        %v2123 = vld [vmem:[%s2121 + $0x8] sm:$0xff]
        %v2124 = vld [vmem:[%s2121 + $0x18] sm:$0xff]
        %v2125 = vld [vmem:[%s2121 + $0x20] sm:$0xff]
        %v2126 = vld [vmem:[%s2121 + $0x30] sm:$0xff]
        %v2127 = vld [vmem:[%s2121 + $0x38] sm:$0xff]
        %v2128 = vld [vmem:[%s2121 + $0x48] sm:$0xff]
        %v2129 = vld [vmem:[%s2121 + $0x50] sm:$0xff]
        %v2130 = vld [vmem:[%s2121 + $0x60] sm:$0xff]
        %v2131 = vld [vmem:[%s2121 + $0x68] sm:$0xff]
        %v2132 = vld [vmem:[%s2121 + $0x78] sm:$0xff]
        %v2133 = vld [vmem:[%s2121 + $0x80] sm:$0xff]
        %v2134 = vld [vmem:[%s2121 + $0x90] sm:$0xff]
        %v2135 = vld [vmem:[%s2121 + $0x98] sm:$0xff]
        %v2136 = vld [vmem:[%s2121 + $0xa8] sm:$0xff]
        %v2137 = vld [vmem:[%s2121 + $0xb0] sm:$0xff]
        %v2138 = vld [vmem:[%s2121 + $0xc0] sm:$0xff]
        %v2139 = vld [vmem:[%s2121 + $0xc8] sm:$0xff]
        %v2140 = vld [vmem:[%s2121 + $0xd8] sm:$0xff]
        %v2141 = vld [vmem:[%s2121 + $0xe0] sm:$0xff]
        %v2142 = vld [vmem:[%s2121 + $0xf0] sm:$0xff]
        %v2143 = vld [vmem:[%s2121 + $0xf8] sm:$0xff]
        %v2144 = vld [vmem:[%s2121 + $0x108] sm:$0xff]
        %v2145 = vld [vmem:[%s2121 + $0x110] sm:$0xff]
        %v2146 = vld [vmem:[%s2121 + $0x120] sm:$0xff]
        %v2147 = vld [vmem:[%s2121 + $0x128] sm:$0xff]
        %v2148 = vld [vmem:[%s2121 + $0x138] sm:$0xff]
        %v2149 = vld [vmem:[%s2121 + $0x140] sm:$0xff]
        %v2150 = vld [vmem:[%s2121 + $0x150] sm:$0xff]
        %v2151 = vld [vmem:[%s2121 + $0x158] sm:$0xff]
        %v2152 = vld [vmem:[%s2121 + $0x168] sm:$0xff]
        %v2153 = vld [vmem:[%s2121 + $0x170] sm:$0xff]
        %v2154 = vpack.c.bf16 %v2123, %v2122
        %v2155 = vpack.c.bf16 %v2125, %v2124
        %v2156 = vpack.c.bf16 %v2127, %v2126
        %v2157 = vpack.c.bf16 %v2129, %v2128
        %v2158 = vpack.c.bf16 %v2131, %v2130
        %v2159 = vpack.c.bf16 %v2133, %v2132
        %v2160 = vpack.c.bf16 %v2135, %v2134
        %v2161 = vpack.c.bf16 %v2137, %v2136
        %v2162 = vpack.c.bf16 %v2139, %v2138
        %v2163 = vpack.c.bf16 %v2141, %v2140
        %v2164 = vpack.c.bf16 %v2143, %v2142
        %v2165 = vpack.c.bf16 %v2145, %v2144
        %v2166 = vpack.c.bf16 %v2147, %v2146
        %v2167 = vpack.c.bf16 %v2149, %v2148
        %v2168 = vpack.c.bf16 %v2151, %v2150
        %v2169 = vpack.c.bf16 %v2153, %v2152
        %s2170 = scalar_lea.vmem %s1, 12
        %v2171 = vld [vmem:[%s2170] sm:$0x3]
        %v2173 = vsel %vm278, %v2154, 0
        %v2176 = vsel %vm278, %v2155, 0
        %v2179 = vsel %vm278, %v2156, 0
        %v2182 = vsel %vm278, %v2157, 0
        %v2185 = vsel %vm278, %v2158, 0
        %v2188 = vsel %vm278, %v2159, 0
        %v2191 = vsel %vm278, %v2160, 0
        %v2194 = vsel %vm278, %v2161, 0
        %v2197 = vsel %vm278, %v2162, 0
        %v2200 = vsel %vm278, %v2163, 0
        %v2203 = vsel %vm278, %v2164, 0
        %v2206 = vsel %vm278, %v2165, 0
        %v2209 = vsel %vm278, %v2166, 0
        %v2212 = vsel %vm278, %v2167, 0
        %v2215 = vsel %vm278, %v2168, 0
        %v2218 = vsel %vm278, %v2169, 0
        %v2221 = vsel %vm568, %v2171, 0
        %2223 = vmatprep.subr.bf16.mxu0 0
        %2224 = vmatpush1.bf16.msra.mxu0 0
        %2225 = vmatprep.subr.bf16.mxu0 0
        %2226 = vmatpush1.bf16.msra.mxu0 0
        %2227 = vmatprep.subr.bf16.mxu0 0
        %2228 = vmatpush1.bf16.msra.mxu0 0
        %2229 = vmatprep.subr.bf16.mxu0 0
        %2230 = vmatpush1.bf16.msra.mxu0 0
        %2231 = vmatprep.subr.bf16.mxu0 0
        %2232 = vmatpush1.bf16.msra.mxu0 0
        %2233 = vmatprep.subr.bf16.mxu0 0
        %2234 = vmatpush1.bf16.msra.mxu0 0
        %2235 = vmatprep.subr.bf16.mxu0 0
        %2236 = vmatpush1.bf16.msra.mxu0 0
        %2237 = vmatprep.subr.bf16.mxu0 0
        %2238 = vmatpush1.bf16.msra.mxu0 %v2221
        %2239 = vmatprep.subr.bf16.mxu0 0
        %2240 = vmatpush2.bf16.msra.mxu0 0
        %2241 = vmatprep.subr.bf16.mxu0 0
        %2242 = vmatpush2.bf16.msra.mxu0 0
        %2243 = vmatprep.subr.bf16.mxu0 0
        %2244 = vmatpush2.bf16.msra.mxu0 0
        %2245 = vmatprep.subr.bf16.mxu0 0
        %2246 = vmatpush2.bf16.msra.mxu0 0
        %2247 = vmatprep.subr.bf16.mxu0 0
        %2248 = vmatpush2.bf16.msra.mxu0 0
        %2249 = vmatprep.subr.bf16.mxu0 0
        %2250 = vmatpush2.bf16.msra.mxu0 0
        %2251 = vmatprep.subr.bf16.mxu0 0
        %2252 = vmatpush2.bf16.msra.mxu0 0
        %2253 = vmatprep.subr.bf16.mxu0 0
        %2254 = vmatpush2.bf16.msra.mxu0 0
        %2255 = vmatprep.mubr.bf16.mxu0 0
        %2256 = vmatmul.mubr.bf16.gmra.mxu0 %v2173
        %v2257 = vpop.f32.mrf.mxu0
        %v2258 = vadd.f32 0.0, %v2257
        %v2259 = vpop.f32.mrf.mxu0
        %v2260 = vpop.f32.mrf.mxu0
        %v2261 = vadd.f32 0.0, %v2260
        %v2262 = vpop.f32.mrf.mxu0
        %2263 = vmatprep.mubr.bf16.mxu0 0
        %2264 = vmatmul.mubr.bf16.gmra.mxu0 %v2176
        %v2265 = vpop.f32.mrf.mxu0
        %v2266 = vadd.f32 0.0, %v2265
        %v2267 = vpop.f32.mrf.mxu0
        %v2268 = vpop.f32.mrf.mxu0
        %v2269 = vadd.f32 0.0, %v2268
        %v2270 = vpop.f32.mrf.mxu0
        %2271 = vmatprep.mubr.bf16.mxu0 0
        %2272 = vmatmul.mubr.bf16.gmra.mxu0 %v2179
        %v2273 = vpop.f32.mrf.mxu0
        %v2274 = vadd.f32 0.0, %v2273
        %v2275 = vpop.f32.mrf.mxu0
        %v2276 = vpop.f32.mrf.mxu0
        %v2277 = vadd.f32 0.0, %v2276
        %v2278 = vpop.f32.mrf.mxu0
        %2279 = vmatprep.mubr.bf16.mxu0 0
        %2280 = vmatmul.mubr.bf16.gmra.mxu0 %v2182
        %v2281 = vpop.f32.mrf.mxu0
        %v2282 = vadd.f32 0.0, %v2281
        %v2283 = vpop.f32.mrf.mxu0
        %v2284 = vpop.f32.mrf.mxu0
        %v2285 = vadd.f32 0.0, %v2284
        %v2286 = vpop.f32.mrf.mxu0
        %2287 = vmatprep.mubr.bf16.mxu0 0
        %2288 = vmatmul.mubr.bf16.gmra.mxu0 %v2185
        %v2289 = vpop.f32.mrf.mxu0
        %v2290 = vadd.f32 0.0, %v2289
        %v2291 = vpop.f32.mrf.mxu0
        %v2292 = vpop.f32.mrf.mxu0
        %v2293 = vadd.f32 0.0, %v2292
        %v2294 = vpop.f32.mrf.mxu0
        %2295 = vmatprep.mubr.bf16.mxu0 0
        %2296 = vmatmul.mubr.bf16.gmra.mxu0 %v2188
        %v2297 = vpop.f32.mrf.mxu0
        %v2298 = vadd.f32 0.0, %v2297
        %v2299 = vpop.f32.mrf.mxu0
        %v2300 = vpop.f32.mrf.mxu0
        %v2301 = vadd.f32 0.0, %v2300
        %v2302 = vpop.f32.mrf.mxu0
        %2303 = vmatprep.mubr.bf16.mxu0 0
        %2304 = vmatmul.mubr.bf16.gmra.mxu0 %v2191
        %v2305 = vpop.f32.mrf.mxu0
        %v2306 = vadd.f32 0.0, %v2305
        %v2307 = vpop.f32.mrf.mxu0
        %v2308 = vpop.f32.mrf.mxu0
        %v2309 = vadd.f32 0.0, %v2308
        %v2310 = vpop.f32.mrf.mxu0
        %2311 = vmatprep.mubr.bf16.mxu0 0
        %2312 = vmatmul.mubr.bf16.gmra.mxu0 %v2194
        %v2313 = vpop.f32.mrf.mxu0
        %v2314 = vadd.f32 0.0, %v2313
        %v2315 = vpop.f32.mrf.mxu0
        %v2316 = vpop.f32.mrf.mxu0
        %v2317 = vadd.f32 0.0, %v2316
        %v2318 = vpop.f32.mrf.mxu0
        %2319 = vmatprep.mubr.bf16.mxu0 0
        %2320 = vmatmul.mubr.bf16.gmra.mxu0 %v2197
        %v2321 = vpop.f32.mrf.mxu0
        %v2322 = vadd.f32 0.0, %v2321
        %v2323 = vpop.f32.mrf.mxu0
        %v2324 = vpop.f32.mrf.mxu0
        %v2325 = vadd.f32 0.0, %v2324
        %v2326 = vpop.f32.mrf.mxu0
        %2327 = vmatprep.mubr.bf16.mxu0 0
        %2328 = vmatmul.mubr.bf16.gmra.mxu0 %v2200
        %v2329 = vpop.f32.mrf.mxu0
        %v2330 = vadd.f32 0.0, %v2329
        %v2331 = vpop.f32.mrf.mxu0
        %v2332 = vpop.f32.mrf.mxu0
        %v2333 = vadd.f32 0.0, %v2332
        %v2334 = vpop.f32.mrf.mxu0
        %2335 = vmatprep.mubr.bf16.mxu0 0
        %2336 = vmatmul.mubr.bf16.gmra.mxu0 %v2203
        %v2337 = vpop.f32.mrf.mxu0
        %v2338 = vadd.f32 0.0, %v2337
        %v2339 = vpop.f32.mrf.mxu0
        %v2340 = vpop.f32.mrf.mxu0
        %v2341 = vadd.f32 0.0, %v2340
        %v2342 = vpop.f32.mrf.mxu0
        %2343 = vmatprep.mubr.bf16.mxu0 0
        %2344 = vmatmul.mubr.bf16.gmra.mxu0 %v2206
        %v2345 = vpop.f32.mrf.mxu0
        %v2346 = vadd.f32 0.0, %v2345
        %v2347 = vpop.f32.mrf.mxu0
        %v2348 = vpop.f32.mrf.mxu0
        %v2349 = vadd.f32 0.0, %v2348
        %v2350 = vpop.f32.mrf.mxu0
        %2351 = vmatprep.mubr.bf16.mxu0 0
        %2352 = vmatmul.mubr.bf16.gmra.mxu0 %v2209
        %v2353 = vpop.f32.mrf.mxu0
        %v2354 = vadd.f32 0.0, %v2353
        %v2355 = vpop.f32.mrf.mxu0
        %v2356 = vpop.f32.mrf.mxu0
        %v2357 = vadd.f32 0.0, %v2356
        %v2358 = vpop.f32.mrf.mxu0
        %2359 = vmatprep.mubr.bf16.mxu0 0
        %2360 = vmatmul.mubr.bf16.gmra.mxu0 %v2212
        %v2361 = vpop.f32.mrf.mxu0
        %v2362 = vadd.f32 0.0, %v2361
        %v2363 = vpop.f32.mrf.mxu0
        %v2364 = vpop.f32.mrf.mxu0
        %v2365 = vadd.f32 0.0, %v2364
        %v2366 = vpop.f32.mrf.mxu0
        %2367 = vmatprep.mubr.bf16.mxu0 0
        %2368 = vmatmul.mubr.bf16.gmra.mxu0 %v2215
        %v2369 = vpop.f32.mrf.mxu0
        %v2370 = vadd.f32 0.0, %v2369
        %v2371 = vpop.f32.mrf.mxu0
        %v2372 = vpop.f32.mrf.mxu0
        %v2373 = vadd.f32 0.0, %v2372
        %v2374 = vpop.f32.mrf.mxu0
        %2375 = vmatprep.mubr.bf16.mxu0 0
        %2376 = vmatmul.mubr.bf16.gmra.mxu0 %v2218
        %v2377 = vpop.f32.mrf.mxu0
        %v2378 = vadd.f32 0.0, %v2377
        %v2379 = vpop.f32.mrf.mxu0
        %v2380 = vpop.f32.mrf.mxu0
        %v2381 = vadd.f32 0.0, %v2380
        %v2382 = vpop.f32.mrf.mxu0
        %2383 = vdwg.mxu0
        %v2384 = vadd.f32 %v2089, %v2258
        %v2385 = vadd.f32 %v2090, %v2261
        %v2386 = vadd.f32 %v2091, %v2266
        %v2387 = vadd.f32 %v2092, %v2269
        %v2388 = vadd.f32 %v2093, %v2274
        %v2389 = vadd.f32 %v2094, %v2277
        %v2390 = vadd.f32 %v2095, %v2282
        %v2391 = vadd.f32 %v2096, %v2285
        %v2392 = vadd.f32 %v2097, %v2290
        %v2393 = vadd.f32 %v2098, %v2293
        %v2394 = vadd.f32 %v2099, %v2298
        %v2395 = vadd.f32 %v2100, %v2301
        %v2396 = vadd.f32 %v2101, %v2306
        %v2397 = vadd.f32 %v2102, %v2309
        %v2398 = vadd.f32 %v2103, %v2314
        %v2399 = vadd.f32 %v2104, %v2317
        %v2400 = vadd.f32 %v2105, %v2322
        %v2401 = vadd.f32 %v2106, %v2325
        %v2402 = vadd.f32 %v2107, %v2330
        %v2403 = vadd.f32 %v2108, %v2333
        %v2404 = vadd.f32 %v2109, %v2338
        %v2405 = vadd.f32 %v2110, %v2341
        %v2406 = vadd.f32 %v2111, %v2346
        %v2407 = vadd.f32 %v2112, %v2349
        %v2408 = vadd.f32 %v2113, %v2354
        %v2409 = vadd.f32 %v2114, %v2357
        %v2410 = vadd.f32 %v2115, %v2362
        %v2411 = vadd.f32 %v2116, %v2365
        %v2412 = vadd.f32 %v2117, %v2370
        %v2413 = vadd.f32 %v2118, %v2373
        %v2414 = vadd.f32 %v2119, %v2378
        %v2415 = vadd.f32 %v2120, %v2381
        %v2416 = vld [vmem:[%s2121 + $0x1] sm:$0xff]
        %v2417 = vld [vmem:[%s2121 + $0x9] sm:$0xff]
        %v2418 = vld [vmem:[%s2121 + $0x19] sm:$0xff]
        %v2419 = vld [vmem:[%s2121 + $0x21] sm:$0xff]
        %v2420 = vld [vmem:[%s2121 + $0x31] sm:$0xff]
        %v2421 = vld [vmem:[%s2121 + $0x39] sm:$0xff]
        %v2422 = vld [vmem:[%s2121 + $0x49] sm:$0xff]
        %v2423 = vld [vmem:[%s2121 + $0x51] sm:$0xff]
        %v2424 = vld [vmem:[%s2121 + $0x61] sm:$0xff]
        %v2425 = vld [vmem:[%s2121 + $0x69] sm:$0xff]
        %v2426 = vld [vmem:[%s2121 + $0x79] sm:$0xff]
        %v2427 = vld [vmem:[%s2121 + $0x81] sm:$0xff]
        %v2428 = vld [vmem:[%s2121 + $0x91] sm:$0xff]
        %v2429 = vld [vmem:[%s2121 + $0x99] sm:$0xff]
        %v2430 = vld [vmem:[%s2121 + $0xa9] sm:$0xff]
        %v2431 = vld [vmem:[%s2121 + $0xb1] sm:$0xff]
        %v2432 = vld [vmem:[%s2121 + $0xc1] sm:$0xff]
        %v2433 = vld [vmem:[%s2121 + $0xc9] sm:$0xff]
        %v2434 = vld [vmem:[%s2121 + $0xd9] sm:$0xff]
        %v2435 = vld [vmem:[%s2121 + $0xe1] sm:$0xff]
        %v2436 = vld [vmem:[%s2121 + $0xf1] sm:$0xff]
        %v2437 = vld [vmem:[%s2121 + $0xf9] sm:$0xff]
        %v2438 = vld [vmem:[%s2121 + $0x109] sm:$0xff]
        %v2439 = vld [vmem:[%s2121 + $0x111] sm:$0xff]
        %v2440 = vld [vmem:[%s2121 + $0x121] sm:$0xff]
        %v2441 = vld [vmem:[%s2121 + $0x129] sm:$0xff]
        %v2442 = vld [vmem:[%s2121 + $0x139] sm:$0xff]
        %v2443 = vld [vmem:[%s2121 + $0x141] sm:$0xff]
        %v2444 = vld [vmem:[%s2121 + $0x151] sm:$0xff]
        %v2445 = vld [vmem:[%s2121 + $0x159] sm:$0xff]
        %v2446 = vld [vmem:[%s2121 + $0x169] sm:$0xff]
        %v2447 = vld [vmem:[%s2121 + $0x171] sm:$0xff]
        %v2448 = vpack.c.bf16 %v2417, %v2416
        %v2449 = vpack.c.bf16 %v2419, %v2418
        %v2450 = vpack.c.bf16 %v2421, %v2420
        %v2451 = vpack.c.bf16 %v2423, %v2422
        %v2452 = vpack.c.bf16 %v2425, %v2424
        %v2453 = vpack.c.bf16 %v2427, %v2426
        %v2454 = vpack.c.bf16 %v2429, %v2428
        %v2455 = vpack.c.bf16 %v2431, %v2430
        %v2456 = vpack.c.bf16 %v2433, %v2432
        %v2457 = vpack.c.bf16 %v2435, %v2434
        %v2458 = vpack.c.bf16 %v2437, %v2436
        %v2459 = vpack.c.bf16 %v2439, %v2438
        %v2460 = vpack.c.bf16 %v2441, %v2440
        %v2461 = vpack.c.bf16 %v2443, %v2442
        %v2462 = vpack.c.bf16 %v2445, %v2444
        %v2463 = vpack.c.bf16 %v2447, %v2446
        %s2464 = scalar_lea.vmem %s1, 14
        %v2465 = vld [vmem:[%s2464] sm:$0x3]
        %v2467 = vsel %vm278, %v2448, 0
        %v2470 = vsel %vm278, %v2449, 0
        %v2473 = vsel %vm278, %v2450, 0
        %v2476 = vsel %vm278, %v2451, 0
        %v2479 = vsel %vm278, %v2452, 0
        %v2482 = vsel %vm278, %v2453, 0
        %v2485 = vsel %vm278, %v2454, 0
        %v2488 = vsel %vm278, %v2455, 0
        %v2491 = vsel %vm278, %v2456, 0
        %v2494 = vsel %vm278, %v2457, 0
        %v2497 = vsel %vm278, %v2458, 0
        %v2500 = vsel %vm278, %v2459, 0
        %v2503 = vsel %vm278, %v2460, 0
        %v2506 = vsel %vm278, %v2461, 0
        %v2509 = vsel %vm278, %v2462, 0
        %v2512 = vsel %vm278, %v2463, 0
        %v2515 = vsel %vm568, %v2465, 0
        %2517 = vmatprep.subr.bf16.mxu0 0
        %2518 = vmatpush1.bf16.msra.mxu0 0
        %2519 = vmatprep.subr.bf16.mxu0 0
        %2520 = vmatpush1.bf16.msra.mxu0 0
        %2521 = vmatprep.subr.bf16.mxu0 0
        %2522 = vmatpush1.bf16.msra.mxu0 0
        %2523 = vmatprep.subr.bf16.mxu0 0
        %2524 = vmatpush1.bf16.msra.mxu0 0
        %2525 = vmatprep.subr.bf16.mxu0 0
        %2526 = vmatpush1.bf16.msra.mxu0 0
        %2527 = vmatprep.subr.bf16.mxu0 0
        %2528 = vmatpush1.bf16.msra.mxu0 0
        %2529 = vmatprep.subr.bf16.mxu0 0
        %2530 = vmatpush1.bf16.msra.mxu0 0
        %2531 = vmatprep.subr.bf16.mxu0 0
        %2532 = vmatpush1.bf16.msra.mxu0 %v2515
        %2533 = vmatprep.subr.bf16.mxu0 0
        %2534 = vmatpush2.bf16.msra.mxu0 0
        %2535 = vmatprep.subr.bf16.mxu0 0
        %2536 = vmatpush2.bf16.msra.mxu0 0
        %2537 = vmatprep.subr.bf16.mxu0 0
        %2538 = vmatpush2.bf16.msra.mxu0 0
        %2539 = vmatprep.subr.bf16.mxu0 0
        %2540 = vmatpush2.bf16.msra.mxu0 0
        %2541 = vmatprep.subr.bf16.mxu0 0
        %2542 = vmatpush2.bf16.msra.mxu0 0
        %2543 = vmatprep.subr.bf16.mxu0 0
        %2544 = vmatpush2.bf16.msra.mxu0 0
        %2545 = vmatprep.subr.bf16.mxu0 0
        %2546 = vmatpush2.bf16.msra.mxu0 0
        %2547 = vmatprep.subr.bf16.mxu0 0
        %2548 = vmatpush2.bf16.msra.mxu0 0
        %2549 = vmatprep.mubr.bf16.mxu0 0
        %2550 = vmatmul.mubr.bf16.gmra.mxu0 %v2467
        %v2551 = vpop.f32.mrf.mxu0
        %v2552 = vadd.f32 0.0, %v2551
        %v2553 = vpop.f32.mrf.mxu0
        %v2554 = vpop.f32.mrf.mxu0
        %v2555 = vadd.f32 0.0, %v2554
        %v2556 = vpop.f32.mrf.mxu0
        %2557 = vmatprep.mubr.bf16.mxu0 0
        %2558 = vmatmul.mubr.bf16.gmra.mxu0 %v2470
        %v2559 = vpop.f32.mrf.mxu0
        %v2560 = vadd.f32 0.0, %v2559
        %v2561 = vpop.f32.mrf.mxu0
        %v2562 = vpop.f32.mrf.mxu0
        %v2563 = vadd.f32 0.0, %v2562
        %v2564 = vpop.f32.mrf.mxu0
        %2565 = vmatprep.mubr.bf16.mxu0 0
        %2566 = vmatmul.mubr.bf16.gmra.mxu0 %v2473
        %v2567 = vpop.f32.mrf.mxu0
        %v2568 = vadd.f32 0.0, %v2567
        %v2569 = vpop.f32.mrf.mxu0
        %v2570 = vpop.f32.mrf.mxu0
        %v2571 = vadd.f32 0.0, %v2570
        %v2572 = vpop.f32.mrf.mxu0
        %2573 = vmatprep.mubr.bf16.mxu0 0
        %2574 = vmatmul.mubr.bf16.gmra.mxu0 %v2476
        %v2575 = vpop.f32.mrf.mxu0
        %v2576 = vadd.f32 0.0, %v2575
        %v2577 = vpop.f32.mrf.mxu0
        %v2578 = vpop.f32.mrf.mxu0
        %v2579 = vadd.f32 0.0, %v2578
        %v2580 = vpop.f32.mrf.mxu0
        %2581 = vmatprep.mubr.bf16.mxu0 0
        %2582 = vmatmul.mubr.bf16.gmra.mxu0 %v2479
        %v2583 = vpop.f32.mrf.mxu0
        %v2584 = vadd.f32 0.0, %v2583
        %v2585 = vpop.f32.mrf.mxu0
        %v2586 = vpop.f32.mrf.mxu0
        %v2587 = vadd.f32 0.0, %v2586
        %v2588 = vpop.f32.mrf.mxu0
        %2589 = vmatprep.mubr.bf16.mxu0 0
        %2590 = vmatmul.mubr.bf16.gmra.mxu0 %v2482
        %v2591 = vpop.f32.mrf.mxu0
        %v2592 = vadd.f32 0.0, %v2591
        %v2593 = vpop.f32.mrf.mxu0
        %v2594 = vpop.f32.mrf.mxu0
        %v2595 = vadd.f32 0.0, %v2594
        %v2596 = vpop.f32.mrf.mxu0
        %2597 = vmatprep.mubr.bf16.mxu0 0
        %2598 = vmatmul.mubr.bf16.gmra.mxu0 %v2485
        %v2599 = vpop.f32.mrf.mxu0
        %v2600 = vadd.f32 0.0, %v2599
        %v2601 = vpop.f32.mrf.mxu0
        %v2602 = vpop.f32.mrf.mxu0
        %v2603 = vadd.f32 0.0, %v2602
        %v2604 = vpop.f32.mrf.mxu0
        %2605 = vmatprep.mubr.bf16.mxu0 0
        %2606 = vmatmul.mubr.bf16.gmra.mxu0 %v2488
        %v2607 = vpop.f32.mrf.mxu0
        %v2608 = vadd.f32 0.0, %v2607
        %v2609 = vpop.f32.mrf.mxu0
        %v2610 = vpop.f32.mrf.mxu0
        %v2611 = vadd.f32 0.0, %v2610
        %v2612 = vpop.f32.mrf.mxu0
        %2613 = vmatprep.mubr.bf16.mxu0 0
        %2614 = vmatmul.mubr.bf16.gmra.mxu0 %v2491
        %v2615 = vpop.f32.mrf.mxu0
        %v2616 = vadd.f32 0.0, %v2615
        %v2617 = vpop.f32.mrf.mxu0
        %v2618 = vpop.f32.mrf.mxu0
        %v2619 = vadd.f32 0.0, %v2618
        %v2620 = vpop.f32.mrf.mxu0
        %2621 = vmatprep.mubr.bf16.mxu0 0
        %2622 = vmatmul.mubr.bf16.gmra.mxu0 %v2494
        %v2623 = vpop.f32.mrf.mxu0
        %v2624 = vadd.f32 0.0, %v2623
        %v2625 = vpop.f32.mrf.mxu0
        %v2626 = vpop.f32.mrf.mxu0
        %v2627 = vadd.f32 0.0, %v2626
        %v2628 = vpop.f32.mrf.mxu0
        %2629 = vmatprep.mubr.bf16.mxu0 0
        %2630 = vmatmul.mubr.bf16.gmra.mxu0 %v2497
        %v2631 = vpop.f32.mrf.mxu0
        %v2632 = vadd.f32 0.0, %v2631
        %v2633 = vpop.f32.mrf.mxu0
        %v2634 = vpop.f32.mrf.mxu0
        %v2635 = vadd.f32 0.0, %v2634
        %v2636 = vpop.f32.mrf.mxu0
        %2637 = vmatprep.mubr.bf16.mxu0 0
        %2638 = vmatmul.mubr.bf16.gmra.mxu0 %v2500
        %v2639 = vpop.f32.mrf.mxu0
        %v2640 = vadd.f32 0.0, %v2639
        %v2641 = vpop.f32.mrf.mxu0
        %v2642 = vpop.f32.mrf.mxu0
        %v2643 = vadd.f32 0.0, %v2642
        %v2644 = vpop.f32.mrf.mxu0
        %2645 = vmatprep.mubr.bf16.mxu0 0
        %2646 = vmatmul.mubr.bf16.gmra.mxu0 %v2503
        %v2647 = vpop.f32.mrf.mxu0
        %v2648 = vadd.f32 0.0, %v2647
        %v2649 = vpop.f32.mrf.mxu0
        %v2650 = vpop.f32.mrf.mxu0
        %v2651 = vadd.f32 0.0, %v2650
        %v2652 = vpop.f32.mrf.mxu0
        %2653 = vmatprep.mubr.bf16.mxu0 0
        %2654 = vmatmul.mubr.bf16.gmra.mxu0 %v2506
        %v2655 = vpop.f32.mrf.mxu0
        %v2656 = vadd.f32 0.0, %v2655
        %v2657 = vpop.f32.mrf.mxu0
        %v2658 = vpop.f32.mrf.mxu0
        %v2659 = vadd.f32 0.0, %v2658
        %v2660 = vpop.f32.mrf.mxu0
        %2661 = vmatprep.mubr.bf16.mxu0 0
        %2662 = vmatmul.mubr.bf16.gmra.mxu0 %v2509
        %v2663 = vpop.f32.mrf.mxu0
        %v2664 = vadd.f32 0.0, %v2663
        %v2665 = vpop.f32.mrf.mxu0
        %v2666 = vpop.f32.mrf.mxu0
        %v2667 = vadd.f32 0.0, %v2666
        %v2668 = vpop.f32.mrf.mxu0
        %2669 = vmatprep.mubr.bf16.mxu0 0
        %2670 = vmatmul.mubr.bf16.gmra.mxu0 %v2512
        %v2671 = vpop.f32.mrf.mxu0
        %v2672 = vadd.f32 0.0, %v2671
        %v2673 = vpop.f32.mrf.mxu0
        %v2674 = vpop.f32.mrf.mxu0
        %v2675 = vadd.f32 0.0, %v2674
        %v2676 = vpop.f32.mrf.mxu0
        %2677 = vdwg.mxu0
        %v2678 = vadd.f32 %v2384, %v2552
        %v2679 = vadd.f32 %v2385, %v2555
        %v2680 = vadd.f32 %v2386, %v2560
        %v2681 = vadd.f32 %v2387, %v2563
        %v2682 = vadd.f32 %v2388, %v2568
        %v2683 = vadd.f32 %v2389, %v2571
        %v2684 = vadd.f32 %v2390, %v2576
        %v2685 = vadd.f32 %v2391, %v2579
        %v2686 = vadd.f32 %v2392, %v2584
        %v2687 = vadd.f32 %v2393, %v2587
        %v2688 = vadd.f32 %v2394, %v2592
        %v2689 = vadd.f32 %v2395, %v2595
        %v2690 = vadd.f32 %v2396, %v2600
        %v2691 = vadd.f32 %v2397, %v2603
        %v2692 = vadd.f32 %v2398, %v2608
        %v2693 = vadd.f32 %v2399, %v2611
        %v2694 = vadd.f32 %v2400, %v2616
        %v2695 = vadd.f32 %v2401, %v2619
        %v2696 = vadd.f32 %v2402, %v2624
        %v2697 = vadd.f32 %v2403, %v2627
        %v2698 = vadd.f32 %v2404, %v2632
        %v2699 = vadd.f32 %v2405, %v2635
        %v2700 = vadd.f32 %v2406, %v2640
        %v2701 = vadd.f32 %v2407, %v2643
        %v2702 = vadd.f32 %v2408, %v2648
        %v2703 = vadd.f32 %v2409, %v2651
        %v2704 = vadd.f32 %v2410, %v2656
        %v2705 = vadd.f32 %v2411, %v2659
        %v2706 = vadd.f32 %v2412, %v2664
        %v2707 = vadd.f32 %v2413, %v2667
        %v2708 = vadd.f32 %v2414, %v2672
        %v2709 = vadd.f32 %v2415, %v2675
        %v2710 = vld [vmem:[%s2121 + $0x2] sm:$0xff]
        %v2711 = vld [vmem:[%s2121 + $0xa] sm:$0xff]
        %v2712 = vld [vmem:[%s2121 + $0x1a] sm:$0xff]
        %v2713 = vld [vmem:[%s2121 + $0x22] sm:$0xff]
        %v2714 = vld [vmem:[%s2121 + $0x32] sm:$0xff]
        %v2715 = vld [vmem:[%s2121 + $0x3a] sm:$0xff]
        %v2716 = vld [vmem:[%s2121 + $0x4a] sm:$0xff]
        %v2717 = vld [vmem:[%s2121 + $0x52] sm:$0xff]
        %v2718 = vld [vmem:[%s2121 + $0x62] sm:$0xff]
        %v2719 = vld [vmem:[%s2121 + $0x6a] sm:$0xff]
        %v2720 = vld [vmem:[%s2121 + $0x7a] sm:$0xff]
        %v2721 = vld [vmem:[%s2121 + $0x82] sm:$0xff]
        %v2722 = vld [vmem:[%s2121 + $0x92] sm:$0xff]
        %v2723 = vld [vmem:[%s2121 + $0x9a] sm:$0xff]
        %v2724 = vld [vmem:[%s2121 + $0xaa] sm:$0xff]
        %v2725 = vld [vmem:[%s2121 + $0xb2] sm:$0xff]
        %v2726 = vld [vmem:[%s2121 + $0xc2] sm:$0xff]
        %v2727 = vld [vmem:[%s2121 + $0xca] sm:$0xff]
        %v2728 = vld [vmem:[%s2121 + $0xda] sm:$0xff]
        %v2729 = vld [vmem:[%s2121 + $0xe2] sm:$0xff]
        %v2730 = vld [vmem:[%s2121 + $0xf2] sm:$0xff]
        %v2731 = vld [vmem:[%s2121 + $0xfa] sm:$0xff]
        %v2732 = vld [vmem:[%s2121 + $0x10a] sm:$0xff]
        %v2733 = vld [vmem:[%s2121 + $0x112] sm:$0xff]
        %v2734 = vld [vmem:[%s2121 + $0x122] sm:$0xff]
        %v2735 = vld [vmem:[%s2121 + $0x12a] sm:$0xff]
        %v2736 = vld [vmem:[%s2121 + $0x13a] sm:$0xff]
        %v2737 = vld [vmem:[%s2121 + $0x142] sm:$0xff]
        %v2738 = vld [vmem:[%s2121 + $0x152] sm:$0xff]
        %v2739 = vld [vmem:[%s2121 + $0x15a] sm:$0xff]
        %v2740 = vld [vmem:[%s2121 + $0x16a] sm:$0xff]
        %v2741 = vld [vmem:[%s2121 + $0x172] sm:$0xff]
        %v2742 = vpack.c.bf16 %v2711, %v2710
        %v2743 = vpack.c.bf16 %v2713, %v2712
        %v2744 = vpack.c.bf16 %v2715, %v2714
        %v2745 = vpack.c.bf16 %v2717, %v2716
        %v2746 = vpack.c.bf16 %v2719, %v2718
        %v2747 = vpack.c.bf16 %v2721, %v2720
        %v2748 = vpack.c.bf16 %v2723, %v2722
        %v2749 = vpack.c.bf16 %v2725, %v2724
        %v2750 = vpack.c.bf16 %v2727, %v2726
        %v2751 = vpack.c.bf16 %v2729, %v2728
        %v2752 = vpack.c.bf16 %v2731, %v2730
        %v2753 = vpack.c.bf16 %v2733, %v2732
        %v2754 = vpack.c.bf16 %v2735, %v2734
        %v2755 = vpack.c.bf16 %v2737, %v2736
        %v2756 = vpack.c.bf16 %v2739, %v2738
        %v2757 = vpack.c.bf16 %v2741, %v2740
        %s2758 = scalar_lea.vmem %s1, 16
        %v2759 = vld [vmem:[%s2758] sm:$0x3]
        %v2761 = vsel %vm278, %v2742, 0
        %v2764 = vsel %vm278, %v2743, 0
        %v2767 = vsel %vm278, %v2744, 0
        %v2770 = vsel %vm278, %v2745, 0
        %v2773 = vsel %vm278, %v2746, 0
        %v2776 = vsel %vm278, %v2747, 0
        %v2779 = vsel %vm278, %v2748, 0
        %v2782 = vsel %vm278, %v2749, 0
        %v2785 = vsel %vm278, %v2750, 0
        %v2788 = vsel %vm278, %v2751, 0
        %v2791 = vsel %vm278, %v2752, 0
        %v2794 = vsel %vm278, %v2753, 0
        %v2797 = vsel %vm278, %v2754, 0
        %v2800 = vsel %vm278, %v2755, 0
        %v2803 = vsel %vm278, %v2756, 0
        %v2806 = vsel %vm278, %v2757, 0
        %v2809 = vsel %vm568, %v2759, 0
        %2811 = vmatprep.subr.bf16.mxu0 0
        %2812 = vmatpush1.bf16.msra.mxu0 0
        %2813 = vmatprep.subr.bf16.mxu0 0
        %2814 = vmatpush1.bf16.msra.mxu0 0
        %2815 = vmatprep.subr.bf16.mxu0 0
        %2816 = vmatpush1.bf16.msra.mxu0 0
        %2817 = vmatprep.subr.bf16.mxu0 0
        %2818 = vmatpush1.bf16.msra.mxu0 0
        %2819 = vmatprep.subr.bf16.mxu0 0
        %2820 = vmatpush1.bf16.msra.mxu0 0
        %2821 = vmatprep.subr.bf16.mxu0 0
        %2822 = vmatpush1.bf16.msra.mxu0 0
        %2823 = vmatprep.subr.bf16.mxu0 0
        %2824 = vmatpush1.bf16.msra.mxu0 0
        %2825 = vmatprep.subr.bf16.mxu0 0
        %2826 = vmatpush1.bf16.msra.mxu0 %v2809
        %2827 = vmatprep.subr.bf16.mxu0 0
        %2828 = vmatpush2.bf16.msra.mxu0 0
        %2829 = vmatprep.subr.bf16.mxu0 0
        %2830 = vmatpush2.bf16.msra.mxu0 0
        %2831 = vmatprep.subr.bf16.mxu0 0
        %2832 = vmatpush2.bf16.msra.mxu0 0
        %2833 = vmatprep.subr.bf16.mxu0 0
        %2834 = vmatpush2.bf16.msra.mxu0 0
        %2835 = vmatprep.subr.bf16.mxu0 0
        %2836 = vmatpush2.bf16.msra.mxu0 0
        %2837 = vmatprep.subr.bf16.mxu0 0
        %2838 = vmatpush2.bf16.msra.mxu0 0
        %2839 = vmatprep.subr.bf16.mxu0 0
        %2840 = vmatpush2.bf16.msra.mxu0 0
        %2841 = vmatprep.subr.bf16.mxu0 0
        %2842 = vmatpush2.bf16.msra.mxu0 0
        %2843 = vmatprep.mubr.bf16.mxu0 0
        %2844 = vmatmul.mubr.bf16.gmra.mxu0 %v2761
        %v2845 = vpop.f32.mrf.mxu0
        %v2846 = vadd.f32 0.0, %v2845
        %v2847 = vpop.f32.mrf.mxu0
        %v2848 = vpop.f32.mrf.mxu0
        %v2849 = vadd.f32 0.0, %v2848
        %v2850 = vpop.f32.mrf.mxu0
        %2851 = vmatprep.mubr.bf16.mxu0 0
        %2852 = vmatmul.mubr.bf16.gmra.mxu0 %v2764
        %v2853 = vpop.f32.mrf.mxu0
        %v2854 = vadd.f32 0.0, %v2853
        %v2855 = vpop.f32.mrf.mxu0
        %v2856 = vpop.f32.mrf.mxu0
        %v2857 = vadd.f32 0.0, %v2856
        %v2858 = vpop.f32.mrf.mxu0
        %2859 = vmatprep.mubr.bf16.mxu0 0
        %2860 = vmatmul.mubr.bf16.gmra.mxu0 %v2767
        %v2861 = vpop.f32.mrf.mxu0
        %v2862 = vadd.f32 0.0, %v2861
        %v2863 = vpop.f32.mrf.mxu0
        %v2864 = vpop.f32.mrf.mxu0
        %v2865 = vadd.f32 0.0, %v2864
        %v2866 = vpop.f32.mrf.mxu0
        %2867 = vmatprep.mubr.bf16.mxu0 0
        %2868 = vmatmul.mubr.bf16.gmra.mxu0 %v2770
        %v2869 = vpop.f32.mrf.mxu0
        %v2870 = vadd.f32 0.0, %v2869
        %v2871 = vpop.f32.mrf.mxu0
        %v2872 = vpop.f32.mrf.mxu0
        %v2873 = vadd.f32 0.0, %v2872
        %v2874 = vpop.f32.mrf.mxu0
        %2875 = vmatprep.mubr.bf16.mxu0 0
        %2876 = vmatmul.mubr.bf16.gmra.mxu0 %v2773
        %v2877 = vpop.f32.mrf.mxu0
        %v2878 = vadd.f32 0.0, %v2877
        %v2879 = vpop.f32.mrf.mxu0
        %v2880 = vpop.f32.mrf.mxu0
        %v2881 = vadd.f32 0.0, %v2880
        %v2882 = vpop.f32.mrf.mxu0
        %2883 = vmatprep.mubr.bf16.mxu0 0
        %2884 = vmatmul.mubr.bf16.gmra.mxu0 %v2776
        %v2885 = vpop.f32.mrf.mxu0
        %v2886 = vadd.f32 0.0, %v2885
        %v2887 = vpop.f32.mrf.mxu0
        %v2888 = vpop.f32.mrf.mxu0
        %v2889 = vadd.f32 0.0, %v2888
        %v2890 = vpop.f32.mrf.mxu0
        %2891 = vmatprep.mubr.bf16.mxu0 0
        %2892 = vmatmul.mubr.bf16.gmra.mxu0 %v2779
        %v2893 = vpop.f32.mrf.mxu0
        %v2894 = vadd.f32 0.0, %v2893
        %v2895 = vpop.f32.mrf.mxu0
        %v2896 = vpop.f32.mrf.mxu0
        %v2897 = vadd.f32 0.0, %v2896
        %v2898 = vpop.f32.mrf.mxu0
        %2899 = vmatprep.mubr.bf16.mxu0 0
        %2900 = vmatmul.mubr.bf16.gmra.mxu0 %v2782
        %v2901 = vpop.f32.mrf.mxu0
        %v2902 = vadd.f32 0.0, %v2901
        %v2903 = vpop.f32.mrf.mxu0
        %v2904 = vpop.f32.mrf.mxu0
        %v2905 = vadd.f32 0.0, %v2904
        %v2906 = vpop.f32.mrf.mxu0
        %2907 = vmatprep.mubr.bf16.mxu0 0
        %2908 = vmatmul.mubr.bf16.gmra.mxu0 %v2785
        %v2909 = vpop.f32.mrf.mxu0
        %v2910 = vadd.f32 0.0, %v2909
        %v2911 = vpop.f32.mrf.mxu0
        %v2912 = vpop.f32.mrf.mxu0
        %v2913 = vadd.f32 0.0, %v2912
        %v2914 = vpop.f32.mrf.mxu0
        %2915 = vmatprep.mubr.bf16.mxu0 0
        %2916 = vmatmul.mubr.bf16.gmra.mxu0 %v2788
        %v2917 = vpop.f32.mrf.mxu0
        %v2918 = vadd.f32 0.0, %v2917
        %v2919 = vpop.f32.mrf.mxu0
        %v2920 = vpop.f32.mrf.mxu0
        %v2921 = vadd.f32 0.0, %v2920
        %v2922 = vpop.f32.mrf.mxu0
        %2923 = vmatprep.mubr.bf16.mxu0 0
        %2924 = vmatmul.mubr.bf16.gmra.mxu0 %v2791
        %v2925 = vpop.f32.mrf.mxu0
        %v2926 = vadd.f32 0.0, %v2925
        %v2927 = vpop.f32.mrf.mxu0
        %v2928 = vpop.f32.mrf.mxu0
        %v2929 = vadd.f32 0.0, %v2928
        %v2930 = vpop.f32.mrf.mxu0
        %2931 = vmatprep.mubr.bf16.mxu0 0
        %2932 = vmatmul.mubr.bf16.gmra.mxu0 %v2794
        %v2933 = vpop.f32.mrf.mxu0
        %v2934 = vadd.f32 0.0, %v2933
        %v2935 = vpop.f32.mrf.mxu0
        %v2936 = vpop.f32.mrf.mxu0
        %v2937 = vadd.f32 0.0, %v2936
        %v2938 = vpop.f32.mrf.mxu0
        %2939 = vmatprep.mubr.bf16.mxu0 0
        %2940 = vmatmul.mubr.bf16.gmra.mxu0 %v2797
        %v2941 = vpop.f32.mrf.mxu0
        %v2942 = vadd.f32 0.0, %v2941
        %v2943 = vpop.f32.mrf.mxu0
        %v2944 = vpop.f32.mrf.mxu0
        %v2945 = vadd.f32 0.0, %v2944
        %v2946 = vpop.f32.mrf.mxu0
        %2947 = vmatprep.mubr.bf16.mxu0 0
        %2948 = vmatmul.mubr.bf16.gmra.mxu0 %v2800
        %v2949 = vpop.f32.mrf.mxu0
        %v2950 = vadd.f32 0.0, %v2949
        %v2951 = vpop.f32.mrf.mxu0
        %v2952 = vpop.f32.mrf.mxu0
        %v2953 = vadd.f32 0.0, %v2952
        %v2954 = vpop.f32.mrf.mxu0
        %2955 = vmatprep.mubr.bf16.mxu0 0
        %2956 = vmatmul.mubr.bf16.gmra.mxu0 %v2803
        %v2957 = vpop.f32.mrf.mxu0
        %v2958 = vadd.f32 0.0, %v2957
        %v2959 = vpop.f32.mrf.mxu0
        %v2960 = vpop.f32.mrf.mxu0
        %v2961 = vadd.f32 0.0, %v2960
        %v2962 = vpop.f32.mrf.mxu0
        %2963 = vmatprep.mubr.bf16.mxu0 0
        %2964 = vmatmul.mubr.bf16.gmra.mxu0 %v2806
        %v2965 = vpop.f32.mrf.mxu0
        %v2966 = vadd.f32 0.0, %v2965
        %v2967 = vpop.f32.mrf.mxu0
        %v2968 = vpop.f32.mrf.mxu0
        %v2969 = vadd.f32 0.0, %v2968
        %v2970 = vpop.f32.mrf.mxu0
        %2971 = vdwg.mxu0
        %v2972 = vadd.f32 %v2678, %v2846
        %v2973 = vadd.f32 %v2679, %v2849
        %v2974 = vadd.f32 %v2680, %v2854
        %v2975 = vadd.f32 %v2681, %v2857
        %v2976 = vadd.f32 %v2682, %v2862
        %v2977 = vadd.f32 %v2683, %v2865
        %v2978 = vadd.f32 %v2684, %v2870
        %v2979 = vadd.f32 %v2685, %v2873
        %v2980 = vadd.f32 %v2686, %v2878
        %v2981 = vadd.f32 %v2687, %v2881
        %v2982 = vadd.f32 %v2688, %v2886
        %v2983 = vadd.f32 %v2689, %v2889
        %v2984 = vadd.f32 %v2690, %v2894
        %v2985 = vadd.f32 %v2691, %v2897
        %v2986 = vadd.f32 %v2692, %v2902
        %v2987 = vadd.f32 %v2693, %v2905
        %v2988 = vadd.f32 %v2694, %v2910
        %v2989 = vadd.f32 %v2695, %v2913
        %v2990 = vadd.f32 %v2696, %v2918
        %v2991 = vadd.f32 %v2697, %v2921
        %v2992 = vadd.f32 %v2698, %v2926
        %v2993 = vadd.f32 %v2699, %v2929
        %v2994 = vadd.f32 %v2700, %v2934
        %v2995 = vadd.f32 %v2701, %v2937
        %v2996 = vadd.f32 %v2702, %v2942
        %v2997 = vadd.f32 %v2703, %v2945
        %v2998 = vadd.f32 %v2704, %v2950
        %v2999 = vadd.f32 %v2705, %v2953
        %v3000 = vadd.f32 %v2706, %v2958
        %v3001 = vadd.f32 %v2707, %v2961
        %v3002 = vadd.f32 %v2708, %v2966
        %v3003 = vadd.f32 %v2709, %v2969
        %v3004 = vld [vmem:[%s2] sm:$0x1]
        %v3006 = vlaneseq
        %v3007 = vshrl.u32 %v3006, 7
        %v3008 = vsub.s32 0, %v3007
        %v3009 = vrot.slane %v3004, %v3008
        %v3011 = vadd.f32 %v2972, %v3009
        %v3012 = vadd.f32 %v2973, %v3009
        %v3013 = vadd.f32 %v2974, %v3009
        %v3014 = vadd.f32 %v2975, %v3009
        %v3015 = vadd.f32 %v2976, %v3009
        %v3016 = vadd.f32 %v2977, %v3009
        %v3017 = vadd.f32 %v2978, %v3009
        %v3018 = vadd.f32 %v2979, %v3009
        %v3019 = vadd.f32 %v2980, %v3009
        %v3020 = vadd.f32 %v2981, %v3009
        %v3021 = vadd.f32 %v2982, %v3009
        %v3022 = vadd.f32 %v2983, %v3009
        %v3023 = vadd.f32 %v2984, %v3009
        %v3024 = vadd.f32 %v2985, %v3009
        %v3025 = vadd.f32 %v2986, %v3009
        %v3026 = vadd.f32 %v2987, %v3009
        %v3027 = vadd.f32 %v2988, %v3009
        %v3028 = vadd.f32 %v2989, %v3009
        %v3029 = vadd.f32 %v2990, %v3009
        %v3030 = vadd.f32 %v2991, %v3009
        %v3031 = vadd.f32 %v2992, %v3009
        %v3032 = vadd.f32 %v2993, %v3009
        %v3033 = vadd.f32 %v2994, %v3009
        %v3034 = vadd.f32 %v2995, %v3009
        %v3035 = vadd.f32 %v2996, %v3009
        %v3036 = vadd.f32 %v2997, %v3009
        %v3037 = vadd.f32 %v2998, %v3009
        %v3038 = vadd.f32 %v2999, %v3009
        %v3039 = vadd.f32 %v3000, %v3009
        %v3040 = vadd.f32 %v3001, %v3009
        %v3041 = vadd.f32 %v3002, %v3009
        %v3042 = vadd.f32 %v3003, %v3009
        %v3043 = vmax.f32 %v3011, 0.0
        %v3044 = vmax.f32 %v3012, 0.0
        %v3045 = vmax.f32 %v3013, 0.0
        %v3046 = vmax.f32 %v3014, 0.0
        %v3047 = vmax.f32 %v3015, 0.0
        %v3048 = vmax.f32 %v3016, 0.0
        %v3049 = vmax.f32 %v3017, 0.0
        %v3050 = vmax.f32 %v3018, 0.0
        %v3051 = vmax.f32 %v3019, 0.0
        %v3052 = vmax.f32 %v3020, 0.0
        %v3053 = vmax.f32 %v3021, 0.0
        %v3054 = vmax.f32 %v3022, 0.0
        %v3055 = vmax.f32 %v3023, 0.0
        %v3056 = vmax.f32 %v3024, 0.0
        %v3057 = vmax.f32 %v3025, 0.0
        %v3058 = vmax.f32 %v3026, 0.0
        %v3059 = vmax.f32 %v3027, 0.0
        %v3060 = vmax.f32 %v3028, 0.0
        %v3061 = vmax.f32 %v3029, 0.0
        %v3062 = vmax.f32 %v3030, 0.0
        %v3063 = vmax.f32 %v3031, 0.0
        %v3064 = vmax.f32 %v3032, 0.0
        %v3065 = vmax.f32 %v3033, 0.0
        %v3066 = vmax.f32 %v3034, 0.0
        %v3067 = vmax.f32 %v3035, 0.0
        %v3068 = vmax.f32 %v3036, 0.0
        %v3069 = vmax.f32 %v3037, 0.0
        %v3070 = vmax.f32 %v3038, 0.0
        %v3071 = vmax.f32 %v3039, 0.0
        %v3072 = vmax.f32 %v3040, 0.0
        %v3073 = vmax.f32 %v3041, 0.0
        %v3074 = vmax.f32 %v3042, 0.0
        %3075 = vst.msk [vmem:[%s388 + $0x1] sm:$0xff] %vm278, %v3043
        %3076 = vst.msk [vmem:[%s388 + $0x9] sm:$0xff] %vm278, %v3044
        %3077 = vst.msk [vmem:[%s388 + $0x19] sm:$0xff] %vm278, %v3045
        %3078 = vst.msk [vmem:[%s388 + $0x21] sm:$0xff] %vm278, %v3046
        %3079 = vst.msk [vmem:[%s388 + $0x31] sm:$0xff] %vm278, %v3047
        %3080 = vst.msk [vmem:[%s388 + $0x39] sm:$0xff] %vm278, %v3048
        %3081 = vst.msk [vmem:[%s388 + $0x49] sm:$0xff] %vm278, %v3049
        %3082 = vst.msk [vmem:[%s388 + $0x51] sm:$0xff] %vm278, %v3050
        %3083 = vst.msk [vmem:[%s388 + $0x61] sm:$0xff] %vm278, %v3051
        %3084 = vst.msk [vmem:[%s388 + $0x69] sm:$0xff] %vm278, %v3052
        %3085 = vst.msk [vmem:[%s388 + $0x79] sm:$0xff] %vm278, %v3053
        %3086 = vst.msk [vmem:[%s388 + $0x81] sm:$0xff] %vm278, %v3054
        %3087 = vst.msk [vmem:[%s388 + $0x91] sm:$0xff] %vm278, %v3055
        %3088 = vst.msk [vmem:[%s388 + $0x99] sm:$0xff] %vm278, %v3056
        %3089 = vst.msk [vmem:[%s388 + $0xa9] sm:$0xff] %vm278, %v3057
        %3090 = vst.msk [vmem:[%s388 + $0xb1] sm:$0xff] %vm278, %v3058
        %3091 = vst.msk [vmem:[%s388 + $0xc1] sm:$0xff] %vm278, %v3059
        %3092 = vst.msk [vmem:[%s388 + $0xc9] sm:$0xff] %vm278, %v3060
        %3093 = vst.msk [vmem:[%s388 + $0xd9] sm:$0xff] %vm278, %v3061
        %3094 = vst.msk [vmem:[%s388 + $0xe1] sm:$0xff] %vm278, %v3062
        %3095 = vst.msk [vmem:[%s388 + $0xf1] sm:$0xff] %vm278, %v3063
        %3096 = vst.msk [vmem:[%s388 + $0xf9] sm:$0xff] %vm278, %v3064
        %3097 = vst.msk [vmem:[%s388 + $0x109] sm:$0xff] %vm278, %v3065
        %3098 = vst.msk [vmem:[%s388 + $0x111] sm:$0xff] %vm278, %v3066
        %3099 = vst.msk [vmem:[%s388 + $0x121] sm:$0xff] %vm278, %v3067
        %3100 = vst.msk [vmem:[%s388 + $0x129] sm:$0xff] %vm278, %v3068
        %3101 = vst.msk [vmem:[%s388 + $0x139] sm:$0xff] %vm278, %v3069
        %3102 = vst.msk [vmem:[%s388 + $0x141] sm:$0xff] %vm278, %v3070
        %3103 = vst.msk [vmem:[%s388 + $0x151] sm:$0xff] %vm278, %v3071
        %3104 = vst.msk [vmem:[%s388 + $0x159] sm:$0xff] %vm278, %v3072
        %3105 = vst.msk [vmem:[%s388 + $0x169] sm:$0xff] %vm278, %v3073
        %3106 = vst.msk [vmem:[%s388 + $0x171] sm:$0xff] %vm278, %v3074
        %v3107 = vld [vmem:[#allocation2] sm:$0xff]
        %v3108 = vld [vmem:[#allocation2 + $0x8] sm:$0xff]
        %v3109 = vld [vmem:[#allocation2 + $0x18] sm:$0xff]
        %v3110 = vld [vmem:[#allocation2 + $0x20] sm:$0xff]
        %v3111 = vld [vmem:[#allocation2 + $0x30] sm:$0xff]
        %v3112 = vld [vmem:[#allocation2 + $0x38] sm:$0xff]
        %v3113 = vld [vmem:[#allocation2 + $0x48] sm:$0xff]
        %v3114 = vld [vmem:[#allocation2 + $0x50] sm:$0xff]
        %v3115 = vld [vmem:[#allocation2 + $0x60] sm:$0xff]
        %v3116 = vld [vmem:[#allocation2 + $0x68] sm:$0xff]
        %v3117 = vld [vmem:[#allocation2 + $0x78] sm:$0xff]
        %v3118 = vld [vmem:[#allocation2 + $0x80] sm:$0xff]
        %v3119 = vld [vmem:[#allocation2 + $0x90] sm:$0xff]
        %v3120 = vld [vmem:[#allocation2 + $0x98] sm:$0xff]
        %v3121 = vld [vmem:[#allocation2 + $0xa8] sm:$0xff]
        %v3122 = vld [vmem:[#allocation2 + $0xb0] sm:$0xff]
        %v3123 = vld [vmem:[#allocation2 + $0xc0] sm:$0xff]
        %v3124 = vld [vmem:[#allocation2 + $0xc8] sm:$0xff]
        %v3125 = vld [vmem:[#allocation2 + $0xd8] sm:$0xff]
        %v3126 = vld [vmem:[#allocation2 + $0xe0] sm:$0xff]
        %v3127 = vld [vmem:[#allocation2 + $0xf0] sm:$0xff]
        %v3128 = vld [vmem:[#allocation2 + $0xf8] sm:$0xff]
        %v3129 = vld [vmem:[#allocation2 + $0x108] sm:$0xff]
        %v3130 = vld [vmem:[#allocation2 + $0x110] sm:$0xff]
        %v3131 = vld [vmem:[#allocation2 + $0x120] sm:$0xff]
        %v3132 = vld [vmem:[#allocation2 + $0x128] sm:$0xff]
        %v3133 = vld [vmem:[#allocation2 + $0x138] sm:$0xff]
        %v3134 = vld [vmem:[#allocation2 + $0x140] sm:$0xff]
        %v3135 = vld [vmem:[#allocation2 + $0x150] sm:$0xff]
        %v3136 = vld [vmem:[#allocation2 + $0x158] sm:$0xff]
        %v3137 = vld [vmem:[#allocation2 + $0x168] sm:$0xff]
        %v3138 = vld [vmem:[#allocation2 + $0x170] sm:$0xff]
        %v3139 = vpack.c.bf16 %v3108, %v3107
        %v3140 = vpack.c.bf16 %v3110, %v3109
        %v3141 = vpack.c.bf16 %v3112, %v3111
        %v3142 = vpack.c.bf16 %v3114, %v3113
        %v3143 = vpack.c.bf16 %v3116, %v3115
        %v3144 = vpack.c.bf16 %v3118, %v3117
        %v3145 = vpack.c.bf16 %v3120, %v3119
        %v3146 = vpack.c.bf16 %v3122, %v3121
        %v3147 = vpack.c.bf16 %v3124, %v3123
        %v3148 = vpack.c.bf16 %v3126, %v3125
        %v3149 = vpack.c.bf16 %v3128, %v3127
        %v3150 = vpack.c.bf16 %v3130, %v3129
        %v3151 = vpack.c.bf16 %v3132, %v3131
        %v3152 = vpack.c.bf16 %v3134, %v3133
        %v3153 = vpack.c.bf16 %v3136, %v3135
        %v3154 = vpack.c.bf16 %v3138, %v3137
        %v3155 = vld [vmem:[%s3] sm:$0x3]
        %v3156 = vld [vmem:[#allocation2 + $0x1] sm:$0xff]
        %v3157 = vld [vmem:[#allocation2 + $0x9] sm:$0xff]
        %v3158 = vld [vmem:[#allocation2 + $0x19] sm:$0xff]
        %v3159 = vld [vmem:[#allocation2 + $0x21] sm:$0xff]
        %v3160 = vld [vmem:[#allocation2 + $0x31] sm:$0xff]
        %v3161 = vld [vmem:[#allocation2 + $0x39] sm:$0xff]
        %v3162 = vld [vmem:[#allocation2 + $0x49] sm:$0xff]
        %v3163 = vld [vmem:[#allocation2 + $0x51] sm:$0xff]
        %v3164 = vld [vmem:[#allocation2 + $0x61] sm:$0xff]
        %v3165 = vld [vmem:[#allocation2 + $0x69] sm:$0xff]
        %v3166 = vld [vmem:[#allocation2 + $0x79] sm:$0xff]
        %v3167 = vld [vmem:[#allocation2 + $0x81] sm:$0xff]
        %v3168 = vld [vmem:[#allocation2 + $0x91] sm:$0xff]
        %v3169 = vld [vmem:[#allocation2 + $0x99] sm:$0xff]
        %v3170 = vld [vmem:[#allocation2 + $0xa9] sm:$0xff]
        %v3171 = vld [vmem:[#allocation2 + $0xb1] sm:$0xff]
        %v3172 = vld [vmem:[#allocation2 + $0xc1] sm:$0xff]
        %v3173 = vld [vmem:[#allocation2 + $0xc9] sm:$0xff]
        %v3174 = vld [vmem:[#allocation2 + $0xd9] sm:$0xff]
        %v3175 = vld [vmem:[#allocation2 + $0xe1] sm:$0xff]
        %v3176 = vld [vmem:[#allocation2 + $0xf1] sm:$0xff]
        %v3177 = vld [vmem:[#allocation2 + $0xf9] sm:$0xff]
        %v3178 = vld [vmem:[#allocation2 + $0x109] sm:$0xff]
        %v3179 = vld [vmem:[#allocation2 + $0x111] sm:$0xff]
        %v3180 = vld [vmem:[#allocation2 + $0x121] sm:$0xff]
        %v3181 = vld [vmem:[#allocation2 + $0x129] sm:$0xff]
        %v3182 = vld [vmem:[#allocation2 + $0x139] sm:$0xff]
        %v3183 = vld [vmem:[#allocation2 + $0x141] sm:$0xff]
        %v3184 = vld [vmem:[#allocation2 + $0x151] sm:$0xff]
        %v3185 = vld [vmem:[#allocation2 + $0x159] sm:$0xff]
        %v3186 = vld [vmem:[#allocation2 + $0x169] sm:$0xff]
        %v3187 = vld [vmem:[#allocation2 + $0x171] sm:$0xff]
        %v3188 = vpack.c.bf16 %v3157, %v3156
        %v3189 = vpack.c.bf16 %v3159, %v3158
        %v3190 = vpack.c.bf16 %v3161, %v3160
        %v3191 = vpack.c.bf16 %v3163, %v3162
        %v3192 = vpack.c.bf16 %v3165, %v3164
        %v3193 = vpack.c.bf16 %v3167, %v3166
        %v3194 = vpack.c.bf16 %v3169, %v3168
        %v3195 = vpack.c.bf16 %v3171, %v3170
        %v3196 = vpack.c.bf16 %v3173, %v3172
        %v3197 = vpack.c.bf16 %v3175, %v3174
        %v3198 = vpack.c.bf16 %v3177, %v3176
        %v3199 = vpack.c.bf16 %v3179, %v3178
        %v3200 = vpack.c.bf16 %v3181, %v3180
        %v3201 = vpack.c.bf16 %v3183, %v3182
        %v3202 = vpack.c.bf16 %v3185, %v3184
        %v3203 = vpack.c.bf16 %v3187, %v3186
        %s3204 = scalar_lea.vmem %s3, 2
        %v3205 = vld [vmem:[%s3204] sm:$0x3]
        %v3207 = vsel %vm278, %v3188, 0
        %v3210 = vsel %vm278, %v3189, 0
        %v3213 = vsel %vm278, %v3190, 0
        %v3216 = vsel %vm278, %v3191, 0
        %v3219 = vsel %vm278, %v3192, 0
        %v3222 = vsel %vm278, %v3193, 0
        %v3225 = vsel %vm278, %v3194, 0
        %v3228 = vsel %vm278, %v3195, 0
        %v3231 = vsel %vm278, %v3196, 0
        %v3234 = vsel %vm278, %v3197, 0
        %v3237 = vsel %vm278, %v3198, 0
        %v3240 = vsel %vm278, %v3199, 0
        %v3243 = vsel %vm278, %v3200, 0
        %v3246 = vsel %vm278, %v3201, 0
        %v3249 = vsel %vm278, %v3202, 0
        %v3252 = vsel %vm278, %v3203, 0
        %v3255 = vsel %vm568, %v3205, 0
        %3257 = vmatprep.subr.bf16.mxu0 0
        %3258 = vmatpush1.bf16.msra.mxu0 0
        %3259 = vmatprep.subr.bf16.mxu0 0
        %3260 = vmatpush1.bf16.msra.mxu0 0
        %3261 = vmatprep.subr.bf16.mxu0 0
        %3262 = vmatpush1.bf16.msra.mxu0 0
        %3263 = vmatprep.subr.bf16.mxu0 0
        %3264 = vmatpush1.bf16.msra.mxu0 0
        %3265 = vmatprep.subr.bf16.mxu0 0
        %3266 = vmatpush1.bf16.msra.mxu0 0
        %3267 = vmatprep.subr.bf16.mxu0 0
        %3268 = vmatpush1.bf16.msra.mxu0 0
        %3269 = vmatprep.subr.bf16.mxu0 0
        %3270 = vmatpush1.bf16.msra.mxu0 0
        %3271 = vmatprep.subr.bf16.mxu0 0
        %3272 = vmatpush1.bf16.msra.mxu0 %v3255
        %3273 = vmatprep.subr.bf16.mxu0 0
        %3274 = vmatpush2.bf16.msra.mxu0 0
        %3275 = vmatprep.subr.bf16.mxu0 0
        %3276 = vmatpush2.bf16.msra.mxu0 0
        %3277 = vmatprep.subr.bf16.mxu0 0
        %3278 = vmatpush2.bf16.msra.mxu0 0
        %3279 = vmatprep.subr.bf16.mxu0 0
        %3280 = vmatpush2.bf16.msra.mxu0 0
        %3281 = vmatprep.subr.bf16.mxu0 0
        %3282 = vmatpush2.bf16.msra.mxu0 0
        %3283 = vmatprep.subr.bf16.mxu0 0
        %3284 = vmatpush2.bf16.msra.mxu0 0
        %3285 = vmatprep.subr.bf16.mxu0 0
        %3286 = vmatpush2.bf16.msra.mxu0 0
        %3287 = vmatprep.subr.bf16.mxu0 0
        %3288 = vmatpush2.bf16.msra.mxu0 0
        %3289 = vmatprep.mubr.bf16.mxu0 0
        %3290 = vmatmul.mubr.bf16.gmra.mxu0 %v3207
        %v3291 = vpop.f32.mrf.mxu0
        %v3292 = vadd.f32 0.0, %v3291
        %v3293 = vpop.f32.mrf.mxu0
        %v3294 = vpop.f32.mrf.mxu0
        %v3295 = vadd.f32 0.0, %v3294
        %v3296 = vpop.f32.mrf.mxu0
        %3297 = vmatprep.mubr.bf16.mxu0 0
        %3298 = vmatmul.mubr.bf16.gmra.mxu0 %v3210
        %v3299 = vpop.f32.mrf.mxu0
        %v3300 = vadd.f32 0.0, %v3299
        %v3301 = vpop.f32.mrf.mxu0
        %v3302 = vpop.f32.mrf.mxu0
        %v3303 = vadd.f32 0.0, %v3302
        %v3304 = vpop.f32.mrf.mxu0
        %3305 = vmatprep.mubr.bf16.mxu0 0
        %3306 = vmatmul.mubr.bf16.gmra.mxu0 %v3213
        %v3307 = vpop.f32.mrf.mxu0
        %v3308 = vadd.f32 0.0, %v3307
        %v3309 = vpop.f32.mrf.mxu0
        %v3310 = vpop.f32.mrf.mxu0
        %v3311 = vadd.f32 0.0, %v3310
        %v3312 = vpop.f32.mrf.mxu0
        %3313 = vmatprep.mubr.bf16.mxu0 0
        %3314 = vmatmul.mubr.bf16.gmra.mxu0 %v3216
        %v3315 = vpop.f32.mrf.mxu0
        %v3316 = vadd.f32 0.0, %v3315
        %v3317 = vpop.f32.mrf.mxu0
        %v3318 = vpop.f32.mrf.mxu0
        %v3319 = vadd.f32 0.0, %v3318
        %v3320 = vpop.f32.mrf.mxu0
        %3321 = vmatprep.mubr.bf16.mxu0 0
        %3322 = vmatmul.mubr.bf16.gmra.mxu0 %v3219
        %v3323 = vpop.f32.mrf.mxu0
        %v3324 = vadd.f32 0.0, %v3323
        %v3325 = vpop.f32.mrf.mxu0
        %v3326 = vpop.f32.mrf.mxu0
        %v3327 = vadd.f32 0.0, %v3326
        %v3328 = vpop.f32.mrf.mxu0
        %3329 = vmatprep.mubr.bf16.mxu0 0
        %3330 = vmatmul.mubr.bf16.gmra.mxu0 %v3222
        %v3331 = vpop.f32.mrf.mxu0
        %v3332 = vadd.f32 0.0, %v3331
        %v3333 = vpop.f32.mrf.mxu0
        %v3334 = vpop.f32.mrf.mxu0
        %v3335 = vadd.f32 0.0, %v3334
        %v3336 = vpop.f32.mrf.mxu0
        %3337 = vmatprep.mubr.bf16.mxu0 0
        %3338 = vmatmul.mubr.bf16.gmra.mxu0 %v3225
        %v3339 = vpop.f32.mrf.mxu0
        %v3340 = vadd.f32 0.0, %v3339
        %v3341 = vpop.f32.mrf.mxu0
        %v3342 = vpop.f32.mrf.mxu0
        %v3343 = vadd.f32 0.0, %v3342
        %v3344 = vpop.f32.mrf.mxu0
        %3345 = vmatprep.mubr.bf16.mxu0 0
        %3346 = vmatmul.mubr.bf16.gmra.mxu0 %v3228
        %v3347 = vpop.f32.mrf.mxu0
        %v3348 = vadd.f32 0.0, %v3347
        %v3349 = vpop.f32.mrf.mxu0
        %v3350 = vpop.f32.mrf.mxu0
        %v3351 = vadd.f32 0.0, %v3350
        %v3352 = vpop.f32.mrf.mxu0
        %3353 = vmatprep.mubr.bf16.mxu0 0
        %3354 = vmatmul.mubr.bf16.gmra.mxu0 %v3231
        %v3355 = vpop.f32.mrf.mxu0
        %v3356 = vadd.f32 0.0, %v3355
        %v3357 = vpop.f32.mrf.mxu0
        %v3358 = vpop.f32.mrf.mxu0
        %v3359 = vadd.f32 0.0, %v3358
        %v3360 = vpop.f32.mrf.mxu0
        %3361 = vmatprep.mubr.bf16.mxu0 0
        %3362 = vmatmul.mubr.bf16.gmra.mxu0 %v3234
        %v3363 = vpop.f32.mrf.mxu0
        %v3364 = vadd.f32 0.0, %v3363
        %v3365 = vpop.f32.mrf.mxu0
        %v3366 = vpop.f32.mrf.mxu0
        %v3367 = vadd.f32 0.0, %v3366
        %v3368 = vpop.f32.mrf.mxu0
        %3369 = vmatprep.mubr.bf16.mxu0 0
        %3370 = vmatmul.mubr.bf16.gmra.mxu0 %v3237
        %v3371 = vpop.f32.mrf.mxu0
        %v3372 = vadd.f32 0.0, %v3371
        %v3373 = vpop.f32.mrf.mxu0
        %v3374 = vpop.f32.mrf.mxu0
        %v3375 = vadd.f32 0.0, %v3374
        %v3376 = vpop.f32.mrf.mxu0
        %3377 = vmatprep.mubr.bf16.mxu0 0
        %3378 = vmatmul.mubr.bf16.gmra.mxu0 %v3240
        %v3379 = vpop.f32.mrf.mxu0
        %v3380 = vadd.f32 0.0, %v3379
        %v3381 = vpop.f32.mrf.mxu0
        %v3382 = vpop.f32.mrf.mxu0
        %v3383 = vadd.f32 0.0, %v3382
        %v3384 = vpop.f32.mrf.mxu0
        %3385 = vmatprep.mubr.bf16.mxu0 0
        %3386 = vmatmul.mubr.bf16.gmra.mxu0 %v3243
        %v3387 = vpop.f32.mrf.mxu0
        %v3388 = vadd.f32 0.0, %v3387
        %v3389 = vpop.f32.mrf.mxu0
        %v3390 = vpop.f32.mrf.mxu0
        %v3391 = vadd.f32 0.0, %v3390
        %v3392 = vpop.f32.mrf.mxu0
        %3393 = vmatprep.mubr.bf16.mxu0 0
        %3394 = vmatmul.mubr.bf16.gmra.mxu0 %v3246
        %v3395 = vpop.f32.mrf.mxu0
        %v3396 = vadd.f32 0.0, %v3395
        %v3397 = vpop.f32.mrf.mxu0
        %v3398 = vpop.f32.mrf.mxu0
        %v3399 = vadd.f32 0.0, %v3398
        %v3400 = vpop.f32.mrf.mxu0
        %3401 = vmatprep.mubr.bf16.mxu0 0
        %3402 = vmatmul.mubr.bf16.gmra.mxu0 %v3249
        %v3403 = vpop.f32.mrf.mxu0
        %v3404 = vadd.f32 0.0, %v3403
        %v3405 = vpop.f32.mrf.mxu0
        %v3406 = vpop.f32.mrf.mxu0
        %v3407 = vadd.f32 0.0, %v3406
        %v3408 = vpop.f32.mrf.mxu0
        %3409 = vmatprep.mubr.bf16.mxu0 0
        %3410 = vmatmul.mubr.bf16.gmra.mxu0 %v3252
        %v3411 = vpop.f32.mrf.mxu0
        %v3412 = vadd.f32 0.0, %v3411
        %v3413 = vpop.f32.mrf.mxu0
        %v3414 = vpop.f32.mrf.mxu0
        %v3415 = vadd.f32 0.0, %v3414
        %v3416 = vpop.f32.mrf.mxu0
        %3417 = vdwg.mxu0
        %v3419 = vsel %vm278, %v3139, 0
        %v3422 = vsel %vm278, %v3140, 0
        %v3425 = vsel %vm278, %v3141, 0
        %v3428 = vsel %vm278, %v3142, 0
        %v3431 = vsel %vm278, %v3143, 0
        %v3434 = vsel %vm278, %v3144, 0
        %v3437 = vsel %vm278, %v3145, 0
        %v3440 = vsel %vm278, %v3146, 0
        %v3443 = vsel %vm278, %v3147, 0
        %v3446 = vsel %vm278, %v3148, 0
        %v3449 = vsel %vm278, %v3149, 0
        %v3452 = vsel %vm278, %v3150, 0
        %v3455 = vsel %vm278, %v3151, 0
        %v3458 = vsel %vm278, %v3152, 0
        %v3461 = vsel %vm278, %v3153, 0
        %v3464 = vsel %vm278, %v3154, 0
        %v3467 = vsel %vm568, %v3155, 0
        %3469 = vmatprep.subr.bf16.mxu0 0
        %3470 = vmatpush1.bf16.msra.mxu0 0
        %3471 = vmatprep.subr.bf16.mxu0 0
        %3472 = vmatpush1.bf16.msra.mxu0 0
        %3473 = vmatprep.subr.bf16.mxu0 0
        %3474 = vmatpush1.bf16.msra.mxu0 0
        %3475 = vmatprep.subr.bf16.mxu0 0
        %3476 = vmatpush1.bf16.msra.mxu0 0
        %3477 = vmatprep.subr.bf16.mxu0 0
        %3478 = vmatpush1.bf16.msra.mxu0 0
        %3479 = vmatprep.subr.bf16.mxu0 0
        %3480 = vmatpush1.bf16.msra.mxu0 0
        %3481 = vmatprep.subr.bf16.mxu0 0
        %3482 = vmatpush1.bf16.msra.mxu0 0
        %3483 = vmatprep.subr.bf16.mxu0 0
        %3484 = vmatpush1.bf16.msra.mxu0 %v3467
        %3485 = vmatprep.subr.bf16.mxu0 0
        %3486 = vmatpush2.bf16.msra.mxu0 0
        %3487 = vmatprep.subr.bf16.mxu0 0
        %3488 = vmatpush2.bf16.msra.mxu0 0
        %3489 = vmatprep.subr.bf16.mxu0 0
        %3490 = vmatpush2.bf16.msra.mxu0 0
        %3491 = vmatprep.subr.bf16.mxu0 0
        %3492 = vmatpush2.bf16.msra.mxu0 0
        %3493 = vmatprep.subr.bf16.mxu0 0
        %3494 = vmatpush2.bf16.msra.mxu0 0
        %3495 = vmatprep.subr.bf16.mxu0 0
        %3496 = vmatpush2.bf16.msra.mxu0 0
        %3497 = vmatprep.subr.bf16.mxu0 0
        %3498 = vmatpush2.bf16.msra.mxu0 0
        %3499 = vmatprep.subr.bf16.mxu0 0
        %3500 = vmatpush2.bf16.msra.mxu0 0
        %3501 = vmatprep.mubr.bf16.mxu0 0
        %3502 = vmatmul.mubr.bf16.gmra.mxu0 %v3419
        %v3503 = vpop.f32.mrf.mxu0
        %v3504 = vadd.f32 %v3292, %v3503
        %v3505 = vpop.f32.mrf.mxu0
        %v3506 = vpop.f32.mrf.mxu0
        %v3507 = vadd.f32 %v3295, %v3506
        %v3508 = vpop.f32.mrf.mxu0
        %3509 = vmatprep.mubr.bf16.mxu0 0
        %3510 = vmatmul.mubr.bf16.gmra.mxu0 %v3422
        %v3511 = vpop.f32.mrf.mxu0
        %v3512 = vadd.f32 %v3300, %v3511
        %v3513 = vpop.f32.mrf.mxu0
        %v3514 = vpop.f32.mrf.mxu0
        %v3515 = vadd.f32 %v3303, %v3514
        %v3516 = vpop.f32.mrf.mxu0
        %3517 = vmatprep.mubr.bf16.mxu0 0
        %3518 = vmatmul.mubr.bf16.gmra.mxu0 %v3425
        %v3519 = vpop.f32.mrf.mxu0
        %v3520 = vadd.f32 %v3308, %v3519
        %v3521 = vpop.f32.mrf.mxu0
        %v3522 = vpop.f32.mrf.mxu0
        %v3523 = vadd.f32 %v3311, %v3522
        %v3524 = vpop.f32.mrf.mxu0
        %3525 = vmatprep.mubr.bf16.mxu0 0
        %3526 = vmatmul.mubr.bf16.gmra.mxu0 %v3428
        %v3527 = vpop.f32.mrf.mxu0
        %v3528 = vadd.f32 %v3316, %v3527
        %v3529 = vpop.f32.mrf.mxu0
        %v3530 = vpop.f32.mrf.mxu0
        %v3531 = vadd.f32 %v3319, %v3530
        %v3532 = vpop.f32.mrf.mxu0
        %3533 = vmatprep.mubr.bf16.mxu0 0
        %3534 = vmatmul.mubr.bf16.gmra.mxu0 %v3431
        %v3535 = vpop.f32.mrf.mxu0
        %v3536 = vadd.f32 %v3324, %v3535
        %v3537 = vpop.f32.mrf.mxu0
        %v3538 = vpop.f32.mrf.mxu0
        %v3539 = vadd.f32 %v3327, %v3538
        %v3540 = vpop.f32.mrf.mxu0
        %3541 = vmatprep.mubr.bf16.mxu0 0
        %3542 = vmatmul.mubr.bf16.gmra.mxu0 %v3434
        %v3543 = vpop.f32.mrf.mxu0
        %v3544 = vadd.f32 %v3332, %v3543
        %v3545 = vpop.f32.mrf.mxu0
        %v3546 = vpop.f32.mrf.mxu0
        %v3547 = vadd.f32 %v3335, %v3546
        %v3548 = vpop.f32.mrf.mxu0
        %3549 = vmatprep.mubr.bf16.mxu0 0
        %3550 = vmatmul.mubr.bf16.gmra.mxu0 %v3437
        %v3551 = vpop.f32.mrf.mxu0
        %v3552 = vadd.f32 %v3340, %v3551
        %v3553 = vpop.f32.mrf.mxu0
        %v3554 = vpop.f32.mrf.mxu0
        %v3555 = vadd.f32 %v3343, %v3554
        %v3556 = vpop.f32.mrf.mxu0
        %3557 = vmatprep.mubr.bf16.mxu0 0
        %3558 = vmatmul.mubr.bf16.gmra.mxu0 %v3440
        %v3559 = vpop.f32.mrf.mxu0
        %v3560 = vadd.f32 %v3348, %v3559
        %v3561 = vpop.f32.mrf.mxu0
        %v3562 = vpop.f32.mrf.mxu0
        %v3563 = vadd.f32 %v3351, %v3562
        %v3564 = vpop.f32.mrf.mxu0
        %3565 = vmatprep.mubr.bf16.mxu0 0
        %3566 = vmatmul.mubr.bf16.gmra.mxu0 %v3443
        %v3567 = vpop.f32.mrf.mxu0
        %v3568 = vadd.f32 %v3356, %v3567
        %v3569 = vpop.f32.mrf.mxu0
        %v3570 = vpop.f32.mrf.mxu0
        %v3571 = vadd.f32 %v3359, %v3570
        %v3572 = vpop.f32.mrf.mxu0
        %3573 = vmatprep.mubr.bf16.mxu0 0
        %3574 = vmatmul.mubr.bf16.gmra.mxu0 %v3446
        %v3575 = vpop.f32.mrf.mxu0
        %v3576 = vadd.f32 %v3364, %v3575
        %v3577 = vpop.f32.mrf.mxu0
        %v3578 = vpop.f32.mrf.mxu0
        %v3579 = vadd.f32 %v3367, %v3578
        %v3580 = vpop.f32.mrf.mxu0
        %3581 = vmatprep.mubr.bf16.mxu0 0
        %3582 = vmatmul.mubr.bf16.gmra.mxu0 %v3449
        %v3583 = vpop.f32.mrf.mxu0
        %v3584 = vadd.f32 %v3372, %v3583
        %v3585 = vpop.f32.mrf.mxu0
        %v3586 = vpop.f32.mrf.mxu0
        %v3587 = vadd.f32 %v3375, %v3586
        %v3588 = vpop.f32.mrf.mxu0
        %3589 = vmatprep.mubr.bf16.mxu0 0
        %3590 = vmatmul.mubr.bf16.gmra.mxu0 %v3452
        %v3591 = vpop.f32.mrf.mxu0
        %v3592 = vadd.f32 %v3380, %v3591
        %v3593 = vpop.f32.mrf.mxu0
        %v3594 = vpop.f32.mrf.mxu0
        %v3595 = vadd.f32 %v3383, %v3594
        %v3596 = vpop.f32.mrf.mxu0
        %3597 = vmatprep.mubr.bf16.mxu0 0
        %3598 = vmatmul.mubr.bf16.gmra.mxu0 %v3455
        %v3599 = vpop.f32.mrf.mxu0
        %v3600 = vadd.f32 %v3388, %v3599
        %v3601 = vpop.f32.mrf.mxu0
        %v3602 = vpop.f32.mrf.mxu0
        %v3603 = vadd.f32 %v3391, %v3602
        %v3604 = vpop.f32.mrf.mxu0
        %3605 = vmatprep.mubr.bf16.mxu0 0
        %3606 = vmatmul.mubr.bf16.gmra.mxu0 %v3458
        %v3607 = vpop.f32.mrf.mxu0
        %v3608 = vadd.f32 %v3396, %v3607
        %v3609 = vpop.f32.mrf.mxu0
        %v3610 = vpop.f32.mrf.mxu0
        %v3611 = vadd.f32 %v3399, %v3610
        %v3612 = vpop.f32.mrf.mxu0
        %3613 = vmatprep.mubr.bf16.mxu0 0
        %3614 = vmatmul.mubr.bf16.gmra.mxu0 %v3461
        %v3615 = vpop.f32.mrf.mxu0
        %v3616 = vadd.f32 %v3404, %v3615
        %v3617 = vpop.f32.mrf.mxu0
        %v3618 = vpop.f32.mrf.mxu0
        %v3619 = vadd.f32 %v3407, %v3618
        %v3620 = vpop.f32.mrf.mxu0
        %3621 = vmatprep.mubr.bf16.mxu0 0
        %3622 = vmatmul.mubr.bf16.gmra.mxu0 %v3464
        %v3623 = vpop.f32.mrf.mxu0
        %v3624 = vadd.f32 %v3412, %v3623
        %v3625 = vpop.f32.mrf.mxu0
        %v3626 = vpop.f32.mrf.mxu0
        %v3627 = vadd.f32 %v3415, %v3626
        %v3628 = vpop.f32.mrf.mxu0
        %3629 = vdwg.mxu0
        %v3630 = vld [vmem:[#allocation2 + $0x2] sm:$0xff]
        %v3631 = vld [vmem:[#allocation2 + $0xa] sm:$0xff]
        %v3632 = vld [vmem:[#allocation2 + $0x1a] sm:$0xff]
        %v3633 = vld [vmem:[#allocation2 + $0x22] sm:$0xff]
        %v3634 = vld [vmem:[#allocation2 + $0x32] sm:$0xff]
        %v3635 = vld [vmem:[#allocation2 + $0x3a] sm:$0xff]
        %v3636 = vld [vmem:[#allocation2 + $0x4a] sm:$0xff]
        %v3637 = vld [vmem:[#allocation2 + $0x52] sm:$0xff]
        %v3638 = vld [vmem:[#allocation2 + $0x62] sm:$0xff]
        %v3639 = vld [vmem:[#allocation2 + $0x6a] sm:$0xff]
        %v3640 = vld [vmem:[#allocation2 + $0x7a] sm:$0xff]
        %v3641 = vld [vmem:[#allocation2 + $0x82] sm:$0xff]
        %v3642 = vld [vmem:[#allocation2 + $0x92] sm:$0xff]
        %v3643 = vld [vmem:[#allocation2 + $0x9a] sm:$0xff]
        %v3644 = vld [vmem:[#allocation2 + $0xaa] sm:$0xff]
        %v3645 = vld [vmem:[#allocation2 + $0xb2] sm:$0xff]
        %v3646 = vld [vmem:[#allocation2 + $0xc2] sm:$0xff]
        %v3647 = vld [vmem:[#allocation2 + $0xca] sm:$0xff]
        %v3648 = vld [vmem:[#allocation2 + $0xda] sm:$0xff]
        %v3649 = vld [vmem:[#allocation2 + $0xe2] sm:$0xff]
        %v3650 = vld [vmem:[#allocation2 + $0xf2] sm:$0xff]
        %v3651 = vld [vmem:[#allocation2 + $0xfa] sm:$0xff]
        %v3652 = vld [vmem:[#allocation2 + $0x10a] sm:$0xff]
        %v3653 = vld [vmem:[#allocation2 + $0x112] sm:$0xff]
        %v3654 = vld [vmem:[#allocation2 + $0x122] sm:$0xff]
        %v3655 = vld [vmem:[#allocation2 + $0x12a] sm:$0xff]
        %v3656 = vld [vmem:[#allocation2 + $0x13a] sm:$0xff]
        %v3657 = vld [vmem:[#allocation2 + $0x142] sm:$0xff]
        %v3658 = vld [vmem:[#allocation2 + $0x152] sm:$0xff]
        %v3659 = vld [vmem:[#allocation2 + $0x15a] sm:$0xff]
        %v3660 = vld [vmem:[#allocation2 + $0x16a] sm:$0xff]
        %v3661 = vld [vmem:[#allocation2 + $0x172] sm:$0xff]
        %v3662 = vpack.c.bf16 %v3631, %v3630
        %v3663 = vpack.c.bf16 %v3633, %v3632
        %v3664 = vpack.c.bf16 %v3635, %v3634
        %v3665 = vpack.c.bf16 %v3637, %v3636
        %v3666 = vpack.c.bf16 %v3639, %v3638
        %v3667 = vpack.c.bf16 %v3641, %v3640
        %v3668 = vpack.c.bf16 %v3643, %v3642
        %v3669 = vpack.c.bf16 %v3645, %v3644
        %v3670 = vpack.c.bf16 %v3647, %v3646
        %v3671 = vpack.c.bf16 %v3649, %v3648
        %v3672 = vpack.c.bf16 %v3651, %v3650
        %v3673 = vpack.c.bf16 %v3653, %v3652
        %v3674 = vpack.c.bf16 %v3655, %v3654
        %v3675 = vpack.c.bf16 %v3657, %v3656
        %v3676 = vpack.c.bf16 %v3659, %v3658
        %v3677 = vpack.c.bf16 %v3661, %v3660
        %s3678 = scalar_lea.vmem %s3, 4
        %v3679 = vld [vmem:[%s3678] sm:$0x3]
        %v3681 = vsel %vm278, %v3662, 0
        %v3684 = vsel %vm278, %v3663, 0
        %v3687 = vsel %vm278, %v3664, 0
        %v3690 = vsel %vm278, %v3665, 0
        %v3693 = vsel %vm278, %v3666, 0
        %v3696 = vsel %vm278, %v3667, 0
        %v3699 = vsel %vm278, %v3668, 0
        %v3702 = vsel %vm278, %v3669, 0
        %v3705 = vsel %vm278, %v3670, 0
        %v3708 = vsel %vm278, %v3671, 0
        %v3711 = vsel %vm278, %v3672, 0
        %v3714 = vsel %vm278, %v3673, 0
        %v3717 = vsel %vm278, %v3674, 0
        %v3720 = vsel %vm278, %v3675, 0
        %v3723 = vsel %vm278, %v3676, 0
        %v3726 = vsel %vm278, %v3677, 0
        %v3729 = vsel %vm568, %v3679, 0
        %3731 = vmatprep.subr.bf16.mxu0 0
        %3732 = vmatpush1.bf16.msra.mxu0 0
        %3733 = vmatprep.subr.bf16.mxu0 0
        %3734 = vmatpush1.bf16.msra.mxu0 0
        %3735 = vmatprep.subr.bf16.mxu0 0
        %3736 = vmatpush1.bf16.msra.mxu0 0
        %3737 = vmatprep.subr.bf16.mxu0 0
        %3738 = vmatpush1.bf16.msra.mxu0 0
        %3739 = vmatprep.subr.bf16.mxu0 0
        %3740 = vmatpush1.bf16.msra.mxu0 0
        %3741 = vmatprep.subr.bf16.mxu0 0
        %3742 = vmatpush1.bf16.msra.mxu0 0
        %3743 = vmatprep.subr.bf16.mxu0 0
        %3744 = vmatpush1.bf16.msra.mxu0 0
        %3745 = vmatprep.subr.bf16.mxu0 0
        %3746 = vmatpush1.bf16.msra.mxu0 %v3729
        %3747 = vmatprep.subr.bf16.mxu0 0
        %3748 = vmatpush2.bf16.msra.mxu0 0
        %3749 = vmatprep.subr.bf16.mxu0 0
        %3750 = vmatpush2.bf16.msra.mxu0 0
        %3751 = vmatprep.subr.bf16.mxu0 0
        %3752 = vmatpush2.bf16.msra.mxu0 0
        %3753 = vmatprep.subr.bf16.mxu0 0
        %3754 = vmatpush2.bf16.msra.mxu0 0
        %3755 = vmatprep.subr.bf16.mxu0 0
        %3756 = vmatpush2.bf16.msra.mxu0 0
        %3757 = vmatprep.subr.bf16.mxu0 0
        %3758 = vmatpush2.bf16.msra.mxu0 0
        %3759 = vmatprep.subr.bf16.mxu0 0
        %3760 = vmatpush2.bf16.msra.mxu0 0
        %3761 = vmatprep.subr.bf16.mxu0 0
        %3762 = vmatpush2.bf16.msra.mxu0 0
        %3763 = vmatprep.mubr.bf16.mxu0 0
        %3764 = vmatmul.mubr.bf16.gmra.mxu0 %v3681
        %v3765 = vpop.f32.mrf.mxu0
        %v3766 = vadd.f32 0.0, %v3765
        %v3767 = vpop.f32.mrf.mxu0
        %v3768 = vpop.f32.mrf.mxu0
        %v3769 = vadd.f32 0.0, %v3768
        %v3770 = vpop.f32.mrf.mxu0
        %3771 = vmatprep.mubr.bf16.mxu0 0
        %3772 = vmatmul.mubr.bf16.gmra.mxu0 %v3684
        %v3773 = vpop.f32.mrf.mxu0
        %v3774 = vadd.f32 0.0, %v3773
        %v3775 = vpop.f32.mrf.mxu0
        %v3776 = vpop.f32.mrf.mxu0
        %v3777 = vadd.f32 0.0, %v3776
        %v3778 = vpop.f32.mrf.mxu0
        %3779 = vmatprep.mubr.bf16.mxu0 0
        %3780 = vmatmul.mubr.bf16.gmra.mxu0 %v3687
        %v3781 = vpop.f32.mrf.mxu0
        %v3782 = vadd.f32 0.0, %v3781
        %v3783 = vpop.f32.mrf.mxu0
        %v3784 = vpop.f32.mrf.mxu0
        %v3785 = vadd.f32 0.0, %v3784
        %v3786 = vpop.f32.mrf.mxu0
        %3787 = vmatprep.mubr.bf16.mxu0 0
        %3788 = vmatmul.mubr.bf16.gmra.mxu0 %v3690
        %v3789 = vpop.f32.mrf.mxu0
        %v3790 = vadd.f32 0.0, %v3789
        %v3791 = vpop.f32.mrf.mxu0
        %v3792 = vpop.f32.mrf.mxu0
        %v3793 = vadd.f32 0.0, %v3792
        %v3794 = vpop.f32.mrf.mxu0
        %3795 = vmatprep.mubr.bf16.mxu0 0
        %3796 = vmatmul.mubr.bf16.gmra.mxu0 %v3693
        %v3797 = vpop.f32.mrf.mxu0
        %v3798 = vadd.f32 0.0, %v3797
        %v3799 = vpop.f32.mrf.mxu0
        %v3800 = vpop.f32.mrf.mxu0
        %v3801 = vadd.f32 0.0, %v3800
        %v3802 = vpop.f32.mrf.mxu0
        %3803 = vmatprep.mubr.bf16.mxu0 0
        %3804 = vmatmul.mubr.bf16.gmra.mxu0 %v3696
        %v3805 = vpop.f32.mrf.mxu0
        %v3806 = vadd.f32 0.0, %v3805
        %v3807 = vpop.f32.mrf.mxu0
        %v3808 = vpop.f32.mrf.mxu0
        %v3809 = vadd.f32 0.0, %v3808
        %v3810 = vpop.f32.mrf.mxu0
        %3811 = vmatprep.mubr.bf16.mxu0 0
        %3812 = vmatmul.mubr.bf16.gmra.mxu0 %v3699
        %v3813 = vpop.f32.mrf.mxu0
        %v3814 = vadd.f32 0.0, %v3813
        %v3815 = vpop.f32.mrf.mxu0
        %v3816 = vpop.f32.mrf.mxu0
        %v3817 = vadd.f32 0.0, %v3816
        %v3818 = vpop.f32.mrf.mxu0
        %3819 = vmatprep.mubr.bf16.mxu0 0
        %3820 = vmatmul.mubr.bf16.gmra.mxu0 %v3702
        %v3821 = vpop.f32.mrf.mxu0
        %v3822 = vadd.f32 0.0, %v3821
        %v3823 = vpop.f32.mrf.mxu0
        %v3824 = vpop.f32.mrf.mxu0
        %v3825 = vadd.f32 0.0, %v3824
        %v3826 = vpop.f32.mrf.mxu0
        %3827 = vmatprep.mubr.bf16.mxu0 0
        %3828 = vmatmul.mubr.bf16.gmra.mxu0 %v3705
        %v3829 = vpop.f32.mrf.mxu0
        %v3830 = vadd.f32 0.0, %v3829
        %v3831 = vpop.f32.mrf.mxu0
        %v3832 = vpop.f32.mrf.mxu0
        %v3833 = vadd.f32 0.0, %v3832
        %v3834 = vpop.f32.mrf.mxu0
        %3835 = vmatprep.mubr.bf16.mxu0 0
        %3836 = vmatmul.mubr.bf16.gmra.mxu0 %v3708
        %v3837 = vpop.f32.mrf.mxu0
        %v3838 = vadd.f32 0.0, %v3837
        %v3839 = vpop.f32.mrf.mxu0
        %v3840 = vpop.f32.mrf.mxu0
        %v3841 = vadd.f32 0.0, %v3840
        %v3842 = vpop.f32.mrf.mxu0
        %3843 = vmatprep.mubr.bf16.mxu0 0
        %3844 = vmatmul.mubr.bf16.gmra.mxu0 %v3711
        %v3845 = vpop.f32.mrf.mxu0
        %v3846 = vadd.f32 0.0, %v3845
        %v3847 = vpop.f32.mrf.mxu0
        %v3848 = vpop.f32.mrf.mxu0
        %v3849 = vadd.f32 0.0, %v3848
        %v3850 = vpop.f32.mrf.mxu0
        %3851 = vmatprep.mubr.bf16.mxu0 0
        %3852 = vmatmul.mubr.bf16.gmra.mxu0 %v3714
        %v3853 = vpop.f32.mrf.mxu0
        %v3854 = vadd.f32 0.0, %v3853
        %v3855 = vpop.f32.mrf.mxu0
        %v3856 = vpop.f32.mrf.mxu0
        %v3857 = vadd.f32 0.0, %v3856
        %v3858 = vpop.f32.mrf.mxu0
        %3859 = vmatprep.mubr.bf16.mxu0 0
        %3860 = vmatmul.mubr.bf16.gmra.mxu0 %v3717
        %v3861 = vpop.f32.mrf.mxu0
        %v3862 = vadd.f32 0.0, %v3861
        %v3863 = vpop.f32.mrf.mxu0
        %v3864 = vpop.f32.mrf.mxu0
        %v3865 = vadd.f32 0.0, %v3864
        %v3866 = vpop.f32.mrf.mxu0
        %3867 = vmatprep.mubr.bf16.mxu0 0
        %3868 = vmatmul.mubr.bf16.gmra.mxu0 %v3720
        %v3869 = vpop.f32.mrf.mxu0
        %v3870 = vadd.f32 0.0, %v3869
        %v3871 = vpop.f32.mrf.mxu0
        %v3872 = vpop.f32.mrf.mxu0
        %v3873 = vadd.f32 0.0, %v3872
        %v3874 = vpop.f32.mrf.mxu0
        %3875 = vmatprep.mubr.bf16.mxu0 0
        %3876 = vmatmul.mubr.bf16.gmra.mxu0 %v3723
        %v3877 = vpop.f32.mrf.mxu0
        %v3878 = vadd.f32 0.0, %v3877
        %v3879 = vpop.f32.mrf.mxu0
        %v3880 = vpop.f32.mrf.mxu0
        %v3881 = vadd.f32 0.0, %v3880
        %v3882 = vpop.f32.mrf.mxu0
        %3883 = vmatprep.mubr.bf16.mxu0 0
        %3884 = vmatmul.mubr.bf16.gmra.mxu0 %v3726
        %v3885 = vpop.f32.mrf.mxu0
        %v3886 = vadd.f32 0.0, %v3885
        %v3887 = vpop.f32.mrf.mxu0
        %v3888 = vpop.f32.mrf.mxu0
        %v3889 = vadd.f32 0.0, %v3888
        %v3890 = vpop.f32.mrf.mxu0
        %3891 = vdwg.mxu0
        %v3892 = vadd.f32 %v3504, %v3766
        %v3893 = vadd.f32 %v3507, %v3769
        %v3894 = vadd.f32 %v3512, %v3774
        %v3895 = vadd.f32 %v3515, %v3777
        %v3896 = vadd.f32 %v3520, %v3782
        %v3897 = vadd.f32 %v3523, %v3785
        %v3898 = vadd.f32 %v3528, %v3790
        %v3899 = vadd.f32 %v3531, %v3793
        %v3900 = vadd.f32 %v3536, %v3798
        %v3901 = vadd.f32 %v3539, %v3801
        %v3902 = vadd.f32 %v3544, %v3806
        %v3903 = vadd.f32 %v3547, %v3809
        %v3904 = vadd.f32 %v3552, %v3814
        %v3905 = vadd.f32 %v3555, %v3817
        %v3906 = vadd.f32 %v3560, %v3822
        %v3907 = vadd.f32 %v3563, %v3825
        %v3908 = vadd.f32 %v3568, %v3830
        %v3909 = vadd.f32 %v3571, %v3833
        %v3910 = vadd.f32 %v3576, %v3838
        %v3911 = vadd.f32 %v3579, %v3841
        %v3912 = vadd.f32 %v3584, %v3846
        %v3913 = vadd.f32 %v3587, %v3849
        %v3914 = vadd.f32 %v3592, %v3854
        %v3915 = vadd.f32 %v3595, %v3857
        %v3916 = vadd.f32 %v3600, %v3862
        %v3917 = vadd.f32 %v3603, %v3865
        %v3918 = vadd.f32 %v3608, %v3870
        %v3919 = vadd.f32 %v3611, %v3873
        %v3920 = vadd.f32 %v3616, %v3878
        %v3921 = vadd.f32 %v3619, %v3881
        %v3922 = vadd.f32 %v3624, %v3886
        %v3923 = vadd.f32 %v3627, %v3889
        %v3924 = vld [vmem:[%s388] sm:$0xff]
        %v3925 = vld [vmem:[%s388 + $0x8] sm:$0xff]
        %v3926 = vld [vmem:[%s388 + $0x18] sm:$0xff]
        %v3927 = vld [vmem:[%s388 + $0x20] sm:$0xff]
        %v3928 = vld [vmem:[%s388 + $0x30] sm:$0xff]
        %v3929 = vld [vmem:[%s388 + $0x38] sm:$0xff]
        %v3930 = vld [vmem:[%s388 + $0x48] sm:$0xff]
        %v3931 = vld [vmem:[%s388 + $0x50] sm:$0xff]
        %v3932 = vld [vmem:[%s388 + $0x60] sm:$0xff]
        %v3933 = vld [vmem:[%s388 + $0x68] sm:$0xff]
        %v3934 = vld [vmem:[%s388 + $0x78] sm:$0xff]
        %v3935 = vld [vmem:[%s388 + $0x80] sm:$0xff]
        %v3936 = vld [vmem:[%s388 + $0x90] sm:$0xff]
        %v3937 = vld [vmem:[%s388 + $0x98] sm:$0xff]
        %v3938 = vld [vmem:[%s388 + $0xa8] sm:$0xff]
        %v3939 = vld [vmem:[%s388 + $0xb0] sm:$0xff]
        %v3940 = vld [vmem:[%s388 + $0xc0] sm:$0xff]
        %v3941 = vld [vmem:[%s388 + $0xc8] sm:$0xff]
        %v3942 = vld [vmem:[%s388 + $0xd8] sm:$0xff]
        %v3943 = vld [vmem:[%s388 + $0xe0] sm:$0xff]
        %v3944 = vld [vmem:[%s388 + $0xf0] sm:$0xff]
        %v3945 = vld [vmem:[%s388 + $0xf8] sm:$0xff]
        %v3946 = vld [vmem:[%s388 + $0x108] sm:$0xff]
        %v3947 = vld [vmem:[%s388 + $0x110] sm:$0xff]
        %v3948 = vld [vmem:[%s388 + $0x120] sm:$0xff]
        %v3949 = vld [vmem:[%s388 + $0x128] sm:$0xff]
        %v3950 = vld [vmem:[%s388 + $0x138] sm:$0xff]
        %v3951 = vld [vmem:[%s388 + $0x140] sm:$0xff]
        %v3952 = vld [vmem:[%s388 + $0x150] sm:$0xff]
        %v3953 = vld [vmem:[%s388 + $0x158] sm:$0xff]
        %v3954 = vld [vmem:[%s388 + $0x168] sm:$0xff]
        %v3955 = vld [vmem:[%s388 + $0x170] sm:$0xff]
        %v3956 = vpack.c.bf16 %v3925, %v3924
        %v3957 = vpack.c.bf16 %v3927, %v3926
        %v3958 = vpack.c.bf16 %v3929, %v3928
        %v3959 = vpack.c.bf16 %v3931, %v3930
        %v3960 = vpack.c.bf16 %v3933, %v3932
        %v3961 = vpack.c.bf16 %v3935, %v3934
        %v3962 = vpack.c.bf16 %v3937, %v3936
        %v3963 = vpack.c.bf16 %v3939, %v3938
        %v3964 = vpack.c.bf16 %v3941, %v3940
        %v3965 = vpack.c.bf16 %v3943, %v3942
        %v3966 = vpack.c.bf16 %v3945, %v3944
        %v3967 = vpack.c.bf16 %v3947, %v3946
        %v3968 = vpack.c.bf16 %v3949, %v3948
        %v3969 = vpack.c.bf16 %v3951, %v3950
        %v3970 = vpack.c.bf16 %v3953, %v3952
        %v3971 = vpack.c.bf16 %v3955, %v3954
        %s3972 = scalar_lea.vmem %s3, 6
        %v3973 = vld [vmem:[%s3972] sm:$0x3]
        %v3975 = vsel %vm278, %v3956, 0
        %v3978 = vsel %vm278, %v3957, 0
        %v3981 = vsel %vm278, %v3958, 0
        %v3984 = vsel %vm278, %v3959, 0
        %v3987 = vsel %vm278, %v3960, 0
        %v3990 = vsel %vm278, %v3961, 0
        %v3993 = vsel %vm278, %v3962, 0
        %v3996 = vsel %vm278, %v3963, 0
        %v3999 = vsel %vm278, %v3964, 0
        %v4002 = vsel %vm278, %v3965, 0
        %v4005 = vsel %vm278, %v3966, 0
        %v4008 = vsel %vm278, %v3967, 0
        %v4011 = vsel %vm278, %v3968, 0
        %v4014 = vsel %vm278, %v3969, 0
        %v4017 = vsel %vm278, %v3970, 0
        %v4020 = vsel %vm278, %v3971, 0
        %v4023 = vsel %vm568, %v3973, 0
        %4025 = vmatprep.subr.bf16.mxu0 0
        %4026 = vmatpush1.bf16.msra.mxu0 0
        %4027 = vmatprep.subr.bf16.mxu0 0
        %4028 = vmatpush1.bf16.msra.mxu0 0
        %4029 = vmatprep.subr.bf16.mxu0 0
        %4030 = vmatpush1.bf16.msra.mxu0 0
        %4031 = vmatprep.subr.bf16.mxu0 0
        %4032 = vmatpush1.bf16.msra.mxu0 0
        %4033 = vmatprep.subr.bf16.mxu0 0
        %4034 = vmatpush1.bf16.msra.mxu0 0
        %4035 = vmatprep.subr.bf16.mxu0 0
        %4036 = vmatpush1.bf16.msra.mxu0 0
        %4037 = vmatprep.subr.bf16.mxu0 0
        %4038 = vmatpush1.bf16.msra.mxu0 0
        %4039 = vmatprep.subr.bf16.mxu0 0
        %4040 = vmatpush1.bf16.msra.mxu0 %v4023
        %4041 = vmatprep.subr.bf16.mxu0 0
        %4042 = vmatpush2.bf16.msra.mxu0 0
        %4043 = vmatprep.subr.bf16.mxu0 0
        %4044 = vmatpush2.bf16.msra.mxu0 0
        %4045 = vmatprep.subr.bf16.mxu0 0
        %4046 = vmatpush2.bf16.msra.mxu0 0
        %4047 = vmatprep.subr.bf16.mxu0 0
        %4048 = vmatpush2.bf16.msra.mxu0 0
        %4049 = vmatprep.subr.bf16.mxu0 0
        %4050 = vmatpush2.bf16.msra.mxu0 0
        %4051 = vmatprep.subr.bf16.mxu0 0
        %4052 = vmatpush2.bf16.msra.mxu0 0
        %4053 = vmatprep.subr.bf16.mxu0 0
        %4054 = vmatpush2.bf16.msra.mxu0 0
        %4055 = vmatprep.subr.bf16.mxu0 0
        %4056 = vmatpush2.bf16.msra.mxu0 0
        %4057 = vmatprep.mubr.bf16.mxu0 0
        %4058 = vmatmul.mubr.bf16.gmra.mxu0 %v3975
        %v4059 = vpop.f32.mrf.mxu0
        %v4060 = vadd.f32 0.0, %v4059
        %v4061 = vpop.f32.mrf.mxu0
        %v4062 = vpop.f32.mrf.mxu0
        %v4063 = vadd.f32 0.0, %v4062
        %v4064 = vpop.f32.mrf.mxu0
        %4065 = vmatprep.mubr.bf16.mxu0 0
        %4066 = vmatmul.mubr.bf16.gmra.mxu0 %v3978
        %v4067 = vpop.f32.mrf.mxu0
        %v4068 = vadd.f32 0.0, %v4067
        %v4069 = vpop.f32.mrf.mxu0
        %v4070 = vpop.f32.mrf.mxu0
        %v4071 = vadd.f32 0.0, %v4070
        %v4072 = vpop.f32.mrf.mxu0
        %4073 = vmatprep.mubr.bf16.mxu0 0
        %4074 = vmatmul.mubr.bf16.gmra.mxu0 %v3981
        %v4075 = vpop.f32.mrf.mxu0
        %v4076 = vadd.f32 0.0, %v4075
        %v4077 = vpop.f32.mrf.mxu0
        %v4078 = vpop.f32.mrf.mxu0
        %v4079 = vadd.f32 0.0, %v4078
        %v4080 = vpop.f32.mrf.mxu0
        %4081 = vmatprep.mubr.bf16.mxu0 0
        %4082 = vmatmul.mubr.bf16.gmra.mxu0 %v3984
        %v4083 = vpop.f32.mrf.mxu0
        %v4084 = vadd.f32 0.0, %v4083
        %v4085 = vpop.f32.mrf.mxu0
        %v4086 = vpop.f32.mrf.mxu0
        %v4087 = vadd.f32 0.0, %v4086
        %v4088 = vpop.f32.mrf.mxu0
        %4089 = vmatprep.mubr.bf16.mxu0 0
        %4090 = vmatmul.mubr.bf16.gmra.mxu0 %v3987
        %v4091 = vpop.f32.mrf.mxu0
        %v4092 = vadd.f32 0.0, %v4091
        %v4093 = vpop.f32.mrf.mxu0
        %v4094 = vpop.f32.mrf.mxu0
        %v4095 = vadd.f32 0.0, %v4094
        %v4096 = vpop.f32.mrf.mxu0
        %4097 = vmatprep.mubr.bf16.mxu0 0
        %4098 = vmatmul.mubr.bf16.gmra.mxu0 %v3990
        %v4099 = vpop.f32.mrf.mxu0
        %v4100 = vadd.f32 0.0, %v4099
        %v4101 = vpop.f32.mrf.mxu0
        %v4102 = vpop.f32.mrf.mxu0
        %v4103 = vadd.f32 0.0, %v4102
        %v4104 = vpop.f32.mrf.mxu0
        %4105 = vmatprep.mubr.bf16.mxu0 0
        %4106 = vmatmul.mubr.bf16.gmra.mxu0 %v3993
        %v4107 = vpop.f32.mrf.mxu0
        %v4108 = vadd.f32 0.0, %v4107
        %v4109 = vpop.f32.mrf.mxu0
        %v4110 = vpop.f32.mrf.mxu0
        %v4111 = vadd.f32 0.0, %v4110
        %v4112 = vpop.f32.mrf.mxu0
        %4113 = vmatprep.mubr.bf16.mxu0 0
        %4114 = vmatmul.mubr.bf16.gmra.mxu0 %v3996
        %v4115 = vpop.f32.mrf.mxu0
        %v4116 = vadd.f32 0.0, %v4115
        %v4117 = vpop.f32.mrf.mxu0
        %v4118 = vpop.f32.mrf.mxu0
        %v4119 = vadd.f32 0.0, %v4118
        %v4120 = vpop.f32.mrf.mxu0
        %4121 = vmatprep.mubr.bf16.mxu0 0
        %4122 = vmatmul.mubr.bf16.gmra.mxu0 %v3999
        %v4123 = vpop.f32.mrf.mxu0
        %v4124 = vadd.f32 0.0, %v4123
        %v4125 = vpop.f32.mrf.mxu0
        %v4126 = vpop.f32.mrf.mxu0
        %v4127 = vadd.f32 0.0, %v4126
        %v4128 = vpop.f32.mrf.mxu0
        %4129 = vmatprep.mubr.bf16.mxu0 0
        %4130 = vmatmul.mubr.bf16.gmra.mxu0 %v4002
        %v4131 = vpop.f32.mrf.mxu0
        %v4132 = vadd.f32 0.0, %v4131
        %v4133 = vpop.f32.mrf.mxu0
        %v4134 = vpop.f32.mrf.mxu0
        %v4135 = vadd.f32 0.0, %v4134
        %v4136 = vpop.f32.mrf.mxu0
        %4137 = vmatprep.mubr.bf16.mxu0 0
        %4138 = vmatmul.mubr.bf16.gmra.mxu0 %v4005
        %v4139 = vpop.f32.mrf.mxu0
        %v4140 = vadd.f32 0.0, %v4139
        %v4141 = vpop.f32.mrf.mxu0
        %v4142 = vpop.f32.mrf.mxu0
        %v4143 = vadd.f32 0.0, %v4142
        %v4144 = vpop.f32.mrf.mxu0
        %4145 = vmatprep.mubr.bf16.mxu0 0
        %4146 = vmatmul.mubr.bf16.gmra.mxu0 %v4008
        %v4147 = vpop.f32.mrf.mxu0
        %v4148 = vadd.f32 0.0, %v4147
        %v4149 = vpop.f32.mrf.mxu0
        %v4150 = vpop.f32.mrf.mxu0
        %v4151 = vadd.f32 0.0, %v4150
        %v4152 = vpop.f32.mrf.mxu0
        %4153 = vmatprep.mubr.bf16.mxu0 0
        %4154 = vmatmul.mubr.bf16.gmra.mxu0 %v4011
        %v4155 = vpop.f32.mrf.mxu0
        %v4156 = vadd.f32 0.0, %v4155
        %v4157 = vpop.f32.mrf.mxu0
        %v4158 = vpop.f32.mrf.mxu0
        %v4159 = vadd.f32 0.0, %v4158
        %v4160 = vpop.f32.mrf.mxu0
        %4161 = vmatprep.mubr.bf16.mxu0 0
        %4162 = vmatmul.mubr.bf16.gmra.mxu0 %v4014
        %v4163 = vpop.f32.mrf.mxu0
        %v4164 = vadd.f32 0.0, %v4163
        %v4165 = vpop.f32.mrf.mxu0
        %v4166 = vpop.f32.mrf.mxu0
        %v4167 = vadd.f32 0.0, %v4166
        %v4168 = vpop.f32.mrf.mxu0
        %4169 = vmatprep.mubr.bf16.mxu0 0
        %4170 = vmatmul.mubr.bf16.gmra.mxu0 %v4017
        %v4171 = vpop.f32.mrf.mxu0
        %v4172 = vadd.f32 0.0, %v4171
        %v4173 = vpop.f32.mrf.mxu0
        %v4174 = vpop.f32.mrf.mxu0
        %v4175 = vadd.f32 0.0, %v4174
        %v4176 = vpop.f32.mrf.mxu0
        %4177 = vmatprep.mubr.bf16.mxu0 0
        %4178 = vmatmul.mubr.bf16.gmra.mxu0 %v4020
        %v4179 = vpop.f32.mrf.mxu0
        %v4180 = vadd.f32 0.0, %v4179
        %v4181 = vpop.f32.mrf.mxu0
        %v4182 = vpop.f32.mrf.mxu0
        %v4183 = vadd.f32 0.0, %v4182
        %v4184 = vpop.f32.mrf.mxu0
        %4185 = vdwg.mxu0
        %v4186 = vadd.f32 %v3892, %v4060
        %v4187 = vadd.f32 %v3893, %v4063
        %v4188 = vadd.f32 %v3894, %v4068
        %v4189 = vadd.f32 %v3895, %v4071
        %v4190 = vadd.f32 %v3896, %v4076
        %v4191 = vadd.f32 %v3897, %v4079
        %v4192 = vadd.f32 %v3898, %v4084
        %v4193 = vadd.f32 %v3899, %v4087
        %v4194 = vadd.f32 %v3900, %v4092
        %v4195 = vadd.f32 %v3901, %v4095
        %v4196 = vadd.f32 %v3902, %v4100
        %v4197 = vadd.f32 %v3903, %v4103
        %v4198 = vadd.f32 %v3904, %v4108
        %v4199 = vadd.f32 %v3905, %v4111
        %v4200 = vadd.f32 %v3906, %v4116
        %v4201 = vadd.f32 %v3907, %v4119
        %v4202 = vadd.f32 %v3908, %v4124
        %v4203 = vadd.f32 %v3909, %v4127
        %v4204 = vadd.f32 %v3910, %v4132
        %v4205 = vadd.f32 %v3911, %v4135
        %v4206 = vadd.f32 %v3912, %v4140
        %v4207 = vadd.f32 %v3913, %v4143
        %v4208 = vadd.f32 %v3914, %v4148
        %v4209 = vadd.f32 %v3915, %v4151
        %v4210 = vadd.f32 %v3916, %v4156
        %v4211 = vadd.f32 %v3917, %v4159
        %v4212 = vadd.f32 %v3918, %v4164
        %v4213 = vadd.f32 %v3919, %v4167
        %v4214 = vadd.f32 %v3920, %v4172
        %v4215 = vadd.f32 %v3921, %v4175
        %v4216 = vadd.f32 %v3922, %v4180
        %v4217 = vadd.f32 %v3923, %v4183
        %v4218 = vld [vmem:[%s388 + $0x1] sm:$0xff]
        %v4219 = vld [vmem:[%s388 + $0x9] sm:$0xff]
        %v4220 = vld [vmem:[%s388 + $0x19] sm:$0xff]
        %v4221 = vld [vmem:[%s388 + $0x21] sm:$0xff]
        %v4222 = vld [vmem:[%s388 + $0x31] sm:$0xff]
        %v4223 = vld [vmem:[%s388 + $0x39] sm:$0xff]
        %v4224 = vld [vmem:[%s388 + $0x49] sm:$0xff]
        %v4225 = vld [vmem:[%s388 + $0x51] sm:$0xff]
        %v4226 = vld [vmem:[%s388 + $0x61] sm:$0xff]
        %v4227 = vld [vmem:[%s388 + $0x69] sm:$0xff]
        %v4228 = vld [vmem:[%s388 + $0x79] sm:$0xff]
        %v4229 = vld [vmem:[%s388 + $0x81] sm:$0xff]
        %v4230 = vld [vmem:[%s388 + $0x91] sm:$0xff]
        %v4231 = vld [vmem:[%s388 + $0x99] sm:$0xff]
        %v4232 = vld [vmem:[%s388 + $0xa9] sm:$0xff]
        %v4233 = vld [vmem:[%s388 + $0xb1] sm:$0xff]
        %v4234 = vld [vmem:[%s388 + $0xc1] sm:$0xff]
        %v4235 = vld [vmem:[%s388 + $0xc9] sm:$0xff]
        %v4236 = vld [vmem:[%s388 + $0xd9] sm:$0xff]
        %v4237 = vld [vmem:[%s388 + $0xe1] sm:$0xff]
        %v4238 = vld [vmem:[%s388 + $0xf1] sm:$0xff]
        %v4239 = vld [vmem:[%s388 + $0xf9] sm:$0xff]
        %v4240 = vld [vmem:[%s388 + $0x109] sm:$0xff]
        %v4241 = vld [vmem:[%s388 + $0x111] sm:$0xff]
        %v4242 = vld [vmem:[%s388 + $0x121] sm:$0xff]
        %v4243 = vld [vmem:[%s388 + $0x129] sm:$0xff]
        %v4244 = vld [vmem:[%s388 + $0x139] sm:$0xff]
        %v4245 = vld [vmem:[%s388 + $0x141] sm:$0xff]
        %v4246 = vld [vmem:[%s388 + $0x151] sm:$0xff]
        %v4247 = vld [vmem:[%s388 + $0x159] sm:$0xff]
        %v4248 = vld [vmem:[%s388 + $0x169] sm:$0xff]
        %v4249 = vld [vmem:[%s388 + $0x171] sm:$0xff]
        %v4250 = vpack.c.bf16 %v4219, %v4218
        %v4251 = vpack.c.bf16 %v4221, %v4220
        %v4252 = vpack.c.bf16 %v4223, %v4222
        %v4253 = vpack.c.bf16 %v4225, %v4224
        %v4254 = vpack.c.bf16 %v4227, %v4226
        %v4255 = vpack.c.bf16 %v4229, %v4228
        %v4256 = vpack.c.bf16 %v4231, %v4230
        %v4257 = vpack.c.bf16 %v4233, %v4232
        %v4258 = vpack.c.bf16 %v4235, %v4234
        %v4259 = vpack.c.bf16 %v4237, %v4236
        %v4260 = vpack.c.bf16 %v4239, %v4238
        %v4261 = vpack.c.bf16 %v4241, %v4240
        %v4262 = vpack.c.bf16 %v4243, %v4242
        %v4263 = vpack.c.bf16 %v4245, %v4244
        %v4264 = vpack.c.bf16 %v4247, %v4246
        %v4265 = vpack.c.bf16 %v4249, %v4248
        %s4266 = scalar_lea.vmem %s3, 8
        %v4267 = vld [vmem:[%s4266] sm:$0x3]
        %v4269 = vsel %vm278, %v4250, 0
        %v4272 = vsel %vm278, %v4251, 0
        %v4275 = vsel %vm278, %v4252, 0
        %v4278 = vsel %vm278, %v4253, 0
        %v4281 = vsel %vm278, %v4254, 0
        %v4284 = vsel %vm278, %v4255, 0
        %v4287 = vsel %vm278, %v4256, 0
        %v4290 = vsel %vm278, %v4257, 0
        %v4293 = vsel %vm278, %v4258, 0
        %v4296 = vsel %vm278, %v4259, 0
        %v4299 = vsel %vm278, %v4260, 0
        %v4302 = vsel %vm278, %v4261, 0
        %v4305 = vsel %vm278, %v4262, 0
        %v4308 = vsel %vm278, %v4263, 0
        %v4311 = vsel %vm278, %v4264, 0
        %v4314 = vsel %vm278, %v4265, 0
        %v4317 = vsel %vm568, %v4267, 0
        %4319 = vmatprep.subr.bf16.mxu0 0
        %4320 = vmatpush1.bf16.msra.mxu0 0
        %4321 = vmatprep.subr.bf16.mxu0 0
        %4322 = vmatpush1.bf16.msra.mxu0 0
        %4323 = vmatprep.subr.bf16.mxu0 0
        %4324 = vmatpush1.bf16.msra.mxu0 0
        %4325 = vmatprep.subr.bf16.mxu0 0
        %4326 = vmatpush1.bf16.msra.mxu0 0
        %4327 = vmatprep.subr.bf16.mxu0 0
        %4328 = vmatpush1.bf16.msra.mxu0 0
        %4329 = vmatprep.subr.bf16.mxu0 0
        %4330 = vmatpush1.bf16.msra.mxu0 0
        %4331 = vmatprep.subr.bf16.mxu0 0
        %4332 = vmatpush1.bf16.msra.mxu0 0
        %4333 = vmatprep.subr.bf16.mxu0 0
        %4334 = vmatpush1.bf16.msra.mxu0 %v4317
        %4335 = vmatprep.subr.bf16.mxu0 0
        %4336 = vmatpush2.bf16.msra.mxu0 0
        %4337 = vmatprep.subr.bf16.mxu0 0
        %4338 = vmatpush2.bf16.msra.mxu0 0
        %4339 = vmatprep.subr.bf16.mxu0 0
        %4340 = vmatpush2.bf16.msra.mxu0 0
        %4341 = vmatprep.subr.bf16.mxu0 0
        %4342 = vmatpush2.bf16.msra.mxu0 0
        %4343 = vmatprep.subr.bf16.mxu0 0
        %4344 = vmatpush2.bf16.msra.mxu0 0
        %4345 = vmatprep.subr.bf16.mxu0 0
        %4346 = vmatpush2.bf16.msra.mxu0 0
        %4347 = vmatprep.subr.bf16.mxu0 0
        %4348 = vmatpush2.bf16.msra.mxu0 0
        %4349 = vmatprep.subr.bf16.mxu0 0
        %4350 = vmatpush2.bf16.msra.mxu0 0
        %4351 = vmatprep.mubr.bf16.mxu0 0
        %4352 = vmatmul.mubr.bf16.gmra.mxu0 %v4269
        %v4353 = vpop.f32.mrf.mxu0
        %v4354 = vadd.f32 0.0, %v4353
        %v4355 = vpop.f32.mrf.mxu0
        %v4356 = vpop.f32.mrf.mxu0
        %v4357 = vadd.f32 0.0, %v4356
        %v4358 = vpop.f32.mrf.mxu0
        %4359 = vmatprep.mubr.bf16.mxu0 0
        %4360 = vmatmul.mubr.bf16.gmra.mxu0 %v4272
        %v4361 = vpop.f32.mrf.mxu0
        %v4362 = vadd.f32 0.0, %v4361
        %v4363 = vpop.f32.mrf.mxu0
        %v4364 = vpop.f32.mrf.mxu0
        %v4365 = vadd.f32 0.0, %v4364
        %v4366 = vpop.f32.mrf.mxu0
        %4367 = vmatprep.mubr.bf16.mxu0 0
        %4368 = vmatmul.mubr.bf16.gmra.mxu0 %v4275
        %v4369 = vpop.f32.mrf.mxu0
        %v4370 = vadd.f32 0.0, %v4369
        %v4371 = vpop.f32.mrf.mxu0
        %v4372 = vpop.f32.mrf.mxu0
        %v4373 = vadd.f32 0.0, %v4372
        %v4374 = vpop.f32.mrf.mxu0
        %4375 = vmatprep.mubr.bf16.mxu0 0
        %4376 = vmatmul.mubr.bf16.gmra.mxu0 %v4278
        %v4377 = vpop.f32.mrf.mxu0
        %v4378 = vadd.f32 0.0, %v4377
        %v4379 = vpop.f32.mrf.mxu0
        %v4380 = vpop.f32.mrf.mxu0
        %v4381 = vadd.f32 0.0, %v4380
        %v4382 = vpop.f32.mrf.mxu0
        %4383 = vmatprep.mubr.bf16.mxu0 0
        %4384 = vmatmul.mubr.bf16.gmra.mxu0 %v4281
        %v4385 = vpop.f32.mrf.mxu0
        %v4386 = vadd.f32 0.0, %v4385
        %v4387 = vpop.f32.mrf.mxu0
        %v4388 = vpop.f32.mrf.mxu0
        %v4389 = vadd.f32 0.0, %v4388
        %v4390 = vpop.f32.mrf.mxu0
        %4391 = vmatprep.mubr.bf16.mxu0 0
        %4392 = vmatmul.mubr.bf16.gmra.mxu0 %v4284
        %v4393 = vpop.f32.mrf.mxu0
        %v4394 = vadd.f32 0.0, %v4393
        %v4395 = vpop.f32.mrf.mxu0
        %v4396 = vpop.f32.mrf.mxu0
        %v4397 = vadd.f32 0.0, %v4396
        %v4398 = vpop.f32.mrf.mxu0
        %4399 = vmatprep.mubr.bf16.mxu0 0
        %4400 = vmatmul.mubr.bf16.gmra.mxu0 %v4287
        %v4401 = vpop.f32.mrf.mxu0
        %v4402 = vadd.f32 0.0, %v4401
        %v4403 = vpop.f32.mrf.mxu0
        %v4404 = vpop.f32.mrf.mxu0
        %v4405 = vadd.f32 0.0, %v4404
        %v4406 = vpop.f32.mrf.mxu0
        %4407 = vmatprep.mubr.bf16.mxu0 0
        %4408 = vmatmul.mubr.bf16.gmra.mxu0 %v4290
        %v4409 = vpop.f32.mrf.mxu0
        %v4410 = vadd.f32 0.0, %v4409
        %v4411 = vpop.f32.mrf.mxu0
        %v4412 = vpop.f32.mrf.mxu0
        %v4413 = vadd.f32 0.0, %v4412
        %v4414 = vpop.f32.mrf.mxu0
        %4415 = vmatprep.mubr.bf16.mxu0 0
        %4416 = vmatmul.mubr.bf16.gmra.mxu0 %v4293
        %v4417 = vpop.f32.mrf.mxu0
        %v4418 = vadd.f32 0.0, %v4417
        %v4419 = vpop.f32.mrf.mxu0
        %v4420 = vpop.f32.mrf.mxu0
        %v4421 = vadd.f32 0.0, %v4420
        %v4422 = vpop.f32.mrf.mxu0
        %4423 = vmatprep.mubr.bf16.mxu0 0
        %4424 = vmatmul.mubr.bf16.gmra.mxu0 %v4296
        %v4425 = vpop.f32.mrf.mxu0
        %v4426 = vadd.f32 0.0, %v4425
        %v4427 = vpop.f32.mrf.mxu0
        %v4428 = vpop.f32.mrf.mxu0
        %v4429 = vadd.f32 0.0, %v4428
        %v4430 = vpop.f32.mrf.mxu0
        %4431 = vmatprep.mubr.bf16.mxu0 0
        %4432 = vmatmul.mubr.bf16.gmra.mxu0 %v4299
        %v4433 = vpop.f32.mrf.mxu0
        %v4434 = vadd.f32 0.0, %v4433
        %v4435 = vpop.f32.mrf.mxu0
        %v4436 = vpop.f32.mrf.mxu0
        %v4437 = vadd.f32 0.0, %v4436
        %v4438 = vpop.f32.mrf.mxu0
        %4439 = vmatprep.mubr.bf16.mxu0 0
        %4440 = vmatmul.mubr.bf16.gmra.mxu0 %v4302
        %v4441 = vpop.f32.mrf.mxu0
        %v4442 = vadd.f32 0.0, %v4441
        %v4443 = vpop.f32.mrf.mxu0
        %v4444 = vpop.f32.mrf.mxu0
        %v4445 = vadd.f32 0.0, %v4444
        %v4446 = vpop.f32.mrf.mxu0
        %4447 = vmatprep.mubr.bf16.mxu0 0
        %4448 = vmatmul.mubr.bf16.gmra.mxu0 %v4305
        %v4449 = vpop.f32.mrf.mxu0
        %v4450 = vadd.f32 0.0, %v4449
        %v4451 = vpop.f32.mrf.mxu0
        %v4452 = vpop.f32.mrf.mxu0
        %v4453 = vadd.f32 0.0, %v4452
        %v4454 = vpop.f32.mrf.mxu0
        %4455 = vmatprep.mubr.bf16.mxu0 0
        %4456 = vmatmul.mubr.bf16.gmra.mxu0 %v4308
        %v4457 = vpop.f32.mrf.mxu0
        %v4458 = vadd.f32 0.0, %v4457
        %v4459 = vpop.f32.mrf.mxu0
        %v4460 = vpop.f32.mrf.mxu0
        %v4461 = vadd.f32 0.0, %v4460
        %v4462 = vpop.f32.mrf.mxu0
        %4463 = vmatprep.mubr.bf16.mxu0 0
        %4464 = vmatmul.mubr.bf16.gmra.mxu0 %v4311
        %v4465 = vpop.f32.mrf.mxu0
        %v4466 = vadd.f32 0.0, %v4465
        %v4467 = vpop.f32.mrf.mxu0
        %v4468 = vpop.f32.mrf.mxu0
        %v4469 = vadd.f32 0.0, %v4468
        %v4470 = vpop.f32.mrf.mxu0
        %4471 = vmatprep.mubr.bf16.mxu0 0
        %4472 = vmatmul.mubr.bf16.gmra.mxu0 %v4314
        %v4473 = vpop.f32.mrf.mxu0
        %v4474 = vadd.f32 0.0, %v4473
        %v4475 = vpop.f32.mrf.mxu0
        %v4476 = vpop.f32.mrf.mxu0
        %v4477 = vadd.f32 0.0, %v4476
        %v4478 = vpop.f32.mrf.mxu0
        %4479 = vdwg.mxu0
        %v4480 = vadd.f32 %v4186, %v4354
        %v4481 = vadd.f32 %v4187, %v4357
        %v4482 = vadd.f32 %v4188, %v4362
        %v4483 = vadd.f32 %v4189, %v4365
        %v4484 = vadd.f32 %v4190, %v4370
        %v4485 = vadd.f32 %v4191, %v4373
        %v4486 = vadd.f32 %v4192, %v4378
        %v4487 = vadd.f32 %v4193, %v4381
        %v4488 = vadd.f32 %v4194, %v4386
        %v4489 = vadd.f32 %v4195, %v4389
        %v4490 = vadd.f32 %v4196, %v4394
        %v4491 = vadd.f32 %v4197, %v4397
        %v4492 = vadd.f32 %v4198, %v4402
        %v4493 = vadd.f32 %v4199, %v4405
        %v4494 = vadd.f32 %v4200, %v4410
        %v4495 = vadd.f32 %v4201, %v4413
        %v4496 = vadd.f32 %v4202, %v4418
        %v4497 = vadd.f32 %v4203, %v4421
        %v4498 = vadd.f32 %v4204, %v4426
        %v4499 = vadd.f32 %v4205, %v4429
        %v4500 = vadd.f32 %v4206, %v4434
        %v4501 = vadd.f32 %v4207, %v4437
        %v4502 = vadd.f32 %v4208, %v4442
        %v4503 = vadd.f32 %v4209, %v4445
        %v4504 = vadd.f32 %v4210, %v4450
        %v4505 = vadd.f32 %v4211, %v4453
        %v4506 = vadd.f32 %v4212, %v4458
        %v4507 = vadd.f32 %v4213, %v4461
        %v4508 = vadd.f32 %v4214, %v4466
        %v4509 = vadd.f32 %v4215, %v4469
        %v4510 = vadd.f32 %v4216, %v4474
        %v4511 = vadd.f32 %v4217, %v4477
        %v4512 = vld [vmem:[%s388 + $0x2] sm:$0xff]
        %v4513 = vld [vmem:[%s388 + $0xa] sm:$0xff]
        %v4514 = vld [vmem:[%s388 + $0x1a] sm:$0xff]
        %v4515 = vld [vmem:[%s388 + $0x22] sm:$0xff]
        %v4516 = vld [vmem:[%s388 + $0x32] sm:$0xff]
        %v4517 = vld [vmem:[%s388 + $0x3a] sm:$0xff]
        %v4518 = vld [vmem:[%s388 + $0x4a] sm:$0xff]
        %v4519 = vld [vmem:[%s388 + $0x52] sm:$0xff]
        %v4520 = vld [vmem:[%s388 + $0x62] sm:$0xff]
        %v4521 = vld [vmem:[%s388 + $0x6a] sm:$0xff]
        %v4522 = vld [vmem:[%s388 + $0x7a] sm:$0xff]
        %v4523 = vld [vmem:[%s388 + $0x82] sm:$0xff]
        %v4524 = vld [vmem:[%s388 + $0x92] sm:$0xff]
        %v4525 = vld [vmem:[%s388 + $0x9a] sm:$0xff]
        %v4526 = vld [vmem:[%s388 + $0xaa] sm:$0xff]
        %v4527 = vld [vmem:[%s388 + $0xb2] sm:$0xff]
        %v4528 = vld [vmem:[%s388 + $0xc2] sm:$0xff]
        %v4529 = vld [vmem:[%s388 + $0xca] sm:$0xff]
        %v4530 = vld [vmem:[%s388 + $0xda] sm:$0xff]
        %v4531 = vld [vmem:[%s388 + $0xe2] sm:$0xff]
        %v4532 = vld [vmem:[%s388 + $0xf2] sm:$0xff]
        %v4533 = vld [vmem:[%s388 + $0xfa] sm:$0xff]
        %v4534 = vld [vmem:[%s388 + $0x10a] sm:$0xff]
        %v4535 = vld [vmem:[%s388 + $0x112] sm:$0xff]
        %v4536 = vld [vmem:[%s388 + $0x122] sm:$0xff]
        %v4537 = vld [vmem:[%s388 + $0x12a] sm:$0xff]
        %v4538 = vld [vmem:[%s388 + $0x13a] sm:$0xff]
        %v4539 = vld [vmem:[%s388 + $0x142] sm:$0xff]
        %v4540 = vld [vmem:[%s388 + $0x152] sm:$0xff]
        %v4541 = vld [vmem:[%s388 + $0x15a] sm:$0xff]
        %v4542 = vld [vmem:[%s388 + $0x16a] sm:$0xff]
        %v4543 = vld [vmem:[%s388 + $0x172] sm:$0xff]
        %v4544 = vpack.c.bf16 %v4513, %v4512
        %v4545 = vpack.c.bf16 %v4515, %v4514
        %v4546 = vpack.c.bf16 %v4517, %v4516
        %v4547 = vpack.c.bf16 %v4519, %v4518
        %v4548 = vpack.c.bf16 %v4521, %v4520
        %v4549 = vpack.c.bf16 %v4523, %v4522
        %v4550 = vpack.c.bf16 %v4525, %v4524
        %v4551 = vpack.c.bf16 %v4527, %v4526
        %v4552 = vpack.c.bf16 %v4529, %v4528
        %v4553 = vpack.c.bf16 %v4531, %v4530
        %v4554 = vpack.c.bf16 %v4533, %v4532
        %v4555 = vpack.c.bf16 %v4535, %v4534
        %v4556 = vpack.c.bf16 %v4537, %v4536
        %v4557 = vpack.c.bf16 %v4539, %v4538
        %v4558 = vpack.c.bf16 %v4541, %v4540
        %v4559 = vpack.c.bf16 %v4543, %v4542
        %s4560 = scalar_lea.vmem %s3, 10
        %v4561 = vld [vmem:[%s4560] sm:$0x3]
        %v4563 = vsel %vm278, %v4544, 0
        %v4566 = vsel %vm278, %v4545, 0
        %v4569 = vsel %vm278, %v4546, 0
        %v4572 = vsel %vm278, %v4547, 0
        %v4575 = vsel %vm278, %v4548, 0
        %v4578 = vsel %vm278, %v4549, 0
        %v4581 = vsel %vm278, %v4550, 0
        %v4584 = vsel %vm278, %v4551, 0
        %v4587 = vsel %vm278, %v4552, 0
        %v4590 = vsel %vm278, %v4553, 0
        %v4593 = vsel %vm278, %v4554, 0
        %v4596 = vsel %vm278, %v4555, 0
        %v4599 = vsel %vm278, %v4556, 0
        %v4602 = vsel %vm278, %v4557, 0
        %v4605 = vsel %vm278, %v4558, 0
        %v4608 = vsel %vm278, %v4559, 0
        %v4611 = vsel %vm568, %v4561, 0
        %4613 = vmatprep.subr.bf16.mxu0 0
        %4614 = vmatpush1.bf16.msra.mxu0 0
        %4615 = vmatprep.subr.bf16.mxu0 0
        %4616 = vmatpush1.bf16.msra.mxu0 0
        %4617 = vmatprep.subr.bf16.mxu0 0
        %4618 = vmatpush1.bf16.msra.mxu0 0
        %4619 = vmatprep.subr.bf16.mxu0 0
        %4620 = vmatpush1.bf16.msra.mxu0 0
        %4621 = vmatprep.subr.bf16.mxu0 0
        %4622 = vmatpush1.bf16.msra.mxu0 0
        %4623 = vmatprep.subr.bf16.mxu0 0
        %4624 = vmatpush1.bf16.msra.mxu0 0
        %4625 = vmatprep.subr.bf16.mxu0 0
        %4626 = vmatpush1.bf16.msra.mxu0 0
        %4627 = vmatprep.subr.bf16.mxu0 0
        %4628 = vmatpush1.bf16.msra.mxu0 %v4611
        %4629 = vmatprep.subr.bf16.mxu0 0
        %4630 = vmatpush2.bf16.msra.mxu0 0
        %4631 = vmatprep.subr.bf16.mxu0 0
        %4632 = vmatpush2.bf16.msra.mxu0 0
        %4633 = vmatprep.subr.bf16.mxu0 0
        %4634 = vmatpush2.bf16.msra.mxu0 0
        %4635 = vmatprep.subr.bf16.mxu0 0
        %4636 = vmatpush2.bf16.msra.mxu0 0
        %4637 = vmatprep.subr.bf16.mxu0 0
        %4638 = vmatpush2.bf16.msra.mxu0 0
        %4639 = vmatprep.subr.bf16.mxu0 0
        %4640 = vmatpush2.bf16.msra.mxu0 0
        %4641 = vmatprep.subr.bf16.mxu0 0
        %4642 = vmatpush2.bf16.msra.mxu0 0
        %4643 = vmatprep.subr.bf16.mxu0 0
        %4644 = vmatpush2.bf16.msra.mxu0 0
        %4645 = vmatprep.mubr.bf16.mxu0 0
        %4646 = vmatmul.mubr.bf16.gmra.mxu0 %v4563
        %v4647 = vpop.f32.mrf.mxu0
        %v4648 = vadd.f32 0.0, %v4647
        %v4649 = vpop.f32.mrf.mxu0
        %v4650 = vpop.f32.mrf.mxu0
        %v4651 = vadd.f32 0.0, %v4650
        %v4652 = vpop.f32.mrf.mxu0
        %4653 = vmatprep.mubr.bf16.mxu0 0
        %4654 = vmatmul.mubr.bf16.gmra.mxu0 %v4566
        %v4655 = vpop.f32.mrf.mxu0
        %v4656 = vadd.f32 0.0, %v4655
        %v4657 = vpop.f32.mrf.mxu0
        %v4658 = vpop.f32.mrf.mxu0
        %v4659 = vadd.f32 0.0, %v4658
        %v4660 = vpop.f32.mrf.mxu0
        %4661 = vmatprep.mubr.bf16.mxu0 0
        %4662 = vmatmul.mubr.bf16.gmra.mxu0 %v4569
        %v4663 = vpop.f32.mrf.mxu0
        %v4664 = vadd.f32 0.0, %v4663
        %v4665 = vpop.f32.mrf.mxu0
        %v4666 = vpop.f32.mrf.mxu0
        %v4667 = vadd.f32 0.0, %v4666
        %v4668 = vpop.f32.mrf.mxu0
        %4669 = vmatprep.mubr.bf16.mxu0 0
        %4670 = vmatmul.mubr.bf16.gmra.mxu0 %v4572
        %v4671 = vpop.f32.mrf.mxu0
        %v4672 = vadd.f32 0.0, %v4671
        %v4673 = vpop.f32.mrf.mxu0
        %v4674 = vpop.f32.mrf.mxu0
        %v4675 = vadd.f32 0.0, %v4674
        %v4676 = vpop.f32.mrf.mxu0
        %4677 = vmatprep.mubr.bf16.mxu0 0
        %4678 = vmatmul.mubr.bf16.gmra.mxu0 %v4575
        %v4679 = vpop.f32.mrf.mxu0
        %v4680 = vadd.f32 0.0, %v4679
        %v4681 = vpop.f32.mrf.mxu0
        %v4682 = vpop.f32.mrf.mxu0
        %v4683 = vadd.f32 0.0, %v4682
        %v4684 = vpop.f32.mrf.mxu0
        %4685 = vmatprep.mubr.bf16.mxu0 0
        %4686 = vmatmul.mubr.bf16.gmra.mxu0 %v4578
        %v4687 = vpop.f32.mrf.mxu0
        %v4688 = vadd.f32 0.0, %v4687
        %v4689 = vpop.f32.mrf.mxu0
        %v4690 = vpop.f32.mrf.mxu0
        %v4691 = vadd.f32 0.0, %v4690
        %v4692 = vpop.f32.mrf.mxu0
        %4693 = vmatprep.mubr.bf16.mxu0 0
        %4694 = vmatmul.mubr.bf16.gmra.mxu0 %v4581
        %v4695 = vpop.f32.mrf.mxu0
        %v4696 = vadd.f32 0.0, %v4695
        %v4697 = vpop.f32.mrf.mxu0
        %v4698 = vpop.f32.mrf.mxu0
        %v4699 = vadd.f32 0.0, %v4698
        %v4700 = vpop.f32.mrf.mxu0
        %4701 = vmatprep.mubr.bf16.mxu0 0
        %4702 = vmatmul.mubr.bf16.gmra.mxu0 %v4584
        %v4703 = vpop.f32.mrf.mxu0
        %v4704 = vadd.f32 0.0, %v4703
        %v4705 = vpop.f32.mrf.mxu0
        %v4706 = vpop.f32.mrf.mxu0
        %v4707 = vadd.f32 0.0, %v4706
        %v4708 = vpop.f32.mrf.mxu0
        %4709 = vmatprep.mubr.bf16.mxu0 0
        %4710 = vmatmul.mubr.bf16.gmra.mxu0 %v4587
        %v4711 = vpop.f32.mrf.mxu0
        %v4712 = vadd.f32 0.0, %v4711
        %v4713 = vpop.f32.mrf.mxu0
        %v4714 = vpop.f32.mrf.mxu0
        %v4715 = vadd.f32 0.0, %v4714
        %v4716 = vpop.f32.mrf.mxu0
        %4717 = vmatprep.mubr.bf16.mxu0 0
        %4718 = vmatmul.mubr.bf16.gmra.mxu0 %v4590
        %v4719 = vpop.f32.mrf.mxu0
        %v4720 = vadd.f32 0.0, %v4719
        %v4721 = vpop.f32.mrf.mxu0
        %v4722 = vpop.f32.mrf.mxu0
        %v4723 = vadd.f32 0.0, %v4722
        %v4724 = vpop.f32.mrf.mxu0
        %4725 = vmatprep.mubr.bf16.mxu0 0
        %4726 = vmatmul.mubr.bf16.gmra.mxu0 %v4593
        %v4727 = vpop.f32.mrf.mxu0
        %v4728 = vadd.f32 0.0, %v4727
        %v4729 = vpop.f32.mrf.mxu0
        %v4730 = vpop.f32.mrf.mxu0
        %v4731 = vadd.f32 0.0, %v4730
        %v4732 = vpop.f32.mrf.mxu0
        %4733 = vmatprep.mubr.bf16.mxu0 0
        %4734 = vmatmul.mubr.bf16.gmra.mxu0 %v4596
        %v4735 = vpop.f32.mrf.mxu0
        %v4736 = vadd.f32 0.0, %v4735
        %v4737 = vpop.f32.mrf.mxu0
        %v4738 = vpop.f32.mrf.mxu0
        %v4739 = vadd.f32 0.0, %v4738
        %v4740 = vpop.f32.mrf.mxu0
        %4741 = vmatprep.mubr.bf16.mxu0 0
        %4742 = vmatmul.mubr.bf16.gmra.mxu0 %v4599
        %v4743 = vpop.f32.mrf.mxu0
        %v4744 = vadd.f32 0.0, %v4743
        %v4745 = vpop.f32.mrf.mxu0
        %v4746 = vpop.f32.mrf.mxu0
        %v4747 = vadd.f32 0.0, %v4746
        %v4748 = vpop.f32.mrf.mxu0
        %4749 = vmatprep.mubr.bf16.mxu0 0
        %4750 = vmatmul.mubr.bf16.gmra.mxu0 %v4602
        %v4751 = vpop.f32.mrf.mxu0
        %v4752 = vadd.f32 0.0, %v4751
        %v4753 = vpop.f32.mrf.mxu0
        %v4754 = vpop.f32.mrf.mxu0
        %v4755 = vadd.f32 0.0, %v4754
        %v4756 = vpop.f32.mrf.mxu0
        %4757 = vmatprep.mubr.bf16.mxu0 0
        %4758 = vmatmul.mubr.bf16.gmra.mxu0 %v4605
        %v4759 = vpop.f32.mrf.mxu0
        %v4760 = vadd.f32 0.0, %v4759
        %v4761 = vpop.f32.mrf.mxu0
        %v4762 = vpop.f32.mrf.mxu0
        %v4763 = vadd.f32 0.0, %v4762
        %v4764 = vpop.f32.mrf.mxu0
        %4765 = vmatprep.mubr.bf16.mxu0 0
        %4766 = vmatmul.mubr.bf16.gmra.mxu0 %v4608
        %v4767 = vpop.f32.mrf.mxu0
        %v4768 = vadd.f32 0.0, %v4767
        %v4769 = vpop.f32.mrf.mxu0
        %v4770 = vpop.f32.mrf.mxu0
        %v4771 = vadd.f32 0.0, %v4770
        %v4772 = vpop.f32.mrf.mxu0
        %4773 = vdwg.mxu0
        %v4774 = vadd.f32 %v4480, %v4648
        %v4775 = vadd.f32 %v4481, %v4651
        %v4776 = vadd.f32 %v4482, %v4656
        %v4777 = vadd.f32 %v4483, %v4659
        %v4778 = vadd.f32 %v4484, %v4664
        %v4779 = vadd.f32 %v4485, %v4667
        %v4780 = vadd.f32 %v4486, %v4672
        %v4781 = vadd.f32 %v4487, %v4675
        %v4782 = vadd.f32 %v4488, %v4680
        %v4783 = vadd.f32 %v4489, %v4683
        %v4784 = vadd.f32 %v4490, %v4688
        %v4785 = vadd.f32 %v4491, %v4691
        %v4786 = vadd.f32 %v4492, %v4696
        %v4787 = vadd.f32 %v4493, %v4699
        %v4788 = vadd.f32 %v4494, %v4704
        %v4789 = vadd.f32 %v4495, %v4707
        %v4790 = vadd.f32 %v4496, %v4712
        %v4791 = vadd.f32 %v4497, %v4715
        %v4792 = vadd.f32 %v4498, %v4720
        %v4793 = vadd.f32 %v4499, %v4723
        %v4794 = vadd.f32 %v4500, %v4728
        %v4795 = vadd.f32 %v4501, %v4731
        %v4796 = vadd.f32 %v4502, %v4736
        %v4797 = vadd.f32 %v4503, %v4739
        %v4798 = vadd.f32 %v4504, %v4744
        %v4799 = vadd.f32 %v4505, %v4747
        %v4800 = vadd.f32 %v4506, %v4752
        %v4801 = vadd.f32 %v4507, %v4755
        %v4802 = vadd.f32 %v4508, %v4760
        %v4803 = vadd.f32 %v4509, %v4763
        %v4804 = vadd.f32 %v4510, %v4768
        %v4805 = vadd.f32 %v4511, %v4771
        %v4806 = vld [vmem:[%s2121] sm:$0xff]
        %v4807 = vld [vmem:[%s2121 + $0x8] sm:$0xff]
        %v4808 = vld [vmem:[%s2121 + $0x18] sm:$0xff]
        %v4809 = vld [vmem:[%s2121 + $0x20] sm:$0xff]
        %v4810 = vld [vmem:[%s2121 + $0x30] sm:$0xff]
        %v4811 = vld [vmem:[%s2121 + $0x38] sm:$0xff]
        %v4812 = vld [vmem:[%s2121 + $0x48] sm:$0xff]
        %v4813 = vld [vmem:[%s2121 + $0x50] sm:$0xff]
        %v4814 = vld [vmem:[%s2121 + $0x60] sm:$0xff]
        %v4815 = vld [vmem:[%s2121 + $0x68] sm:$0xff]
        %v4816 = vld [vmem:[%s2121 + $0x78] sm:$0xff]
        %v4817 = vld [vmem:[%s2121 + $0x80] sm:$0xff]
        %v4818 = vld [vmem:[%s2121 + $0x90] sm:$0xff]
        %v4819 = vld [vmem:[%s2121 + $0x98] sm:$0xff]
        %v4820 = vld [vmem:[%s2121 + $0xa8] sm:$0xff]
        %v4821 = vld [vmem:[%s2121 + $0xb0] sm:$0xff]
        %v4822 = vld [vmem:[%s2121 + $0xc0] sm:$0xff]
        %v4823 = vld [vmem:[%s2121 + $0xc8] sm:$0xff]
        %v4824 = vld [vmem:[%s2121 + $0xd8] sm:$0xff]
        %v4825 = vld [vmem:[%s2121 + $0xe0] sm:$0xff]
        %v4826 = vld [vmem:[%s2121 + $0xf0] sm:$0xff]
        %v4827 = vld [vmem:[%s2121 + $0xf8] sm:$0xff]
        %v4828 = vld [vmem:[%s2121 + $0x108] sm:$0xff]
        %v4829 = vld [vmem:[%s2121 + $0x110] sm:$0xff]
        %v4830 = vld [vmem:[%s2121 + $0x120] sm:$0xff]
        %v4831 = vld [vmem:[%s2121 + $0x128] sm:$0xff]
        %v4832 = vld [vmem:[%s2121 + $0x138] sm:$0xff]
        %v4833 = vld [vmem:[%s2121 + $0x140] sm:$0xff]
        %v4834 = vld [vmem:[%s2121 + $0x150] sm:$0xff]
        %v4835 = vld [vmem:[%s2121 + $0x158] sm:$0xff]
        %v4836 = vld [vmem:[%s2121 + $0x168] sm:$0xff]
        %v4837 = vld [vmem:[%s2121 + $0x170] sm:$0xff]
        %v4838 = vpack.c.bf16 %v4807, %v4806
        %v4839 = vpack.c.bf16 %v4809, %v4808
        %v4840 = vpack.c.bf16 %v4811, %v4810
        %v4841 = vpack.c.bf16 %v4813, %v4812
        %v4842 = vpack.c.bf16 %v4815, %v4814
        %v4843 = vpack.c.bf16 %v4817, %v4816
        %v4844 = vpack.c.bf16 %v4819, %v4818
        %v4845 = vpack.c.bf16 %v4821, %v4820
        %v4846 = vpack.c.bf16 %v4823, %v4822
        %v4847 = vpack.c.bf16 %v4825, %v4824
        %v4848 = vpack.c.bf16 %v4827, %v4826
        %v4849 = vpack.c.bf16 %v4829, %v4828
        %v4850 = vpack.c.bf16 %v4831, %v4830
        %v4851 = vpack.c.bf16 %v4833, %v4832
        %v4852 = vpack.c.bf16 %v4835, %v4834
        %v4853 = vpack.c.bf16 %v4837, %v4836
        %s4854 = scalar_lea.vmem %s3, 12
        %v4855 = vld [vmem:[%s4854] sm:$0x3]
        %v4857 = vsel %vm278, %v4838, 0
        %v4860 = vsel %vm278, %v4839, 0
        %v4863 = vsel %vm278, %v4840, 0
        %v4866 = vsel %vm278, %v4841, 0
        %v4869 = vsel %vm278, %v4842, 0
        %v4872 = vsel %vm278, %v4843, 0
        %v4875 = vsel %vm278, %v4844, 0
        %v4878 = vsel %vm278, %v4845, 0
        %v4881 = vsel %vm278, %v4846, 0
        %v4884 = vsel %vm278, %v4847, 0
        %v4887 = vsel %vm278, %v4848, 0
        %v4890 = vsel %vm278, %v4849, 0
        %v4893 = vsel %vm278, %v4850, 0
        %v4896 = vsel %vm278, %v4851, 0
        %v4899 = vsel %vm278, %v4852, 0
        %v4902 = vsel %vm278, %v4853, 0
        %v4905 = vsel %vm568, %v4855, 0
        %4907 = vmatprep.subr.bf16.mxu0 0
        %4908 = vmatpush1.bf16.msra.mxu0 0
        %4909 = vmatprep.subr.bf16.mxu0 0
        %4910 = vmatpush1.bf16.msra.mxu0 0
        %4911 = vmatprep.subr.bf16.mxu0 0
        %4912 = vmatpush1.bf16.msra.mxu0 0
        %4913 = vmatprep.subr.bf16.mxu0 0
        %4914 = vmatpush1.bf16.msra.mxu0 0
        %4915 = vmatprep.subr.bf16.mxu0 0
        %4916 = vmatpush1.bf16.msra.mxu0 0
        %4917 = vmatprep.subr.bf16.mxu0 0
        %4918 = vmatpush1.bf16.msra.mxu0 0
        %4919 = vmatprep.subr.bf16.mxu0 0
        %4920 = vmatpush1.bf16.msra.mxu0 0
        %4921 = vmatprep.subr.bf16.mxu0 0
        %4922 = vmatpush1.bf16.msra.mxu0 %v4905
        %4923 = vmatprep.subr.bf16.mxu0 0
        %4924 = vmatpush2.bf16.msra.mxu0 0
        %4925 = vmatprep.subr.bf16.mxu0 0
        %4926 = vmatpush2.bf16.msra.mxu0 0
        %4927 = vmatprep.subr.bf16.mxu0 0
        %4928 = vmatpush2.bf16.msra.mxu0 0
        %4929 = vmatprep.subr.bf16.mxu0 0
        %4930 = vmatpush2.bf16.msra.mxu0 0
        %4931 = vmatprep.subr.bf16.mxu0 0
        %4932 = vmatpush2.bf16.msra.mxu0 0
        %4933 = vmatprep.subr.bf16.mxu0 0
        %4934 = vmatpush2.bf16.msra.mxu0 0
        %4935 = vmatprep.subr.bf16.mxu0 0
        %4936 = vmatpush2.bf16.msra.mxu0 0
        %4937 = vmatprep.subr.bf16.mxu0 0
        %4938 = vmatpush2.bf16.msra.mxu0 0
        %4939 = vmatprep.mubr.bf16.mxu0 0
        %4940 = vmatmul.mubr.bf16.gmra.mxu0 %v4857
        %v4941 = vpop.f32.mrf.mxu0
        %v4942 = vadd.f32 0.0, %v4941
        %v4943 = vpop.f32.mrf.mxu0
        %v4944 = vpop.f32.mrf.mxu0
        %v4945 = vadd.f32 0.0, %v4944
        %v4946 = vpop.f32.mrf.mxu0
        %4947 = vmatprep.mubr.bf16.mxu0 0
        %4948 = vmatmul.mubr.bf16.gmra.mxu0 %v4860
        %v4949 = vpop.f32.mrf.mxu0
        %v4950 = vadd.f32 0.0, %v4949
        %v4951 = vpop.f32.mrf.mxu0
        %v4952 = vpop.f32.mrf.mxu0
        %v4953 = vadd.f32 0.0, %v4952
        %v4954 = vpop.f32.mrf.mxu0
        %4955 = vmatprep.mubr.bf16.mxu0 0
        %4956 = vmatmul.mubr.bf16.gmra.mxu0 %v4863
        %v4957 = vpop.f32.mrf.mxu0
        %v4958 = vadd.f32 0.0, %v4957
        %v4959 = vpop.f32.mrf.mxu0
        %v4960 = vpop.f32.mrf.mxu0
        %v4961 = vadd.f32 0.0, %v4960
        %v4962 = vpop.f32.mrf.mxu0
        %4963 = vmatprep.mubr.bf16.mxu0 0
        %4964 = vmatmul.mubr.bf16.gmra.mxu0 %v4866
        %v4965 = vpop.f32.mrf.mxu0
        %v4966 = vadd.f32 0.0, %v4965
        %v4967 = vpop.f32.mrf.mxu0
        %v4968 = vpop.f32.mrf.mxu0
        %v4969 = vadd.f32 0.0, %v4968
        %v4970 = vpop.f32.mrf.mxu0
        %4971 = vmatprep.mubr.bf16.mxu0 0
        %4972 = vmatmul.mubr.bf16.gmra.mxu0 %v4869
        %v4973 = vpop.f32.mrf.mxu0
        %v4974 = vadd.f32 0.0, %v4973
        %v4975 = vpop.f32.mrf.mxu0
        %v4976 = vpop.f32.mrf.mxu0
        %v4977 = vadd.f32 0.0, %v4976
        %v4978 = vpop.f32.mrf.mxu0
        %4979 = vmatprep.mubr.bf16.mxu0 0
        %4980 = vmatmul.mubr.bf16.gmra.mxu0 %v4872
        %v4981 = vpop.f32.mrf.mxu0
        %v4982 = vadd.f32 0.0, %v4981
        %v4983 = vpop.f32.mrf.mxu0
        %v4984 = vpop.f32.mrf.mxu0
        %v4985 = vadd.f32 0.0, %v4984
        %v4986 = vpop.f32.mrf.mxu0
        %4987 = vmatprep.mubr.bf16.mxu0 0
        %4988 = vmatmul.mubr.bf16.gmra.mxu0 %v4875
        %v4989 = vpop.f32.mrf.mxu0
        %v4990 = vadd.f32 0.0, %v4989
        %v4991 = vpop.f32.mrf.mxu0
        %v4992 = vpop.f32.mrf.mxu0
        %v4993 = vadd.f32 0.0, %v4992
        %v4994 = vpop.f32.mrf.mxu0
        %4995 = vmatprep.mubr.bf16.mxu0 0
        %4996 = vmatmul.mubr.bf16.gmra.mxu0 %v4878
        %v4997 = vpop.f32.mrf.mxu0
        %v4998 = vadd.f32 0.0, %v4997
        %v4999 = vpop.f32.mrf.mxu0
        %v5000 = vpop.f32.mrf.mxu0
        %v5001 = vadd.f32 0.0, %v5000
        %v5002 = vpop.f32.mrf.mxu0
        %5003 = vmatprep.mubr.bf16.mxu0 0
        %5004 = vmatmul.mubr.bf16.gmra.mxu0 %v4881
        %v5005 = vpop.f32.mrf.mxu0
        %v5006 = vadd.f32 0.0, %v5005
        %v5007 = vpop.f32.mrf.mxu0
        %v5008 = vpop.f32.mrf.mxu0
        %v5009 = vadd.f32 0.0, %v5008
        %v5010 = vpop.f32.mrf.mxu0
        %5011 = vmatprep.mubr.bf16.mxu0 0
        %5012 = vmatmul.mubr.bf16.gmra.mxu0 %v4884
        %v5013 = vpop.f32.mrf.mxu0
        %v5014 = vadd.f32 0.0, %v5013
        %v5015 = vpop.f32.mrf.mxu0
        %v5016 = vpop.f32.mrf.mxu0
        %v5017 = vadd.f32 0.0, %v5016
        %v5018 = vpop.f32.mrf.mxu0
        %5019 = vmatprep.mubr.bf16.mxu0 0
        %5020 = vmatmul.mubr.bf16.gmra.mxu0 %v4887
        %v5021 = vpop.f32.mrf.mxu0
        %v5022 = vadd.f32 0.0, %v5021
        %v5023 = vpop.f32.mrf.mxu0
        %v5024 = vpop.f32.mrf.mxu0
        %v5025 = vadd.f32 0.0, %v5024
        %v5026 = vpop.f32.mrf.mxu0
        %5027 = vmatprep.mubr.bf16.mxu0 0
        %5028 = vmatmul.mubr.bf16.gmra.mxu0 %v4890
        %v5029 = vpop.f32.mrf.mxu0
        %v5030 = vadd.f32 0.0, %v5029
        %v5031 = vpop.f32.mrf.mxu0
        %v5032 = vpop.f32.mrf.mxu0
        %v5033 = vadd.f32 0.0, %v5032
        %v5034 = vpop.f32.mrf.mxu0
        %5035 = vmatprep.mubr.bf16.mxu0 0
        %5036 = vmatmul.mubr.bf16.gmra.mxu0 %v4893
        %v5037 = vpop.f32.mrf.mxu0
        %v5038 = vadd.f32 0.0, %v5037
        %v5039 = vpop.f32.mrf.mxu0
        %v5040 = vpop.f32.mrf.mxu0
        %v5041 = vadd.f32 0.0, %v5040
        %v5042 = vpop.f32.mrf.mxu0
        %5043 = vmatprep.mubr.bf16.mxu0 0
        %5044 = vmatmul.mubr.bf16.gmra.mxu0 %v4896
        %v5045 = vpop.f32.mrf.mxu0
        %v5046 = vadd.f32 0.0, %v5045
        %v5047 = vpop.f32.mrf.mxu0
        %v5048 = vpop.f32.mrf.mxu0
        %v5049 = vadd.f32 0.0, %v5048
        %v5050 = vpop.f32.mrf.mxu0
        %5051 = vmatprep.mubr.bf16.mxu0 0
        %5052 = vmatmul.mubr.bf16.gmra.mxu0 %v4899
        %v5053 = vpop.f32.mrf.mxu0
        %v5054 = vadd.f32 0.0, %v5053
        %v5055 = vpop.f32.mrf.mxu0
        %v5056 = vpop.f32.mrf.mxu0
        %v5057 = vadd.f32 0.0, %v5056
        %v5058 = vpop.f32.mrf.mxu0
        %5059 = vmatprep.mubr.bf16.mxu0 0
        %5060 = vmatmul.mubr.bf16.gmra.mxu0 %v4902
        %v5061 = vpop.f32.mrf.mxu0
        %v5062 = vadd.f32 0.0, %v5061
        %v5063 = vpop.f32.mrf.mxu0
        %v5064 = vpop.f32.mrf.mxu0
        %v5065 = vadd.f32 0.0, %v5064
        %v5066 = vpop.f32.mrf.mxu0
        %5067 = vdwg.mxu0
        %v5068 = vadd.f32 %v4774, %v4942
        %v5069 = vadd.f32 %v4775, %v4945
        %v5070 = vadd.f32 %v4776, %v4950
        %v5071 = vadd.f32 %v4777, %v4953
        %v5072 = vadd.f32 %v4778, %v4958
        %v5073 = vadd.f32 %v4779, %v4961
        %v5074 = vadd.f32 %v4780, %v4966
        %v5075 = vadd.f32 %v4781, %v4969
        %v5076 = vadd.f32 %v4782, %v4974
        %v5077 = vadd.f32 %v4783, %v4977
        %v5078 = vadd.f32 %v4784, %v4982
        %v5079 = vadd.f32 %v4785, %v4985
        %v5080 = vadd.f32 %v4786, %v4990
        %v5081 = vadd.f32 %v4787, %v4993
        %v5082 = vadd.f32 %v4788, %v4998
        %v5083 = vadd.f32 %v4789, %v5001
        %v5084 = vadd.f32 %v4790, %v5006
        %v5085 = vadd.f32 %v4791, %v5009
        %v5086 = vadd.f32 %v4792, %v5014
        %v5087 = vadd.f32 %v4793, %v5017
        %v5088 = vadd.f32 %v4794, %v5022
        %v5089 = vadd.f32 %v4795, %v5025
        %v5090 = vadd.f32 %v4796, %v5030
        %v5091 = vadd.f32 %v4797, %v5033
        %v5092 = vadd.f32 %v4798, %v5038
        %v5093 = vadd.f32 %v4799, %v5041
        %v5094 = vadd.f32 %v4800, %v5046
        %v5095 = vadd.f32 %v4801, %v5049
        %v5096 = vadd.f32 %v4802, %v5054
        %v5097 = vadd.f32 %v4803, %v5057
        %v5098 = vadd.f32 %v4804, %v5062
        %v5099 = vadd.f32 %v4805, %v5065
        %v5100 = vld [vmem:[%s2121 + $0x1] sm:$0xff]
        %v5101 = vld [vmem:[%s2121 + $0x9] sm:$0xff]
        %v5102 = vld [vmem:[%s2121 + $0x19] sm:$0xff]
        %v5103 = vld [vmem:[%s2121 + $0x21] sm:$0xff]
        %v5104 = vld [vmem:[%s2121 + $0x31] sm:$0xff]
        %v5105 = vld [vmem:[%s2121 + $0x39] sm:$0xff]
        %v5106 = vld [vmem:[%s2121 + $0x49] sm:$0xff]
        %v5107 = vld [vmem:[%s2121 + $0x51] sm:$0xff]
        %v5108 = vld [vmem:[%s2121 + $0x61] sm:$0xff]
        %v5109 = vld [vmem:[%s2121 + $0x69] sm:$0xff]
        %v5110 = vld [vmem:[%s2121 + $0x79] sm:$0xff]
        %v5111 = vld [vmem:[%s2121 + $0x81] sm:$0xff]
        %v5112 = vld [vmem:[%s2121 + $0x91] sm:$0xff]
        %v5113 = vld [vmem:[%s2121 + $0x99] sm:$0xff]
        %v5114 = vld [vmem:[%s2121 + $0xa9] sm:$0xff]
        %v5115 = vld [vmem:[%s2121 + $0xb1] sm:$0xff]
        %v5116 = vld [vmem:[%s2121 + $0xc1] sm:$0xff]
        %v5117 = vld [vmem:[%s2121 + $0xc9] sm:$0xff]
        %v5118 = vld [vmem:[%s2121 + $0xd9] sm:$0xff]
        %v5119 = vld [vmem:[%s2121 + $0xe1] sm:$0xff]
        %v5120 = vld [vmem:[%s2121 + $0xf1] sm:$0xff]
        %v5121 = vld [vmem:[%s2121 + $0xf9] sm:$0xff]
        %v5122 = vld [vmem:[%s2121 + $0x109] sm:$0xff]
        %v5123 = vld [vmem:[%s2121 + $0x111] sm:$0xff]
        %v5124 = vld [vmem:[%s2121 + $0x121] sm:$0xff]
        %v5125 = vld [vmem:[%s2121 + $0x129] sm:$0xff]
        %v5126 = vld [vmem:[%s2121 + $0x139] sm:$0xff]
        %v5127 = vld [vmem:[%s2121 + $0x141] sm:$0xff]
        %v5128 = vld [vmem:[%s2121 + $0x151] sm:$0xff]
        %v5129 = vld [vmem:[%s2121 + $0x159] sm:$0xff]
        %v5130 = vld [vmem:[%s2121 + $0x169] sm:$0xff]
        %v5131 = vld [vmem:[%s2121 + $0x171] sm:$0xff]
        %v5132 = vpack.c.bf16 %v5101, %v5100
        %v5133 = vpack.c.bf16 %v5103, %v5102
        %v5134 = vpack.c.bf16 %v5105, %v5104
        %v5135 = vpack.c.bf16 %v5107, %v5106
        %v5136 = vpack.c.bf16 %v5109, %v5108
        %v5137 = vpack.c.bf16 %v5111, %v5110
        %v5138 = vpack.c.bf16 %v5113, %v5112
        %v5139 = vpack.c.bf16 %v5115, %v5114
        %v5140 = vpack.c.bf16 %v5117, %v5116
        %v5141 = vpack.c.bf16 %v5119, %v5118
        %v5142 = vpack.c.bf16 %v5121, %v5120
        %v5143 = vpack.c.bf16 %v5123, %v5122
        %v5144 = vpack.c.bf16 %v5125, %v5124
        %v5145 = vpack.c.bf16 %v5127, %v5126
        %v5146 = vpack.c.bf16 %v5129, %v5128
        %v5147 = vpack.c.bf16 %v5131, %v5130
        %s5148 = scalar_lea.vmem %s3, 14
        %v5149 = vld [vmem:[%s5148] sm:$0x3]
        %v5151 = vsel %vm278, %v5132, 0
        %v5154 = vsel %vm278, %v5133, 0
        %v5157 = vsel %vm278, %v5134, 0
        %v5160 = vsel %vm278, %v5135, 0
        %v5163 = vsel %vm278, %v5136, 0
        %v5166 = vsel %vm278, %v5137, 0
        %v5169 = vsel %vm278, %v5138, 0
        %v5172 = vsel %vm278, %v5139, 0
        %v5175 = vsel %vm278, %v5140, 0
        %v5178 = vsel %vm278, %v5141, 0
        %v5181 = vsel %vm278, %v5142, 0
        %v5184 = vsel %vm278, %v5143, 0
        %v5187 = vsel %vm278, %v5144, 0
        %v5190 = vsel %vm278, %v5145, 0
        %v5193 = vsel %vm278, %v5146, 0
        %v5196 = vsel %vm278, %v5147, 0
        %v5199 = vsel %vm568, %v5149, 0
        %5201 = vmatprep.subr.bf16.mxu0 0
        %5202 = vmatpush1.bf16.msra.mxu0 0
        %5203 = vmatprep.subr.bf16.mxu0 0
        %5204 = vmatpush1.bf16.msra.mxu0 0
        %5205 = vmatprep.subr.bf16.mxu0 0
        %5206 = vmatpush1.bf16.msra.mxu0 0
        %5207 = vmatprep.subr.bf16.mxu0 0
        %5208 = vmatpush1.bf16.msra.mxu0 0
        %5209 = vmatprep.subr.bf16.mxu0 0
        %5210 = vmatpush1.bf16.msra.mxu0 0
        %5211 = vmatprep.subr.bf16.mxu0 0
        %5212 = vmatpush1.bf16.msra.mxu0 0
        %5213 = vmatprep.subr.bf16.mxu0 0
        %5214 = vmatpush1.bf16.msra.mxu0 0
        %5215 = vmatprep.subr.bf16.mxu0 0
        %5216 = vmatpush1.bf16.msra.mxu0 %v5199
        %5217 = vmatprep.subr.bf16.mxu0 0
        %5218 = vmatpush2.bf16.msra.mxu0 0
        %5219 = vmatprep.subr.bf16.mxu0 0
        %5220 = vmatpush2.bf16.msra.mxu0 0
        %5221 = vmatprep.subr.bf16.mxu0 0
        %5222 = vmatpush2.bf16.msra.mxu0 0
        %5223 = vmatprep.subr.bf16.mxu0 0
        %5224 = vmatpush2.bf16.msra.mxu0 0
        %5225 = vmatprep.subr.bf16.mxu0 0
        %5226 = vmatpush2.bf16.msra.mxu0 0
        %5227 = vmatprep.subr.bf16.mxu0 0
        %5228 = vmatpush2.bf16.msra.mxu0 0
        %5229 = vmatprep.subr.bf16.mxu0 0
        %5230 = vmatpush2.bf16.msra.mxu0 0
        %5231 = vmatprep.subr.bf16.mxu0 0
        %5232 = vmatpush2.bf16.msra.mxu0 0
        %5233 = vmatprep.mubr.bf16.mxu0 0
        %5234 = vmatmul.mubr.bf16.gmra.mxu0 %v5151
        %v5235 = vpop.f32.mrf.mxu0
        %v5236 = vadd.f32 0.0, %v5235
        %v5237 = vpop.f32.mrf.mxu0
        %v5238 = vpop.f32.mrf.mxu0
        %v5239 = vadd.f32 0.0, %v5238
        %v5240 = vpop.f32.mrf.mxu0
        %5241 = vmatprep.mubr.bf16.mxu0 0
        %5242 = vmatmul.mubr.bf16.gmra.mxu0 %v5154
        %v5243 = vpop.f32.mrf.mxu0
        %v5244 = vadd.f32 0.0, %v5243
        %v5245 = vpop.f32.mrf.mxu0
        %v5246 = vpop.f32.mrf.mxu0
        %v5247 = vadd.f32 0.0, %v5246
        %v5248 = vpop.f32.mrf.mxu0
        %5249 = vmatprep.mubr.bf16.mxu0 0
        %5250 = vmatmul.mubr.bf16.gmra.mxu0 %v5157
        %v5251 = vpop.f32.mrf.mxu0
        %v5252 = vadd.f32 0.0, %v5251
        %v5253 = vpop.f32.mrf.mxu0
        %v5254 = vpop.f32.mrf.mxu0
        %v5255 = vadd.f32 0.0, %v5254
        %v5256 = vpop.f32.mrf.mxu0
        %5257 = vmatprep.mubr.bf16.mxu0 0
        %5258 = vmatmul.mubr.bf16.gmra.mxu0 %v5160
        %v5259 = vpop.f32.mrf.mxu0
        %v5260 = vadd.f32 0.0, %v5259
        %v5261 = vpop.f32.mrf.mxu0
        %v5262 = vpop.f32.mrf.mxu0
        %v5263 = vadd.f32 0.0, %v5262
        %v5264 = vpop.f32.mrf.mxu0
        %5265 = vmatprep.mubr.bf16.mxu0 0
        %5266 = vmatmul.mubr.bf16.gmra.mxu0 %v5163
        %v5267 = vpop.f32.mrf.mxu0
        %v5268 = vadd.f32 0.0, %v5267
        %v5269 = vpop.f32.mrf.mxu0
        %v5270 = vpop.f32.mrf.mxu0
        %v5271 = vadd.f32 0.0, %v5270
        %v5272 = vpop.f32.mrf.mxu0
        %5273 = vmatprep.mubr.bf16.mxu0 0
        %5274 = vmatmul.mubr.bf16.gmra.mxu0 %v5166
        %v5275 = vpop.f32.mrf.mxu0
        %v5276 = vadd.f32 0.0, %v5275
        %v5277 = vpop.f32.mrf.mxu0
        %v5278 = vpop.f32.mrf.mxu0
        %v5279 = vadd.f32 0.0, %v5278
        %v5280 = vpop.f32.mrf.mxu0
        %5281 = vmatprep.mubr.bf16.mxu0 0
        %5282 = vmatmul.mubr.bf16.gmra.mxu0 %v5169
        %v5283 = vpop.f32.mrf.mxu0
        %v5284 = vadd.f32 0.0, %v5283
        %v5285 = vpop.f32.mrf.mxu0
        %v5286 = vpop.f32.mrf.mxu0
        %v5287 = vadd.f32 0.0, %v5286
        %v5288 = vpop.f32.mrf.mxu0
        %5289 = vmatprep.mubr.bf16.mxu0 0
        %5290 = vmatmul.mubr.bf16.gmra.mxu0 %v5172
        %v5291 = vpop.f32.mrf.mxu0
        %v5292 = vadd.f32 0.0, %v5291
        %v5293 = vpop.f32.mrf.mxu0
        %v5294 = vpop.f32.mrf.mxu0
        %v5295 = vadd.f32 0.0, %v5294
        %v5296 = vpop.f32.mrf.mxu0
        %5297 = vmatprep.mubr.bf16.mxu0 0
        %5298 = vmatmul.mubr.bf16.gmra.mxu0 %v5175
        %v5299 = vpop.f32.mrf.mxu0
        %v5300 = vadd.f32 0.0, %v5299
        %v5301 = vpop.f32.mrf.mxu0
        %v5302 = vpop.f32.mrf.mxu0
        %v5303 = vadd.f32 0.0, %v5302
        %v5304 = vpop.f32.mrf.mxu0
        %5305 = vmatprep.mubr.bf16.mxu0 0
        %5306 = vmatmul.mubr.bf16.gmra.mxu0 %v5178
        %v5307 = vpop.f32.mrf.mxu0
        %v5308 = vadd.f32 0.0, %v5307
        %v5309 = vpop.f32.mrf.mxu0
        %v5310 = vpop.f32.mrf.mxu0
        %v5311 = vadd.f32 0.0, %v5310
        %v5312 = vpop.f32.mrf.mxu0
        %5313 = vmatprep.mubr.bf16.mxu0 0
        %5314 = vmatmul.mubr.bf16.gmra.mxu0 %v5181
        %v5315 = vpop.f32.mrf.mxu0
        %v5316 = vadd.f32 0.0, %v5315
        %v5317 = vpop.f32.mrf.mxu0
        %v5318 = vpop.f32.mrf.mxu0
        %v5319 = vadd.f32 0.0, %v5318
        %v5320 = vpop.f32.mrf.mxu0
        %5321 = vmatprep.mubr.bf16.mxu0 0
        %5322 = vmatmul.mubr.bf16.gmra.mxu0 %v5184
        %v5323 = vpop.f32.mrf.mxu0
        %v5324 = vadd.f32 0.0, %v5323
        %v5325 = vpop.f32.mrf.mxu0
        %v5326 = vpop.f32.mrf.mxu0
        %v5327 = vadd.f32 0.0, %v5326
        %v5328 = vpop.f32.mrf.mxu0
        %5329 = vmatprep.mubr.bf16.mxu0 0
        %5330 = vmatmul.mubr.bf16.gmra.mxu0 %v5187
        %v5331 = vpop.f32.mrf.mxu0
        %v5332 = vadd.f32 0.0, %v5331
        %v5333 = vpop.f32.mrf.mxu0
        %v5334 = vpop.f32.mrf.mxu0
        %v5335 = vadd.f32 0.0, %v5334
        %v5336 = vpop.f32.mrf.mxu0
        %5337 = vmatprep.mubr.bf16.mxu0 0
        %5338 = vmatmul.mubr.bf16.gmra.mxu0 %v5190
        %v5339 = vpop.f32.mrf.mxu0
        %v5340 = vadd.f32 0.0, %v5339
        %v5341 = vpop.f32.mrf.mxu0
        %v5342 = vpop.f32.mrf.mxu0
        %v5343 = vadd.f32 0.0, %v5342
        %v5344 = vpop.f32.mrf.mxu0
        %5345 = vmatprep.mubr.bf16.mxu0 0
        %5346 = vmatmul.mubr.bf16.gmra.mxu0 %v5193
        %v5347 = vpop.f32.mrf.mxu0
        %v5348 = vadd.f32 0.0, %v5347
        %v5349 = vpop.f32.mrf.mxu0
        %v5350 = vpop.f32.mrf.mxu0
        %v5351 = vadd.f32 0.0, %v5350
        %v5352 = vpop.f32.mrf.mxu0
        %5353 = vmatprep.mubr.bf16.mxu0 0
        %5354 = vmatmul.mubr.bf16.gmra.mxu0 %v5196
        %v5355 = vpop.f32.mrf.mxu0
        %v5356 = vadd.f32 0.0, %v5355
        %v5357 = vpop.f32.mrf.mxu0
        %v5358 = vpop.f32.mrf.mxu0
        %v5359 = vadd.f32 0.0, %v5358
        %v5360 = vpop.f32.mrf.mxu0
        %5361 = vdwg.mxu0
        %v5362 = vadd.f32 %v5068, %v5236
        %v5363 = vadd.f32 %v5069, %v5239
        %v5364 = vadd.f32 %v5070, %v5244
        %v5365 = vadd.f32 %v5071, %v5247
        %v5366 = vadd.f32 %v5072, %v5252
        %v5367 = vadd.f32 %v5073, %v5255
        %v5368 = vadd.f32 %v5074, %v5260
        %v5369 = vadd.f32 %v5075, %v5263
        %v5370 = vadd.f32 %v5076, %v5268
        %v5371 = vadd.f32 %v5077, %v5271
        %v5372 = vadd.f32 %v5078, %v5276
        %v5373 = vadd.f32 %v5079, %v5279
        %v5374 = vadd.f32 %v5080, %v5284
        %v5375 = vadd.f32 %v5081, %v5287
        %v5376 = vadd.f32 %v5082, %v5292
        %v5377 = vadd.f32 %v5083, %v5295
        %v5378 = vadd.f32 %v5084, %v5300
        %v5379 = vadd.f32 %v5085, %v5303
        %v5380 = vadd.f32 %v5086, %v5308
        %v5381 = vadd.f32 %v5087, %v5311
        %v5382 = vadd.f32 %v5088, %v5316
        %v5383 = vadd.f32 %v5089, %v5319
        %v5384 = vadd.f32 %v5090, %v5324
        %v5385 = vadd.f32 %v5091, %v5327
        %v5386 = vadd.f32 %v5092, %v5332
        %v5387 = vadd.f32 %v5093, %v5335
        %v5388 = vadd.f32 %v5094, %v5340
        %v5389 = vadd.f32 %v5095, %v5343
        %v5390 = vadd.f32 %v5096, %v5348
        %v5391 = vadd.f32 %v5097, %v5351
        %v5392 = vadd.f32 %v5098, %v5356
        %v5393 = vadd.f32 %v5099, %v5359
        %v5394 = vld [vmem:[%s2121 + $0x2] sm:$0xff]
        %v5395 = vld [vmem:[%s2121 + $0xa] sm:$0xff]
        %v5396 = vld [vmem:[%s2121 + $0x1a] sm:$0xff]
        %v5397 = vld [vmem:[%s2121 + $0x22] sm:$0xff]
        %v5398 = vld [vmem:[%s2121 + $0x32] sm:$0xff]
        %v5399 = vld [vmem:[%s2121 + $0x3a] sm:$0xff]
        %v5400 = vld [vmem:[%s2121 + $0x4a] sm:$0xff]
        %v5401 = vld [vmem:[%s2121 + $0x52] sm:$0xff]
        %v5402 = vld [vmem:[%s2121 + $0x62] sm:$0xff]
        %v5403 = vld [vmem:[%s2121 + $0x6a] sm:$0xff]
        %v5404 = vld [vmem:[%s2121 + $0x7a] sm:$0xff]
        %v5405 = vld [vmem:[%s2121 + $0x82] sm:$0xff]
        %v5406 = vld [vmem:[%s2121 + $0x92] sm:$0xff]
        %v5407 = vld [vmem:[%s2121 + $0x9a] sm:$0xff]
        %v5408 = vld [vmem:[%s2121 + $0xaa] sm:$0xff]
        %v5409 = vld [vmem:[%s2121 + $0xb2] sm:$0xff]
        %v5410 = vld [vmem:[%s2121 + $0xc2] sm:$0xff]
        %v5411 = vld [vmem:[%s2121 + $0xca] sm:$0xff]
        %v5412 = vld [vmem:[%s2121 + $0xda] sm:$0xff]
        %v5413 = vld [vmem:[%s2121 + $0xe2] sm:$0xff]
        %v5414 = vld [vmem:[%s2121 + $0xf2] sm:$0xff]
        %v5415 = vld [vmem:[%s2121 + $0xfa] sm:$0xff]
        %v5416 = vld [vmem:[%s2121 + $0x10a] sm:$0xff]
        %v5417 = vld [vmem:[%s2121 + $0x112] sm:$0xff]
        %v5418 = vld [vmem:[%s2121 + $0x122] sm:$0xff]
        %v5419 = vld [vmem:[%s2121 + $0x12a] sm:$0xff]
        %v5420 = vld [vmem:[%s2121 + $0x13a] sm:$0xff]
        %v5421 = vld [vmem:[%s2121 + $0x142] sm:$0xff]
        %v5422 = vld [vmem:[%s2121 + $0x152] sm:$0xff]
        %v5423 = vld [vmem:[%s2121 + $0x15a] sm:$0xff]
        %v5424 = vld [vmem:[%s2121 + $0x16a] sm:$0xff]
        %v5425 = vld [vmem:[%s2121 + $0x172] sm:$0xff]
        %v5426 = vpack.c.bf16 %v5395, %v5394
        %v5427 = vpack.c.bf16 %v5397, %v5396
        %v5428 = vpack.c.bf16 %v5399, %v5398
        %v5429 = vpack.c.bf16 %v5401, %v5400
        %v5430 = vpack.c.bf16 %v5403, %v5402
        %v5431 = vpack.c.bf16 %v5405, %v5404
        %v5432 = vpack.c.bf16 %v5407, %v5406
        %v5433 = vpack.c.bf16 %v5409, %v5408
        %v5434 = vpack.c.bf16 %v5411, %v5410
        %v5435 = vpack.c.bf16 %v5413, %v5412
        %v5436 = vpack.c.bf16 %v5415, %v5414
        %v5437 = vpack.c.bf16 %v5417, %v5416
        %v5438 = vpack.c.bf16 %v5419, %v5418
        %v5439 = vpack.c.bf16 %v5421, %v5420
        %v5440 = vpack.c.bf16 %v5423, %v5422
        %v5441 = vpack.c.bf16 %v5425, %v5424
        %s5442 = scalar_lea.vmem %s3, 16
        %v5443 = vld [vmem:[%s5442] sm:$0x3]
        %v5445 = vsel %vm278, %v5426, 0
        %v5448 = vsel %vm278, %v5427, 0
        %v5451 = vsel %vm278, %v5428, 0
        %v5454 = vsel %vm278, %v5429, 0
        %v5457 = vsel %vm278, %v5430, 0
        %v5460 = vsel %vm278, %v5431, 0
        %v5463 = vsel %vm278, %v5432, 0
        %v5466 = vsel %vm278, %v5433, 0
        %v5469 = vsel %vm278, %v5434, 0
        %v5472 = vsel %vm278, %v5435, 0
        %v5475 = vsel %vm278, %v5436, 0
        %v5478 = vsel %vm278, %v5437, 0
        %v5481 = vsel %vm278, %v5438, 0
        %v5484 = vsel %vm278, %v5439, 0
        %v5487 = vsel %vm278, %v5440, 0
        %v5490 = vsel %vm278, %v5441, 0
        %v5493 = vsel %vm568, %v5443, 0
        %5495 = vmatprep.subr.bf16.mxu0 0
        %5496 = vmatpush1.bf16.msra.mxu0 0
        %5497 = vmatprep.subr.bf16.mxu0 0
        %5498 = vmatpush1.bf16.msra.mxu0 0
        %5499 = vmatprep.subr.bf16.mxu0 0
        %5500 = vmatpush1.bf16.msra.mxu0 0
        %5501 = vmatprep.subr.bf16.mxu0 0
        %5502 = vmatpush1.bf16.msra.mxu0 0
        %5503 = vmatprep.subr.bf16.mxu0 0
        %5504 = vmatpush1.bf16.msra.mxu0 0
        %5505 = vmatprep.subr.bf16.mxu0 0
        %5506 = vmatpush1.bf16.msra.mxu0 0
        %5507 = vmatprep.subr.bf16.mxu0 0
        %5508 = vmatpush1.bf16.msra.mxu0 0
        %5509 = vmatprep.subr.bf16.mxu0 0
        %5510 = vmatpush1.bf16.msra.mxu0 %v5493
        %5511 = vmatprep.subr.bf16.mxu0 0
        %5512 = vmatpush2.bf16.msra.mxu0 0
        %5513 = vmatprep.subr.bf16.mxu0 0
        %5514 = vmatpush2.bf16.msra.mxu0 0
        %5515 = vmatprep.subr.bf16.mxu0 0
        %5516 = vmatpush2.bf16.msra.mxu0 0
        %5517 = vmatprep.subr.bf16.mxu0 0
        %5518 = vmatpush2.bf16.msra.mxu0 0
        %5519 = vmatprep.subr.bf16.mxu0 0
        %5520 = vmatpush2.bf16.msra.mxu0 0
        %5521 = vmatprep.subr.bf16.mxu0 0
        %5522 = vmatpush2.bf16.msra.mxu0 0
        %5523 = vmatprep.subr.bf16.mxu0 0
        %5524 = vmatpush2.bf16.msra.mxu0 0
        %5525 = vmatprep.subr.bf16.mxu0 0
        %5526 = vmatpush2.bf16.msra.mxu0 0
        %5527 = vmatprep.mubr.bf16.mxu0 0
        %5528 = vmatmul.mubr.bf16.gmra.mxu0 %v5445
        %v5529 = vpop.f32.mrf.mxu0
        %v5530 = vadd.f32 0.0, %v5529
        %v5531 = vpop.f32.mrf.mxu0
        %v5532 = vpop.f32.mrf.mxu0
        %v5533 = vadd.f32 0.0, %v5532
        %v5534 = vpop.f32.mrf.mxu0
        %5535 = vmatprep.mubr.bf16.mxu0 0
        %5536 = vmatmul.mubr.bf16.gmra.mxu0 %v5448
        %v5537 = vpop.f32.mrf.mxu0
        %v5538 = vadd.f32 0.0, %v5537
        %v5539 = vpop.f32.mrf.mxu0
        %v5540 = vpop.f32.mrf.mxu0
        %v5541 = vadd.f32 0.0, %v5540
        %v5542 = vpop.f32.mrf.mxu0
        %5543 = vmatprep.mubr.bf16.mxu0 0
        %5544 = vmatmul.mubr.bf16.gmra.mxu0 %v5451
        %v5545 = vpop.f32.mrf.mxu0
        %v5546 = vadd.f32 0.0, %v5545
        %v5547 = vpop.f32.mrf.mxu0
        %v5548 = vpop.f32.mrf.mxu0
        %v5549 = vadd.f32 0.0, %v5548
        %v5550 = vpop.f32.mrf.mxu0
        %5551 = vmatprep.mubr.bf16.mxu0 0
        %5552 = vmatmul.mubr.bf16.gmra.mxu0 %v5454
        %v5553 = vpop.f32.mrf.mxu0
        %v5554 = vadd.f32 0.0, %v5553
        %v5555 = vpop.f32.mrf.mxu0
        %v5556 = vpop.f32.mrf.mxu0
        %v5557 = vadd.f32 0.0, %v5556
        %v5558 = vpop.f32.mrf.mxu0
        %5559 = vmatprep.mubr.bf16.mxu0 0
        %5560 = vmatmul.mubr.bf16.gmra.mxu0 %v5457
        %v5561 = vpop.f32.mrf.mxu0
        %v5562 = vadd.f32 0.0, %v5561
        %v5563 = vpop.f32.mrf.mxu0
        %v5564 = vpop.f32.mrf.mxu0
        %v5565 = vadd.f32 0.0, %v5564
        %v5566 = vpop.f32.mrf.mxu0
        %5567 = vmatprep.mubr.bf16.mxu0 0
        %5568 = vmatmul.mubr.bf16.gmra.mxu0 %v5460
        %v5569 = vpop.f32.mrf.mxu0
        %v5570 = vadd.f32 0.0, %v5569
        %v5571 = vpop.f32.mrf.mxu0
        %v5572 = vpop.f32.mrf.mxu0
        %v5573 = vadd.f32 0.0, %v5572
        %v5574 = vpop.f32.mrf.mxu0
        %5575 = vmatprep.mubr.bf16.mxu0 0
        %5576 = vmatmul.mubr.bf16.gmra.mxu0 %v5463
        %v5577 = vpop.f32.mrf.mxu0
        %v5578 = vadd.f32 0.0, %v5577
        %v5579 = vpop.f32.mrf.mxu0
        %v5580 = vpop.f32.mrf.mxu0
        %v5581 = vadd.f32 0.0, %v5580
        %v5582 = vpop.f32.mrf.mxu0
        %5583 = vmatprep.mubr.bf16.mxu0 0
        %5584 = vmatmul.mubr.bf16.gmra.mxu0 %v5466
        %v5585 = vpop.f32.mrf.mxu0
        %v5586 = vadd.f32 0.0, %v5585
        %v5587 = vpop.f32.mrf.mxu0
        %v5588 = vpop.f32.mrf.mxu0
        %v5589 = vadd.f32 0.0, %v5588
        %v5590 = vpop.f32.mrf.mxu0
        %5591 = vmatprep.mubr.bf16.mxu0 0
        %5592 = vmatmul.mubr.bf16.gmra.mxu0 %v5469
        %v5593 = vpop.f32.mrf.mxu0
        %v5594 = vadd.f32 0.0, %v5593
        %v5595 = vpop.f32.mrf.mxu0
        %v5596 = vpop.f32.mrf.mxu0
        %v5597 = vadd.f32 0.0, %v5596
        %v5598 = vpop.f32.mrf.mxu0
        %5599 = vmatprep.mubr.bf16.mxu0 0
        %5600 = vmatmul.mubr.bf16.gmra.mxu0 %v5472
        %v5601 = vpop.f32.mrf.mxu0
        %v5602 = vadd.f32 0.0, %v5601
        %v5603 = vpop.f32.mrf.mxu0
        %v5604 = vpop.f32.mrf.mxu0
        %v5605 = vadd.f32 0.0, %v5604
        %v5606 = vpop.f32.mrf.mxu0
        %5607 = vmatprep.mubr.bf16.mxu0 0
        %5608 = vmatmul.mubr.bf16.gmra.mxu0 %v5475
        %v5609 = vpop.f32.mrf.mxu0
        %v5610 = vadd.f32 0.0, %v5609
        %v5611 = vpop.f32.mrf.mxu0
        %v5612 = vpop.f32.mrf.mxu0
        %v5613 = vadd.f32 0.0, %v5612
        %v5614 = vpop.f32.mrf.mxu0
        %5615 = vmatprep.mubr.bf16.mxu0 0
        %5616 = vmatmul.mubr.bf16.gmra.mxu0 %v5478
        %v5617 = vpop.f32.mrf.mxu0
        %v5618 = vadd.f32 0.0, %v5617
        %v5619 = vpop.f32.mrf.mxu0
        %v5620 = vpop.f32.mrf.mxu0
        %v5621 = vadd.f32 0.0, %v5620
        %v5622 = vpop.f32.mrf.mxu0
        %5623 = vmatprep.mubr.bf16.mxu0 0
        %5624 = vmatmul.mubr.bf16.gmra.mxu0 %v5481
        %v5625 = vpop.f32.mrf.mxu0
        %v5626 = vadd.f32 0.0, %v5625
        %v5627 = vpop.f32.mrf.mxu0
        %v5628 = vpop.f32.mrf.mxu0
        %v5629 = vadd.f32 0.0, %v5628
        %v5630 = vpop.f32.mrf.mxu0
        %5631 = vmatprep.mubr.bf16.mxu0 0
        %5632 = vmatmul.mubr.bf16.gmra.mxu0 %v5484
        %v5633 = vpop.f32.mrf.mxu0
        %v5634 = vadd.f32 0.0, %v5633
        %v5635 = vpop.f32.mrf.mxu0
        %v5636 = vpop.f32.mrf.mxu0
        %v5637 = vadd.f32 0.0, %v5636
        %v5638 = vpop.f32.mrf.mxu0
        %5639 = vmatprep.mubr.bf16.mxu0 0
        %5640 = vmatmul.mubr.bf16.gmra.mxu0 %v5487
        %v5641 = vpop.f32.mrf.mxu0
        %v5642 = vadd.f32 0.0, %v5641
        %v5643 = vpop.f32.mrf.mxu0
        %v5644 = vpop.f32.mrf.mxu0
        %v5645 = vadd.f32 0.0, %v5644
        %v5646 = vpop.f32.mrf.mxu0
        %5647 = vmatprep.mubr.bf16.mxu0 0
        %5648 = vmatmul.mubr.bf16.gmra.mxu0 %v5490
        %v5649 = vpop.f32.mrf.mxu0
        %v5650 = vadd.f32 0.0, %v5649
        %v5651 = vpop.f32.mrf.mxu0
        %v5652 = vpop.f32.mrf.mxu0
        %v5653 = vadd.f32 0.0, %v5652
        %v5654 = vpop.f32.mrf.mxu0
        %5655 = vdwg.mxu0
        %v5656 = vadd.f32 %v5362, %v5530
        %v5657 = vadd.f32 %v5363, %v5533
        %v5658 = vadd.f32 %v5364, %v5538
        %v5659 = vadd.f32 %v5365, %v5541
        %v5660 = vadd.f32 %v5366, %v5546
        %v5661 = vadd.f32 %v5367, %v5549
        %v5662 = vadd.f32 %v5368, %v5554
        %v5663 = vadd.f32 %v5369, %v5557
        %v5664 = vadd.f32 %v5370, %v5562
        %v5665 = vadd.f32 %v5371, %v5565
        %v5666 = vadd.f32 %v5372, %v5570
        %v5667 = vadd.f32 %v5373, %v5573
        %v5668 = vadd.f32 %v5374, %v5578
        %v5669 = vadd.f32 %v5375, %v5581
        %v5670 = vadd.f32 %v5376, %v5586
        %v5671 = vadd.f32 %v5377, %v5589
        %v5672 = vadd.f32 %v5378, %v5594
        %v5673 = vadd.f32 %v5379, %v5597
        %v5674 = vadd.f32 %v5380, %v5602
        %v5675 = vadd.f32 %v5381, %v5605
        %v5676 = vadd.f32 %v5382, %v5610
        %v5677 = vadd.f32 %v5383, %v5613
        %v5678 = vadd.f32 %v5384, %v5618
        %v5679 = vadd.f32 %v5385, %v5621
        %v5680 = vadd.f32 %v5386, %v5626
        %v5681 = vadd.f32 %v5387, %v5629
        %v5682 = vadd.f32 %v5388, %v5634
        %v5683 = vadd.f32 %v5389, %v5637
        %v5684 = vadd.f32 %v5390, %v5642
        %v5685 = vadd.f32 %v5391, %v5645
        %v5686 = vadd.f32 %v5392, %v5650
        %v5687 = vadd.f32 %v5393, %v5653
        %v5688 = vld [vmem:[%s4] sm:$0x1]
        %v5690 = vlaneseq
        %v5691 = vshrl.u32 %v5690, 7
        %v5692 = vsub.s32 0, %v5691
        %v5693 = vrot.slane %v5688, %v5692
        %v5695 = vadd.f32 %v5656, %v5693
        %v5696 = vadd.f32 %v5657, %v5693
        %v5697 = vadd.f32 %v5658, %v5693
        %v5698 = vadd.f32 %v5659, %v5693
        %v5699 = vadd.f32 %v5660, %v5693
        %v5700 = vadd.f32 %v5661, %v5693
        %v5701 = vadd.f32 %v5662, %v5693
        %v5702 = vadd.f32 %v5663, %v5693
        %v5703 = vadd.f32 %v5664, %v5693
        %v5704 = vadd.f32 %v5665, %v5693
        %v5705 = vadd.f32 %v5666, %v5693
        %v5706 = vadd.f32 %v5667, %v5693
        %v5707 = vadd.f32 %v5668, %v5693
        %v5708 = vadd.f32 %v5669, %v5693
        %v5709 = vadd.f32 %v5670, %v5693
        %v5710 = vadd.f32 %v5671, %v5693
        %v5711 = vadd.f32 %v5672, %v5693
        %v5712 = vadd.f32 %v5673, %v5693
        %v5713 = vadd.f32 %v5674, %v5693
        %v5714 = vadd.f32 %v5675, %v5693
        %v5715 = vadd.f32 %v5676, %v5693
        %v5716 = vadd.f32 %v5677, %v5693
        %v5717 = vadd.f32 %v5678, %v5693
        %v5718 = vadd.f32 %v5679, %v5693
        %v5719 = vadd.f32 %v5680, %v5693
        %v5720 = vadd.f32 %v5681, %v5693
        %v5721 = vadd.f32 %v5682, %v5693
        %v5722 = vadd.f32 %v5683, %v5693
        %v5723 = vadd.f32 %v5684, %v5693
        %v5724 = vadd.f32 %v5685, %v5693
        %v5725 = vadd.f32 %v5686, %v5693
        %v5726 = vadd.f32 %v5687, %v5693
        %v5727 = vmax.f32 %v5695, %v5697
        %v5728 = vmax.f32 %v5696, %v5698
        %v5729 = vmax.f32 %v5699, %v5701
        %v5730 = vmax.f32 %v5700, %v5702
        %v5731 = vmax.f32 %v5703, %v5705
        %v5732 = vmax.f32 %v5704, %v5706
        %v5733 = vmax.f32 %v5707, %v5709
        %v5734 = vmax.f32 %v5708, %v5710
        %v5735 = vmax.f32 %v5711, %v5713
        %v5736 = vmax.f32 %v5712, %v5714
        %v5737 = vmax.f32 %v5715, %v5717
        %v5738 = vmax.f32 %v5716, %v5718
        %v5739 = vmax.f32 %v5719, %v5721
        %v5740 = vmax.f32 %v5720, %v5722
        %v5741 = vmax.f32 %v5723, %v5725
        %v5742 = vmax.f32 %v5724, %v5726
        %vm5743 = vcmask 64512
        %5744 = vst.msk [vmem:[#allocation3] sm:$0xff] %vm5743, %v5727
        %5745 = vst.msk [vmem:[#allocation3 + $0x8] sm:$0xff] %vm5743, %v5728
        %5746 = vst.msk [vmem:[#allocation3 + $0x10] sm:$0xff] %vm5743, %v5729
        %5747 = vst.msk [vmem:[#allocation3 + $0x18] sm:$0xff] %vm5743, %v5730
        %5748 = vst.msk [vmem:[#allocation3 + $0x20] sm:$0xff] %vm5743, %v5731
        %5749 = vst.msk [vmem:[#allocation3 + $0x28] sm:$0xff] %vm5743, %v5732
        %5750 = vst.msk [vmem:[#allocation3 + $0x30] sm:$0xff] %vm5743, %v5733
        %5751 = vst.msk [vmem:[#allocation3 + $0x38] sm:$0xff] %vm5743, %v5734
        %5752 = vst.msk [vmem:[#allocation3 + $0x40] sm:$0xff] %vm5743, %v5735
        %5753 = vst.msk [vmem:[#allocation3 + $0x48] sm:$0xff] %vm5743, %v5736
        %5754 = vst.msk [vmem:[#allocation3 + $0x50] sm:$0xff] %vm5743, %v5737
        %5755 = vst.msk [vmem:[#allocation3 + $0x58] sm:$0xff] %vm5743, %v5738
        %5756 = vst.msk [vmem:[#allocation3 + $0x60] sm:$0xff] %vm5743, %v5739
        %5757 = vst.msk [vmem:[#allocation3 + $0x68] sm:$0xff] %vm5743, %v5740
        %5758 = vst.msk [vmem:[#allocation3 + $0x70] sm:$0xff] %vm5743, %v5741
        %5759 = vst.msk [vmem:[#allocation3 + $0x78] sm:$0xff] %vm5743, %v5742
        %v5760 = vld [vmem:[#allocation3] ss:$2 sm:$0xff]
        %s5761 = scalar_lea.vmem [#allocation3], 16
        %v5762 = vld [vmem:[%s5761] ss:$2 sm:$0xff]
        %s5763 = scalar_lea.vmem [#allocation3], 32
        %v5764 = vld [vmem:[%s5763] ss:$2 sm:$0xff]
        %s5765 = scalar_lea.vmem [#allocation3], 48
        %v5766 = vld [vmem:[%s5765] ss:$2 sm:$0xff]
        %s5767 = scalar_lea.vmem [#allocation3], 64
        %v5768 = vld [vmem:[%s5767] ss:$2 sm:$0xff]
        %s5769 = scalar_lea.vmem [#allocation3], 80
        %v5770 = vld [vmem:[%s5769] ss:$2 sm:$0xff]
        %s5771 = scalar_lea.vmem [#allocation3], 96
        %v5772 = vld [vmem:[%s5771] ss:$2 sm:$0xff]
        %s5773 = scalar_lea.vmem [#allocation3], 112
        %v5774 = vld [vmem:[%s5773] ss:$2 sm:$0xff]
        %s5775 = scalar_lea.vmem [#allocation3], 1
        %v5776 = vld [vmem:[%s5775] ss:$2 sm:$0xff]
        %s5777 = scalar_lea.vmem [#allocation3], 17
        %v5778 = vld [vmem:[%s5777] ss:$2 sm:$0xff]
        %s5779 = scalar_lea.vmem [#allocation3], 33
        %v5780 = vld [vmem:[%s5779] ss:$2 sm:$0xff]
        %s5781 = scalar_lea.vmem [#allocation3], 49
        %v5782 = vld [vmem:[%s5781] ss:$2 sm:$0xff]
        %s5783 = scalar_lea.vmem [#allocation3], 65
        %v5784 = vld [vmem:[%s5783] ss:$2 sm:$0xff]
        %s5785 = scalar_lea.vmem [#allocation3], 81
        %v5786 = vld [vmem:[%s5785] ss:$2 sm:$0xff]
        %s5787 = scalar_lea.vmem [#allocation3], 97
        %v5788 = vld [vmem:[%s5787] ss:$2 sm:$0xff]
        %s5789 = scalar_lea.vmem [#allocation3], 113
        %v5790 = vld [vmem:[%s5789] ss:$2 sm:$0xff]
        %v5791 = vmax.f32 %v5760, %v5776
        %v5792 = vmax.f32 %v5762, %v5778
        %v5793 = vmax.f32 %v5764, %v5780
        %v5794 = vmax.f32 %v5766, %v5782
        %v5795 = vmax.f32 %v5768, %v5784
        %v5796 = vmax.f32 %v5770, %v5786
        %v5797 = vmax.f32 %v5772, %v5788
        %v5798 = vmax.f32 %v5774, %v5790
        %v5799 = vld [vmem:[%s276] ss:$2 sm:$0xff]
        %s5800 = scalar_lea.vmem %s276, 16
        %v5801 = vld [vmem:[%s5800] ss:$2 sm:$0xff]
        %s5802 = scalar_lea.vmem %s276, 32
        %v5803 = vld [vmem:[%s5802] ss:$2 sm:$0xff]
        %s5804 = scalar_lea.vmem %s276, 48
        %v5805 = vld [vmem:[%s5804] ss:$2 sm:$0xff]
        %s5806 = scalar_lea.vmem %s276, 64
        %v5807 = vld [vmem:[%s5806] ss:$2 sm:$0xff]
        %s5808 = scalar_lea.vmem %s276, 80
        %v5809 = vld [vmem:[%s5808] ss:$2 sm:$0xff]
        %s5810 = scalar_lea.vmem %s276, 96
        %v5811 = vld [vmem:[%s5810] ss:$2 sm:$0xff]
        %s5812 = scalar_lea.vmem %s276, 112
        %v5813 = vld [vmem:[%s5812] ss:$2 sm:$0xff]
        %s5814 = scalar_lea.vmem %s276, 128
        %v5815 = vld [vmem:[%s5814] ss:$2 sm:$0xff]
        %s5816 = scalar_lea.vmem %s276, 144
        %v5817 = vld [vmem:[%s5816] ss:$2 sm:$0xff]
        %s5818 = scalar_lea.vmem %s276, 160
        %v5819 = vld [vmem:[%s5818] ss:$2 sm:$0xff]
        %s5820 = scalar_lea.vmem %s276, 176
        %v5821 = vld [vmem:[%s5820] ss:$2 sm:$0xff]
        %s5822 = scalar_lea.vmem %s276, 192
        %v5823 = vld [vmem:[%s5822] ss:$2 sm:$0xff]
        %s5824 = scalar_lea.vmem %s276, 208
        %v5825 = vld [vmem:[%s5824] ss:$2 sm:$0xff]
        %s5826 = scalar_lea.vmem %s276, 224
        %v5827 = vld [vmem:[%s5826] ss:$2 sm:$0xff]
        %s5828 = scalar_lea.vmem %s276, 240
        %v5829 = vld [vmem:[%s5828] ss:$2 sm:$0xff]
        %s5830 = scalar_lea.vmem %s276, 1
        %v5831 = vld [vmem:[%s5830] ss:$2 sm:$0xff]
        %s5832 = scalar_lea.vmem %s276, 17
        %v5833 = vld [vmem:[%s5832] ss:$2 sm:$0xff]
        %s5834 = scalar_lea.vmem %s276, 33
        %v5835 = vld [vmem:[%s5834] ss:$2 sm:$0xff]
        %s5836 = scalar_lea.vmem %s276, 49
        %v5837 = vld [vmem:[%s5836] ss:$2 sm:$0xff]
        %s5838 = scalar_lea.vmem %s276, 65
        %v5839 = vld [vmem:[%s5838] ss:$2 sm:$0xff]
        %s5840 = scalar_lea.vmem %s276, 81
        %v5841 = vld [vmem:[%s5840] ss:$2 sm:$0xff]
        %s5842 = scalar_lea.vmem %s276, 97
        %v5843 = vld [vmem:[%s5842] ss:$2 sm:$0xff]
        %s5844 = scalar_lea.vmem %s276, 113
        %v5845 = vld [vmem:[%s5844] ss:$2 sm:$0xff]
        %s5846 = scalar_lea.vmem %s276, 129
        %v5847 = vld [vmem:[%s5846] ss:$2 sm:$0xff]
        %s5848 = scalar_lea.vmem %s276, 145
        %v5849 = vld [vmem:[%s5848] ss:$2 sm:$0xff]
        %s5850 = scalar_lea.vmem %s276, 161
        %v5851 = vld [vmem:[%s5850] ss:$2 sm:$0xff]
        %s5852 = scalar_lea.vmem %s276, 177
        %v5853 = vld [vmem:[%s5852] ss:$2 sm:$0xff]
        %s5854 = scalar_lea.vmem %s276, 193
        %v5855 = vld [vmem:[%s5854] ss:$2 sm:$0xff]
        %s5856 = scalar_lea.vmem %s276, 209
        %v5857 = vld [vmem:[%s5856] ss:$2 sm:$0xff]
        %s5858 = scalar_lea.vmem %s276, 225
        %v5859 = vld [vmem:[%s5858] ss:$2 sm:$0xff]
        %s5860 = scalar_lea.vmem %s276, 241
        %v5861 = vld [vmem:[%s5860] ss:$2 sm:$0xff]
        %v5862 = vmax.f32 %v5799, %v5831
        %v5863 = vmax.f32 %v5801, %v5833
        %v5864 = vmax.f32 %v5803, %v5835
        %v5865 = vmax.f32 %v5805, %v5837
        %v5866 = vmax.f32 %v5807, %v5839
        %v5867 = vmax.f32 %v5809, %v5841
        %v5868 = vmax.f32 %v5811, %v5843
        %v5869 = vmax.f32 %v5813, %v5845
        %v5870 = vmax.f32 %v5815, %v5847
        %v5871 = vmax.f32 %v5817, %v5849
        %v5872 = vmax.f32 %v5819, %v5851
        %v5873 = vmax.f32 %v5821, %v5853
        %v5874 = vmax.f32 %v5823, %v5855
        %v5875 = vmax.f32 %v5825, %v5857
        %v5876 = vmax.f32 %v5827, %v5859
        %v5877 = vmax.f32 %v5829, %v5861
        %v5878 = vmax.f32 %v5862, %v5863
        %v5879 = vmax.f32 %v5864, %v5865
        %v5880 = vmax.f32 %v5866, %v5867
        %v5881 = vmax.f32 %v5868, %v5869
        %v5882 = vmax.f32 %v5870, %v5871
        %v5883 = vmax.f32 %v5872, %v5873
        %v5884 = vmax.f32 %v5874, %v5875
        %v5885 = vmax.f32 %v5876, %v5877
        %v5886 = vpack.c.bf16 %v5879, %v5878
        %v5887 = vpack.c.bf16 %v5881, %v5880
        %v5888 = vpack.c.bf16 %v5883, %v5882
        %v5889 = vpack.c.bf16 %v5885, %v5884
        %v5890 = vld [vmem:[%s5] sm:$0x3]
        %v5891 = vld [vmem:[%s6] sm:$0x1]
        %v5893 = vlaneseq
        %v5894 = vshrl.u32 %v5893, 7
        %v5895 = vsub.s32 0, %v5894
        %v5896 = vrot.slane %v5891, %v5895
        %v5899 = vsel %vm278, %v5886, 0
        %v5902 = vsel %vm278, %v5887, 0
        %v5905 = vsel %vm278, %v5888, 0
        %v5908 = vsel %vm278, %v5889, 0
        %v5911 = vsel %vm568, %v5890, 0
        %5913 = vmatprep.subr.bf16.mxu0 0
        %5914 = vmatpush1.bf16.msra.mxu0 0
        %5915 = vmatprep.subr.bf16.mxu0 0
        %5916 = vmatpush1.bf16.msra.mxu0 0
        %5917 = vmatprep.subr.bf16.mxu0 0
        %5918 = vmatpush1.bf16.msra.mxu0 0
        %5919 = vmatprep.subr.bf16.mxu0 0
        %5920 = vmatpush1.bf16.msra.mxu0 0
        %5921 = vmatprep.subr.bf16.mxu0 0
        %5922 = vmatpush1.bf16.msra.mxu0 0
        %5923 = vmatprep.subr.bf16.mxu0 0
        %5924 = vmatpush1.bf16.msra.mxu0 0
        %5925 = vmatprep.subr.bf16.mxu0 0
        %5926 = vmatpush1.bf16.msra.mxu0 0
        %5927 = vmatprep.subr.bf16.mxu0 0
        %5928 = vmatpush1.bf16.msra.mxu0 %v5911
        %5929 = vmatprep.subr.bf16.mxu0 0
        %5930 = vmatpush2.bf16.msra.mxu0 0
        %5931 = vmatprep.subr.bf16.mxu0 0
        %5932 = vmatpush2.bf16.msra.mxu0 0
        %5933 = vmatprep.subr.bf16.mxu0 0
        %5934 = vmatpush2.bf16.msra.mxu0 0
        %5935 = vmatprep.subr.bf16.mxu0 0
        %5936 = vmatpush2.bf16.msra.mxu0 0
        %5937 = vmatprep.subr.bf16.mxu0 0
        %5938 = vmatpush2.bf16.msra.mxu0 0
        %5939 = vmatprep.subr.bf16.mxu0 0
        %5940 = vmatpush2.bf16.msra.mxu0 0
        %5941 = vmatprep.subr.bf16.mxu0 0
        %5942 = vmatpush2.bf16.msra.mxu0 0
        %5943 = vmatprep.subr.bf16.mxu0 0
        %5944 = vmatpush2.bf16.msra.mxu0 0
        %5945 = vmatprep.mubr.bf16.mxu0 0
        %5946 = vmatmul.mubr.bf16.gmra.mxu0 %v5899
        %v5947 = vpop.f32.mrf.mxu0
        %v5948 = vadd.f32 %v5896, %v5947
        %v5949 = vpop.f32.mrf.mxu0
        %v5950 = vpop.f32.mrf.mxu0
        %v5951 = vadd.f32 %v5896, %v5950
        %v5952 = vpop.f32.mrf.mxu0
        %5953 = vmatprep.mubr.bf16.mxu0 0
        %5954 = vmatmul.mubr.bf16.gmra.mxu0 %v5902
        %v5955 = vpop.f32.mrf.mxu0
        %v5956 = vadd.f32 %v5896, %v5955
        %v5957 = vpop.f32.mrf.mxu0
        %v5958 = vpop.f32.mrf.mxu0
        %v5959 = vadd.f32 %v5896, %v5958
        %v5960 = vpop.f32.mrf.mxu0
        %5961 = vmatprep.mubr.bf16.mxu0 0
        %5962 = vmatmul.mubr.bf16.gmra.mxu0 %v5905
        %v5963 = vpop.f32.mrf.mxu0
        %v5964 = vadd.f32 %v5896, %v5963
        %v5965 = vpop.f32.mrf.mxu0
        %v5966 = vpop.f32.mrf.mxu0
        %v5967 = vadd.f32 %v5896, %v5966
        %v5968 = vpop.f32.mrf.mxu0
        %5969 = vmatprep.mubr.bf16.mxu0 0
        %5970 = vmatmul.mubr.bf16.gmra.mxu0 %v5908
        %v5971 = vpop.f32.mrf.mxu0
        %v5972 = vadd.f32 %v5896, %v5971
        %v5973 = vpop.f32.mrf.mxu0
        %v5974 = vpop.f32.mrf.mxu0
        %v5975 = vadd.f32 %v5896, %v5974
        %v5976 = vpop.f32.mrf.mxu0
        %5977 = vdwg.mxu0
        %v5978 = vadd.f32 %v5791, %v5948
        %v5979 = vadd.f32 %v5792, %v5951
        %v5980 = vadd.f32 %v5793, %v5956
        %v5981 = vadd.f32 %v5794, %v5959
        %v5982 = vadd.f32 %v5795, %v5964
        %v5983 = vadd.f32 %v5796, %v5967
        %v5984 = vadd.f32 %v5797, %v5972
        %v5985 = vadd.f32 %v5798, %v5975
        %5986 = vst.msk [vmem:[%s271] sm:$0xff] %vm5743, %v5978
        %5987 = vst.msk [vmem:[%s271 + $0x8] sm:$0xff] %vm5743, %v5979
        %5988 = vst.msk [vmem:[%s271 + $0x10] sm:$0xff] %vm5743, %v5980
        %5989 = vst.msk [vmem:[%s271 + $0x18] sm:$0xff] %vm5743, %v5981
        %5990 = vst.msk [vmem:[%s271 + $0x20] sm:$0xff] %vm5743, %v5982
        %5991 = vst.msk [vmem:[%s271 + $0x28] sm:$0xff] %vm5743, %v5983
        %5992 = vst.msk [vmem:[%s271 + $0x30] sm:$0xff] %vm5743, %v5984
        %5993 = vst.msk [vmem:[%s271 + $0x38] sm:$0xff] %vm5743, %v5985
        %s5994 = sand.u32 %s181, 1
        %s5995 = scalar_lea.sflag [#allocation5], %s5994
        %s5996 = sand.u32 %s181, 1
        %s5997 = smul.addr %s5996, 64
        %s5998 = scalar_lea.vmem [#allocation4], %s5997
        // Predicated region
        $region49: #{tpu_custom_call.1} parent=47 // pred_check
          %p5999 = pneg %p191
        $region50: #{tpu_custom_call.1} parent=47 // pred_check_branch
          %6001 = sbr.rel (%p5999) target = $region52
        $region51: #{tpu_custom_call.1} parent=47 // pred_region
          %s6003 = ssub.s32 1024, 1024
          %6004 = vsyncadd %s5995, %s6003
          %s6005 = smul.addr %s21, 8
          %s6006 = smul.addr %s6005, 128
          %s6007 = scalar_lea.hbm %s7, %s6006
          %s6008 = sshll.u32 %s5998, 4
          %s6009 = int_to_ptr.vmem [resolvable:$true] %s6008
          %6014 = dma.vmem_to_hbm [thread:$0]  %s6009, 1024, %s6007, %s5995, 128, 128, 8
        $region52: #{tpu_custom_call.1} parent=47 // pred_fallthru
          _
      $region48: #{tpu_custom_call.1} parent=5 // pred_fallthru
        _
      %p6015 = scmp.le.s32.totalorder 2, %s16
      // Predicated region
      $region53: #{tpu_custom_call.1} parent=5 // pred_check
        %p6016 = pneg %p6015
      $region54: #{tpu_custom_call.1} parent=5 // pred_check_branch
        %6018 = sbr.rel (%p6016) target = $region56
      $region55: #{tpu_custom_call.1} parent=5 // pred_region
        %s6019 = ssub.s32 %s16, 2
        // Predicated region
        $region57: #{tpu_custom_call.1} parent=55 // pred_check
          %p6020 = pneg %p197
        $region58: #{tpu_custom_call.1} parent=55 // pred_check_branch
          %6022 = sbr.rel (%p6020) target = $region60
        $region59: #{tpu_custom_call.1} parent=55 // pred_region
          %s6023 = sand.u32 %s182, 1
          %s6024 = scalar_lea.sflag [#allocation5], %s6023
          %s6025 = sand.u32 %s182, 1
          %s6026 = smul.addr %s6025, 64
          %s6027 = scalar_lea.vmem [#allocation4], %s6026
          %6028 = dma.done %s6024, 1024
        $region60: #{tpu_custom_call.1} parent=55 // pred_fallthru
          _
      $region56: #{tpu_custom_call.1} parent=5 // pred_fallthru
        _
    $region6: #{tpu_custom_call.1} parent=1 // loop_footer
      %s20 = sadd.s32 1, %s16
    $region7: #{tpu_custom_call.1} parent=1 // loop_footer_branch
      %15 = sbr.rel target = $region3
    $region8: #{tpu_custom_call.1} parent=1 // loop_exit
      _
    %6029 = vsyncpa [#allocation5], 1
    %s6030 = scalar_lea.sflag [#allocation5], 1
    %6031 = vsyncpa %s6030, 1

</llo_original>
